<compile_context>
chip_gen: v5e
topology: v5e:2x2
jax: 0.10.0
libtpu: 0.0.40
codegen_flags: <defaults>
</compile_context>

<pallas_src>
import jax
import jax.numpy as jnp
from jax import lax
from jax.experimental import pallas as pl
from jax.experimental.pallas import tpu as pltpu


# ----------------------------------------------------------------------------- kernel
def encoder_gru_kernel(x_ref,                    # (T*Bp, E)   bf16, time-major rows: row = t*Bp + b
                       wi_ref, bi_ref,           # (E, 6H) bf16, (1, 6H) f32   cols [r_f|r_b|z_f|z_b|n_f|n_b]
                       wh_ref, bhn_ref,          # (2H, 6H) bf16 block-diag, (1, 2H) f32 n-gate hidden bias
                       wfc_ref, bfc_ref,         # (2H, Hd) bf16, (1, Hd) f32
                       out_ref, hid_ref,         # (T, Bp, 2H) f32, (Bp, Hd) f32
                       gi_ref):                  # (T*Bp, 6H) f32 VMEM scratch
    T, B, H2 = out_ref.shape
    H = H2 // 2

    # ---- (1) Hoisted input-side gate matmul: ONE bf16 MXU matmul for all timesteps / directions /
    #      gates, f32 accumulate.  Input biases AND r/z hidden biases are pre-folded into bi_ref.
    #      Result is staged in a VMEM scratch and read back per step (bounds vreg live ranges).
    gi_ref[...] = (jnp.dot(x_ref[...], wi_ref[...],
                           preferred_element_type=jnp.float32) + bi_ref[...])

    # Recurrent block-diagonal weight resident across the recurrence (bf16 MXU operand).
    wh = wh_ref[...]                                           # (2H, 6H)
    # ---- (2) n-gate hidden-bias broadcast hoisted out of the loop.
    bhn = jnp.broadcast_to(bhn_ref[...], (B, 2 * H))           # (B, 2H) = [bhn_f | bhn_b]

    def step(i, h):
        # h = [h_f | h_b] (B, 2H) f32.  Forward direction processes time i, backward T-1-i.
        tf = i
        tb = T - 1 - i
        gi_f = gi_ref[pl.ds(tf * B, B), :]                     # (B, 6H) row block for time tf
        gi_b = gi_ref[pl.ds(tb * B, B), :]                     # (B, 6H) row block for time tb

        # ---- (3) Single block-diagonal recurrent matmul for both directions.
        gh = jnp.dot(h.astype(jnp.bfloat16), wh,
                     preferred_element_type=jnp.float32)       # (B, 6H) [r_f|r_b|z_f|z_b|n_f|n_b]

        # ---- (4) One wide sigmoid over [r_f|r_b|z_f|z_b] (lane-concat at 128-aligned boundaries).
        s = jax.nn.sigmoid(
            jnp.concatenate([gi_f[:, 0:H],         gi_b[:, H:2 * H],
                             gi_f[:, 2 * H:3 * H], gi_b[:, 3 * H:4 * H]], axis=1)
            + gh[:, 0:4 * H])
        r = s[:, 0:2 * H]                                      # [r_f | r_b]
        z = s[:, 2 * H:4 * H]                                  # [z_f | z_b]

        # ---- (5) One wide tanh over [n_f|n_b]; n-gate hidden bias added PRE r-scaling (PyTorch GRU).
        n = jnp.tanh(
            jnp.concatenate([gi_f[:, 4 * H:5 * H], gi_b[:, 5 * H:6 * H]], axis=1)
            + r * (gh[:, 4 * H:6 * H] + bhn))

        h = (1.0 - z) * n + z * h                              # (B, 2H)

        # Lane-aligned, unmasked half-row stores (H is a multiple of 128).
        out_ref[tf, :, 0:H] = h[:, 0:H]
        out_ref[tb, :, H:2 * H] = h[:, H:2 * H]
        return h

    h = jnp.zeros((B, 2 * H), jnp.float32)
    if T <= 32:
        # Small T: full unroll with static indices (LLO sees the whole body).
        for i in range(T):
            h = step(i, h)
    else:
        # Large T: modest unroll caps code size / vreg pressure while keeping scheduling visibility.
        h = lax.fori_loop(0, T, step, h, unroll=4)

    # ---- (6) hidden = tanh(Linear(cat(h_fwd_final, h_bwd_final))) — one fused bf16 matmul.
    hid_ref[...] = jnp.tanh(
        jnp.dot(h.astype(jnp.bfloat16), wfc_ref[...],
                preferred_element_type=jnp.float32) + bfc_ref[...])


# ----------------------------------------------------------------------------- wrapper
def encoder_gru_forward(sequence, p):
    """sequence: (B, T) int32 token ids. Returns (outputs (B, T, 2H), hidden (B, Hd))."""
    B, T = sequence.shape
    E = p["embedding"].shape[1]
    H = p["wh_blk"].shape[0] // 2
    Hd = p["b_fc"].shape[-1]

    Bp = ((B + 7) // 8) * 8                                    # sublane-pad batch to a multiple of 8

    # Embedding gather with time-major indices: produces (T, B, E) directly (no (B,T,E)->(T,B,E)
    # activation transpose pass); cast to bf16 as an MXU operand.  dropout_layer: eval-mode identity.
    # TODO(synk): fuse the gather itself into the kernel via scalar-prefetch row DMA.
    x = p["embedding"][sequence.T].astype(jnp.bfloat16)        # (T, B, E)
    if Bp != B:
        x = jnp.pad(x, ((0, 0), (0, Bp - B), (0, 0)))          # zero rows: inert in the GRU math
    x2d = x.reshape(T * Bp, E)                                 # free row-major reshape

    # VMEM budget for whole-array residency (x, gi scratch, out, hid, weights) + headroom.
    vmem_need = (T * Bp * E * 2                                # x2d bf16
                 + T * Bp * 6 * H * 4                          # gi scratch f32
                 + T * Bp * 2 * H * 4                          # out f32
                 + Bp * Hd * 4                                 # hid f32
                 + (E * 6 * H + 2 * H * 6 * H + 2 * H * Hd) * 2  # bf16 weights
                 + (6 * H + 2 * H + Hd) * 4)                   # f32 biases
    vmem_limit = int(min(max(2 * vmem_need, 32 * 1024 * 1024), 64 * 1024 * 1024))

    vmem = pl.BlockSpec(memory_space=pltpu.MemorySpace.VMEM)
    out_tm, hid = pl.pallas_call(
        encoder_gru_kernel,
        out_shape=(jax.ShapeDtypeStruct((T, Bp, 2 * H), jnp.float32),
                   jax.ShapeDtypeStruct((Bp, Hd), jnp.float32)),
        in_specs=[vmem] * 7,
        out_specs=(vmem, vmem),
        scratch_shapes=[pltpu.VMEM((T * Bp, 6 * H), jnp.float32)],
        compiler_params=pltpu.CompilerParams(vmem_limit_bytes=vmem_limit),
    )(x2d,
      p["wi_cat"], p["bi_cat"],
      p["wh_blk"], p["bh_n"],
      p["w_fc"], p["b_fc"])

    outputs = jnp.transpose(out_tm[:, :B, :], (1, 0, 2))       # (B, T, 2H) batch_first
    # TODO(synk): A/B emitting batch-first directly via middle-dim stores vs this transpose pass.
    return outputs, hid[:B]


# ----------------------------------------------------------------------------- param fusion
def fuse_params(raw):
    """Build the lane-concatenated / block-diagonal bf16 weight layout the kernel expects.

    Gate column order everywhere: [r_f | r_b | z_f | z_b | n_f | n_b], each H lanes wide.
    """
    H = raw["wh_f"].shape[-1]
    assert H % 128 == 0, "kernel assumes lane-dense H (multiple of 128); module default is 128"
    # TODO(synk): zero lane-pad H to a multiple of 128 here for arbitrary hidden sizes.

    wi_f, wi_b = raw["wi_f"], raw["wi_b"]
    bi_f, bi_b = raw["bi_f"], raw["bi_b"]
    wh_f, wh_b = raw["wh_f"], raw["wh_b"]
    bh_f, bh_b = raw["bh_f"], raw["bh_b"]

    # Input-side gate weights, both directions, interleaved per gate.
    wi_cat = jnp.concatenate([wi_f[0], wi_b[0], wi_f[1], wi_b[1], wi_f[2], wi_b[2]], axis=1)  # (E, 6H)
    # Fold r/z hidden biases into the input bias (they add linearly inside the sigmoid);
    # the n-gate hidden bias must stay separate (it is scaled by r inside the kernel).
    bi_cat = jnp.concatenate([bi_f[0] + bh_f[0], bi_b[0] + bh_b[0],
                              bi_f[1] + bh_f[1], bi_b[1] + bh_b[1],
                              bi_f[2], bi_b[2]], axis=1)                                       # (1, 6H)

    # Block-diagonal recurrent weight: rows [0:H] = h_fwd, rows [H:2H] = h_bwd.
    zH = jnp.zeros((H, H), jnp.float32)
    top = jnp.concatenate([wh_f[0], zH, wh_f[1], zH, wh_f[2], zH], axis=1)                     # (H, 6H)
    bot = jnp.concatenate([zH, wh_b[0], zH, wh_b[1], zH, wh_b[2]], axis=1)                     # (H, 6H)
    wh_blk = jnp.concatenate([top, bot], axis=0)                                               # (2H, 6H)

    bh_n = jnp.concatenate([bh_f[2], bh_b[2]], axis=1)                                         # (1, 2H)
    w_fc = jnp.concatenate([raw["wfc_f"], raw["wfc_b"]], axis=0)                               # (2H, Hd)

    return {"embedding": raw["embedding"],
            "wi_cat": wi_cat.astype(jnp.bfloat16), "bi_cat": bi_cat.astype(jnp.float32),
            "wh_blk": wh_blk.astype(jnp.bfloat16), "bh_n": bh_n.astype(jnp.float32),
            "w_fc": w_fc.astype(jnp.bfloat16), "b_fc": raw["b_fc"].astype(jnp.float32)}


# ----------------------------------------------------------------------------- pure-JAX reference
def ref_forward(sequence, p):
    hp = jax.lax.Precision.HIGHEST
    emb = p["embedding"][sequence].astype(jnp.float32)          # (B, T, E)
    B, T, E = emb.shape
    H = p["wh_f"].shape[1]

    def cell(x_t, h, wi, wh, bi, bh):
        gi_r = jnp.dot(x_t, wi[0], precision=hp) + bi[0]
        gi_z = jnp.dot(x_t, wi[1], precision=hp) + bi[1]
        gi_n = jnp.dot(x_t, wi[2], precision=hp) + bi[2]
        gh_r = jnp.dot(h, wh[0], precision=hp) + bh[0]
        gh_z = jnp.dot(h, wh[1], precision=hp) + bh[1]
        gh_n = jnp.dot(h, wh[2], precision=hp) + bh[2]
        r = jax.nn.sigmoid(gi_r + gh_r)
        z = jax.nn.sigmoid(gi_z + gh_z)
        n = jnp.tanh(gi_n + r * gh_n)
        return (1.0 - z) * n + z * h

    h_f = jnp.zeros((B, H), jnp.float32)
    h_b = jnp.zeros((B, H), jnp.float32)
    outs_f, outs_b = [], [None] * T
    for t in range(T):
        h_f = cell(emb[:, t], h_f, p["wi_f"], p["wh_f"], p["bi_f"], p["bh_f"])
        outs_f.append(h_f)
    for t in range(T - 1, -1, -1):
        h_b = cell(emb[:, t], h_b, p["wi_b"], p["wh_b"], p["bi_b"], p["bh_b"])
        outs_b[t] = h_b
    outputs = jnp.concatenate([jnp.stack(outs_f, 1), jnp.stack(outs_b, 1)], axis=-1)
    hidden = jnp.tanh(jnp.dot(h_f, p["wfc_f"], precision=hp)
                      + jnp.dot(h_b, p["wfc_b"], precision=hp) + p["b_fc"])
    return outputs, hidden


# ----------------------------------------------------------------------------- main
if __name__ == "__main__":
    # Module-default feature dims (lane-dense), small batch / sequence.
    VOCAB, E, H, HD = 50, 128, 128, 128
    B, T = 2, 8

    key = jax.random.PRNGKey(0)
    ks = jax.random.split(key, 16)

    def rnd(k, shape, scale=0.1):
        return (scale * jax.random.normal(k, shape)).astype(jnp.float32)

    raw = {
        "embedding": rnd(ks[0], (VOCAB, E), 0.5),
        # forward-direction GRU weights (gate order r,z,n), stored input-major for x @ W
        "wi_f": rnd(ks[1], (3, E, H)), "wh_f": rnd(ks[2], (3, H, H)),
        "bi_f": rnd(ks[3], (3, 1, H)), "bh_f": rnd(ks[4], (3, 1, H)),
        # backward-direction GRU weights
        "wi_b": rnd(ks[5], (3, E, H)), "wh_b": rnd(ks[6], (3, H, H)),
        "bi_b": rnd(ks[7], (3, 1, H)), "bh_b": rnd(ks[8], (3, 1, H)),
        # fc_layer: Linear(2H -> HD), split into the fwd/bwd halves of W^T
        "wfc_f": rnd(ks[9], (H, HD)), "wfc_b": rnd(ks[10], (H, HD)),
        "b_fc": rnd(ks[11], (1, HD)),
    }
    params = fuse_params(raw)

    sequence = jax.random.randint(ks[12], (B, T), 0, VOCAB, dtype=jnp.int32)

    outputs, hidden = encoder_gru_forward(sequence, params)
    outputs = jax.block_until_ready(outputs)
    hidden = jax.block_until_ready(hidden)

    assert outputs.shape == (B, T, 2 * H), outputs.shape
    assert hidden.shape == (B, HD), hidden.shape

    ref_out, ref_hid = ref_forward(sequence, raw)
    # Tolerance loosened vs the pure-f32 version: kernel uses bf16 MXU operands with f32 accumulation
    # (reference is f32 Precision.HIGHEST), per the perf-review bf16 recommendation.
    assert jnp.allclose(outputs, ref_out, atol=3e-2, rtol=3e-2), "outputs mismatch"
    assert jnp.allclose(hidden, ref_hid, atol=3e-2, rtol=3e-2), "hidden mismatch"

    # TODO(synk): training-mode dropout mask (nn.Dropout p=0.3) not modeled; eval-mode identity used.
    print("KERNEL_OK")
</pallas_src>

<mosaic_0001>
module attributes {stable_mosaic.version = 11 : i64} {
  func.func @encoder_gru_kernel(%arg0: memref<64x128xbf16, #tpu.memory_space<vmem>>, %arg1: memref<128x768xbf16, #tpu.memory_space<vmem>>, %arg2: memref<1x768xf32, #tpu.memory_space<vmem>>, %arg3: memref<256x768xbf16, #tpu.memory_space<vmem>>, %arg4: memref<1x256xf32, #tpu.memory_space<vmem>>, %arg5: memref<256x128xbf16, #tpu.memory_space<vmem>>, %arg6: memref<1x128xf32, #tpu.memory_space<vmem>>, %arg7: memref<8x8x256xf32, #tpu.memory_space<vmem>>, %arg8: memref<8x128xf32, #tpu.memory_space<vmem>>, %arg9: memref<64x768xf32, #tpu.memory_space<vmem>>) attributes {dimension_semantics = [], scalar_prefetch = 0 : i64, scratch_operands = 1 : i64, tpu.core_type = #tpu.core_type<tc>} {
    %c0 = arith.constant 0 : index
    %c0_0 = arith.constant 0 : index
    %0 = vector.load %arg0[%c0, %c0_0] : memref<64x128xbf16, #tpu.memory_space<vmem>>, vector<64x128xbf16>
    %c0_1 = arith.constant 0 : index
    %c0_2 = arith.constant 0 : index
    %1 = vector.load %arg1[%c0_1, %c0_2] : memref<128x768xbf16, #tpu.memory_space<vmem>>, vector<128x768xbf16>
    %cst = arith.constant dense<0.000000e+00> : vector<64x768xf32>
    %2 = tpu.matmul %0, %1, %cst {dimension_numbers = #tpu.dot_dimension_numbers<[1], [0], [0], [1], [0, 0, 1, 1], [], []>} : vector<64x128xbf16>, vector<128x768xbf16>, vector<64x768xf32> -> vector<64x768xf32>
    %c0_3 = arith.constant 0 : index
    %c0_4 = arith.constant 0 : index
    %3 = vector.load %arg2[%c0_3, %c0_4] : memref<1x768xf32, #tpu.memory_space<vmem>>, vector<1x768xf32>
    %4 = vector.broadcast %3 : vector<1x768xf32> to vector<64x768xf32>
    %5 = arith.addf %2, %4 : vector<64x768xf32>
    %c0_5 = arith.constant 0 : index
    %c0_6 = arith.constant 0 : index
    %6 = vector.load %arg9[%c0_5, %c0_6] : memref<64x768xf32, #tpu.memory_space<vmem>>, vector<64x768xf32>
    tpu.vector_store %arg9[%c0_5, %c0_6], %5 {strides = array<i32>} : memref<64x768xf32, #tpu.memory_space<vmem>>, vector<64x768xf32>,
    %c0_7 = arith.constant 0 : index
    %c0_8 = arith.constant 0 : index
    %7 = vector.load %arg3[%c0_7, %c0_8] : memref<256x768xbf16, #tpu.memory_space<vmem>>, vector<256x768xbf16>
    %c0_9 = arith.constant 0 : index
    %c0_10 = arith.constant 0 : index
    %8 = vector.load %arg4[%c0_9, %c0_10] : memref<1x256xf32, #tpu.memory_space<vmem>>, vector<1x256xf32>
    %9 = vector.shape_cast %8 : vector<1x256xf32> to vector<1x256xf32>
    %10 = vector.broadcast %9 : vector<1x256xf32> to vector<8x256xf32>
    %cst_11 = arith.constant 0.000000e+00 : f32
    %11 = vector.broadcast %cst_11 : f32 to vector<8x256xf32>
    %c0_12 = arith.constant 0 : index
    %c0_13 = arith.constant 0 : index
    %12 = vector.load %arg9[%c0_12, %c0_13] : memref<64x768xf32, #tpu.memory_space<vmem>>, vector<8x768xf32>
    %c56 = arith.constant 56 : index
    %c0_14 = arith.constant 0 : index
    %13 = vector.load %arg9[%c56, %c0_14] : memref<64x768xf32, #tpu.memory_space<vmem>>, vector<8x768xf32>
    %14 = arith.truncf %11 : vector<8x256xf32> to vector<8x256xbf16>
    %cst_15 = arith.constant dense<0.000000e+00> : vector<8x768xf32>
    %15 = tpu.matmul %14, %7, %cst_15 {dimension_numbers = #tpu.dot_dimension_numbers<[1], [0], [0], [1], [0, 0, 1, 1], [], []>} : vector<8x256xbf16>, vector<256x768xbf16>, vector<8x768xf32> -> vector<8x768xf32>
    %16 = vector.extract_strided_slice %12 {offsets = [0, 0], sizes = [8, 128], strides = [1, 1]} : vector<8x768xf32> to vector<8x128xf32>
    %17 = vector.extract_strided_slice %13 {offsets = [0, 128], sizes = [8, 128], strides = [1, 1]} : vector<8x768xf32> to vector<8x128xf32>
    %18 = vector.extract_strided_slice %12 {offsets = [0, 256], sizes = [8, 128], strides = [1, 1]} : vector<8x768xf32> to vector<8x128xf32>
    %19 = vector.extract_strided_slice %13 {offsets = [0, 384], sizes = [8, 128], strides = [1, 1]} : vector<8x768xf32> to vector<8x128xf32>
    %20 = tpu.concatenate %16, %17, %18, %19 in 1 : vector<8x128xf32>, vector<8x128xf32>, vector<8x128xf32>, vector<8x128xf32> -> vector<8x512xf32>
    %21 = vector.extract_strided_slice %15 {offsets = [0, 0], sizes = [8, 512], strides = [1, 1]} : vector<8x768xf32> to vector<8x512xf32>
    %22 = arith.addf %20, %21 : vector<8x512xf32>
    %23 = arith.negf %22 : vector<8x512xf32>
    %24 = math.exp %23 : vector<8x512xf32>
    %cst_16 = arith.constant 1.000000e+00 : f32
    %25 = vector.broadcast %cst_16 : f32 to vector<8x512xf32>
    %26 = arith.addf %25, %24 : vector<8x512xf32>
    %27 = arith.divf %25, %26 : vector<8x512xf32>
    %28 = vector.extract_strided_slice %27 {offsets = [0, 0], sizes = [8, 256], strides = [1, 1]} : vector<8x512xf32> to vector<8x256xf32>
    %29 = vector.extract_strided_slice %27 {offsets = [0, 256], sizes = [8, 256], strides = [1, 1]} : vector<8x512xf32> to vector<8x256xf32>
    %30 = vector.extract_strided_slice %12 {offsets = [0, 512], sizes = [8, 128], strides = [1, 1]} : vector<8x768xf32> to vector<8x128xf32>
    %31 = vector.extract_strided_slice %13 {offsets = [0, 640], sizes = [8, 128], strides = [1, 1]} : vector<8x768xf32> to vector<8x128xf32>
    %32 = tpu.concatenate %30, %31 in 1 : vector<8x128xf32>, vector<8x128xf32> -> vector<8x256xf32>
    %33 = vector.extract_strided_slice %15 {offsets = [0, 512], sizes = [8, 256], strides = [1, 1]} : vector<8x768xf32> to vector<8x256xf32>
    %34 = arith.addf %33, %10 : vector<8x256xf32>
    %35 = arith.mulf %28, %34 : vector<8x256xf32>
    %36 = arith.addf %32, %35 : vector<8x256xf32>
    %37 = math.tanh %36 : vector<8x256xf32>
    %cst_17 = arith.constant 1.000000e+00 : f32
    %38 = vector.broadcast %cst_17 : f32 to vector<8x256xf32>
    %39 = arith.subf %38, %29 : vector<8x256xf32>
    %40 = arith.mulf %39, %37 : vector<8x256xf32>
    %41 = arith.mulf %29, %11 : vector<8x256xf32>
    %42 = arith.addf %40, %41 : vector<8x256xf32>
    %43 = vector.extract_strided_slice %42 {offsets = [0, 0], sizes = [8, 128], strides = [1, 1]} : vector<8x256xf32> to vector<8x128xf32>
    %c0_18 = arith.constant 0 : index
    %c0_19 = arith.constant 0 : index
    %c0_20 = arith.constant 0 : index
    %44 = vector.load %arg7[%c0_18, %c0_19, %c0_20] : memref<8x8x256xf32, #tpu.memory_space<vmem>>, vector<1x8x128xf32>
    %45 = vector.shape_cast %44 : vector<1x8x128xf32> to vector<8x128xf32>
    %46 = vector.shape_cast %43 : vector<8x128xf32> to vector<1x8x128xf32>
    tpu.vector_store %arg7[%c0_18, %c0_19, %c0_20], %46 {strides = array<i32>} : memref<8x8x256xf32, #tpu.memory_space<vmem>>, vector<1x8x128xf32>,
    %47 = vector.extract_strided_slice %42 {offsets = [0, 128], sizes = [8, 128], strides = [1, 1]} : vector<8x256xf32> to vector<8x128xf32>
    %c7 = arith.constant 7 : index
    %c0_21 = arith.constant 0 : index
    %c128 = arith.constant 128 : index
    %48 = vector.load %arg7[%c7, %c0_21, %c128] : memref<8x8x256xf32, #tpu.memory_space<vmem>>, vector<1x8x128xf32>
    %49 = vector.shape_cast %48 : vector<1x8x128xf32> to vector<8x128xf32>
    %50 = vector.shape_cast %47 : vector<8x128xf32> to vector<1x8x128xf32>
    tpu.vector_store %arg7[%c7, %c0_21, %c128], %50 {strides = array<i32>} : memref<8x8x256xf32, #tpu.memory_space<vmem>>, vector<1x8x128xf32>,
    %c8 = arith.constant 8 : index
    %c0_22 = arith.constant 0 : index
    %51 = vector.load %arg9[%c8, %c0_22] : memref<64x768xf32, #tpu.memory_space<vmem>>, vector<8x768xf32>
    %c48 = arith.constant 48 : index
    %c0_23 = arith.constant 0 : index
    %52 = vector.load %arg9[%c48, %c0_23] : memref<64x768xf32, #tpu.memory_space<vmem>>, vector<8x768xf32>
    %53 = arith.truncf %42 : vector<8x256xf32> to vector<8x256xbf16>
    %cst_24 = arith.constant dense<0.000000e+00> : vector<8x768xf32>
    %54 = tpu.matmul %53, %7, %cst_24 {dimension_numbers = #tpu.dot_dimension_numbers<[1], [0], [0], [1], [0, 0, 1, 1], [], []>} : vector<8x256xbf16>, vector<256x768xbf16>, vector<8x768xf32> -> vector<8x768xf32>
    %55 = vector.extract_strided_slice %51 {offsets = [0, 0], sizes = [8, 128], strides = [1, 1]} : vector<8x768xf32> to vector<8x128xf32>
    %56 = vector.extract_strided_slice %52 {offsets = [0, 128], sizes = [8, 128], strides = [1, 1]} : vector<8x768xf32> to vector<8x128xf32>
    %57 = vector.extract_strided_slice %51 {offsets = [0, 256], sizes = [8, 128], strides = [1, 1]} : vector<8x768xf32> to vector<8x128xf32>
    %58 = vector.extract_strided_slice %52 {offsets = [0, 384], sizes = [8, 128], strides = [1, 1]} : vector<8x768xf32> to vector<8x128xf32>
    %59 = tpu.concatenate %55, %56, %57, %58 in 1 : vector<8x128xf32>, vector<8x128xf32>, vector<8x128xf32>, vector<8x128xf32> -> vector<8x512xf32>
    %60 = vector.extract_strided_slice %54 {offsets = [0, 0], sizes = [8, 512], strides = [1, 1]} : vector<8x768xf32> to vector<8x512xf32>
    %61 = arith.addf %59, %60 : vector<8x512xf32>
    %62 = arith.negf %61 : vector<8x512xf32>
    %63 = math.exp %62 : vector<8x512xf32>
    %cst_25 = arith.constant 1.000000e+00 : f32
    %64 = vector.broadcast %cst_25 : f32 to vector<8x512xf32>
    %65 = arith.addf %64, %63 : vector<8x512xf32>
    %66 = arith.divf %64, %65 : vector<8x512xf32>
    %67 = vector.extract_strided_slice %66 {offsets = [0, 0], sizes = [8, 256], strides = [1, 1]} : vector<8x512xf32> to vector<8x256xf32>
    %68 = vector.extract_strided_slice %66 {offsets = [0, 256], sizes = [8, 256], strides = [1, 1]} : vector<8x512xf32> to vector<8x256xf32>
    %69 = vector.extract_strided_slice %51 {offsets = [0, 512], sizes = [8, 128], strides = [1, 1]} : vector<8x768xf32> to vector<8x128xf32>
    %70 = vector.extract_strided_slice %52 {offsets = [0, 640], sizes = [8, 128], strides = [1, 1]} : vector<8x768xf32> to vector<8x128xf32>
    %71 = tpu.concatenate %69, %70 in 1 : vector<8x128xf32>, vector<8x128xf32> -> vector<8x256xf32>
    %72 = vector.extract_strided_slice %54 {offsets = [0, 512], sizes = [8, 256], strides = [1, 1]} : vector<8x768xf32> to vector<8x256xf32>
    %73 = arith.addf %72, %10 : vector<8x256xf32>
    %74 = arith.mulf %67, %73 : vector<8x256xf32>
    %75 = arith.addf %71, %74 : vector<8x256xf32>
    %76 = math.tanh %75 : vector<8x256xf32>
    %cst_26 = arith.constant 1.000000e+00 : f32
    %77 = vector.broadcast %cst_26 : f32 to vector<8x256xf32>
    %78 = arith.subf %77, %68 : vector<8x256xf32>
    %79 = arith.mulf %78, %76 : vector<8x256xf32>
    %80 = arith.mulf %68, %42 : vector<8x256xf32>
    %81 = arith.addf %79, %80 : vector<8x256xf32>
    %82 = vector.extract_strided_slice %81 {offsets = [0, 0], sizes = [8, 128], strides = [1, 1]} : vector<8x256xf32> to vector<8x128xf32>
    %c1 = arith.constant 1 : index
    %c0_27 = arith.constant 0 : index
    %c0_28 = arith.constant 0 : index
    %83 = vector.load %arg7[%c1, %c0_27, %c0_28] : memref<8x8x256xf32, #tpu.memory_space<vmem>>, vector<1x8x128xf32>
    %84 = vector.shape_cast %83 : vector<1x8x128xf32> to vector<8x128xf32>
    %85 = vector.shape_cast %82 : vector<8x128xf32> to vector<1x8x128xf32>
    tpu.vector_store %arg7[%c1, %c0_27, %c0_28], %85 {strides = array<i32>} : memref<8x8x256xf32, #tpu.memory_space<vmem>>, vector<1x8x128xf32>,
    %86 = vector.extract_strided_slice %81 {offsets = [0, 128], sizes = [8, 128], strides = [1, 1]} : vector<8x256xf32> to vector<8x128xf32>
    %c6 = arith.constant 6 : index
    %c0_29 = arith.constant 0 : index
    %c128_30 = arith.constant 128 : index
    %87 = vector.load %arg7[%c6, %c0_29, %c128_30] : memref<8x8x256xf32, #tpu.memory_space<vmem>>, vector<1x8x128xf32>
    %88 = vector.shape_cast %87 : vector<1x8x128xf32> to vector<8x128xf32>
    %89 = vector.shape_cast %86 : vector<8x128xf32> to vector<1x8x128xf32>
    tpu.vector_store %arg7[%c6, %c0_29, %c128_30], %89 {strides = array<i32>} : memref<8x8x256xf32, #tpu.memory_space<vmem>>, vector<1x8x128xf32>,
    %c16 = arith.constant 16 : index
    %c0_31 = arith.constant 0 : index
    %90 = vector.load %arg9[%c16, %c0_31] : memref<64x768xf32, #tpu.memory_space<vmem>>, vector<8x768xf32>
    %c40 = arith.constant 40 : index
    %c0_32 = arith.constant 0 : index
    %91 = vector.load %arg9[%c40, %c0_32] : memref<64x768xf32, #tpu.memory_space<vmem>>, vector<8x768xf32>
    %92 = arith.truncf %81 : vector<8x256xf32> to vector<8x256xbf16>
    %cst_33 = arith.constant dense<0.000000e+00> : vector<8x768xf32>
    %93 = tpu.matmul %92, %7, %cst_33 {dimension_numbers = #tpu.dot_dimension_numbers<[1], [0], [0], [1], [0, 0, 1, 1], [], []>} : vector<8x256xbf16>, vector<256x768xbf16>, vector<8x768xf32> -> vector<8x768xf32>
    %94 = vector.extract_strided_slice %90 {offsets = [0, 0], sizes = [8, 128], strides = [1, 1]} : vector<8x768xf32> to vector<8x128xf32>
    %95 = vector.extract_strided_slice %91 {offsets = [0, 128], sizes = [8, 128], strides = [1, 1]} : vector<8x768xf32> to vector<8x128xf32>
    %96 = vector.extract_strided_slice %90 {offsets = [0, 256], sizes = [8, 128], strides = [1, 1]} : vector<8x768xf32> to vector<8x128xf32>
    %97 = vector.extract_strided_slice %91 {offsets = [0, 384], sizes = [8, 128], strides = [1, 1]} : vector<8x768xf32> to vector<8x128xf32>
    %98 = tpu.concatenate %94, %95, %96, %97 in 1 : vector<8x128xf32>, vector<8x128xf32>, vector<8x128xf32>, vector<8x128xf32> -> vector<8x512xf32>
    %99 = vector.extract_strided_slice %93 {offsets = [0, 0], sizes = [8, 512], strides = [1, 1]} : vector<8x768xf32> to vector<8x512xf32>
    %100 = arith.addf %98, %99 : vector<8x512xf32>
    %101 = arith.negf %100 : vector<8x512xf32>
    %102 = math.exp %101 : vector<8x512xf32>
    %cst_34 = arith.constant 1.000000e+00 : f32
    %103 = vector.broadcast %cst_34 : f32 to vector<8x512xf32>
    %104 = arith.addf %103, %102 : vector<8x512xf32>
    %105 = arith.divf %103, %104 : vector<8x512xf32>
    %106 = vector.extract_strided_slice %105 {offsets = [0, 0], sizes = [8, 256], strides = [1, 1]} : vector<8x512xf32> to vector<8x256xf32>
    %107 = vector.extract_strided_slice %105 {offsets = [0, 256], sizes = [8, 256], strides = [1, 1]} : vector<8x512xf32> to vector<8x256xf32>
    %108 = vector.extract_strided_slice %90 {offsets = [0, 512], sizes = [8, 128], strides = [1, 1]} : vector<8x768xf32> to vector<8x128xf32>
    %109 = vector.extract_strided_slice %91 {offsets = [0, 640], sizes = [8, 128], strides = [1, 1]} : vector<8x768xf32> to vector<8x128xf32>
    %110 = tpu.concatenate %108, %109 in 1 : vector<8x128xf32>, vector<8x128xf32> -> vector<8x256xf32>
    %111 = vector.extract_strided_slice %93 {offsets = [0, 512], sizes = [8, 256], strides = [1, 1]} : vector<8x768xf32> to vector<8x256xf32>
    %112 = arith.addf %111, %10 : vector<8x256xf32>
    %113 = arith.mulf %106, %112 : vector<8x256xf32>
    %114 = arith.addf %110, %113 : vector<8x256xf32>
    %115 = math.tanh %114 : vector<8x256xf32>
    %cst_35 = arith.constant 1.000000e+00 : f32
    %116 = vector.broadcast %cst_35 : f32 to vector<8x256xf32>
    %117 = arith.subf %116, %107 : vector<8x256xf32>
    %118 = arith.mulf %117, %115 : vector<8x256xf32>
    %119 = arith.mulf %107, %81 : vector<8x256xf32>
    %120 = arith.addf %118, %119 : vector<8x256xf32>
    %121 = vector.extract_strided_slice %120 {offsets = [0, 0], sizes = [8, 128], strides = [1, 1]} : vector<8x256xf32> to vector<8x128xf32>
    %c2 = arith.constant 2 : index
    %c0_36 = arith.constant 0 : index
    %c0_37 = arith.constant 0 : index
    %122 = vector.load %arg7[%c2, %c0_36, %c0_37] : memref<8x8x256xf32, #tpu.memory_space<vmem>>, vector<1x8x128xf32>
    %123 = vector.shape_cast %122 : vector<1x8x128xf32> to vector<8x128xf32>
    %124 = vector.shape_cast %121 : vector<8x128xf32> to vector<1x8x128xf32>
    tpu.vector_store %arg7[%c2, %c0_36, %c0_37], %124 {strides = array<i32>} : memref<8x8x256xf32, #tpu.memory_space<vmem>>, vector<1x8x128xf32>,
    %125 = vector.extract_strided_slice %120 {offsets = [0, 128], sizes = [8, 128], strides = [1, 1]} : vector<8x256xf32> to vector<8x128xf32>
    %c5 = arith.constant 5 : index
    %c0_38 = arith.constant 0 : index
    %c128_39 = arith.constant 128 : index
    %126 = vector.load %arg7[%c5, %c0_38, %c128_39] : memref<8x8x256xf32, #tpu.memory_space<vmem>>, vector<1x8x128xf32>
    %127 = vector.shape_cast %126 : vector<1x8x128xf32> to vector<8x128xf32>
    %128 = vector.shape_cast %125 : vector<8x128xf32> to vector<1x8x128xf32>
    tpu.vector_store %arg7[%c5, %c0_38, %c128_39], %128 {strides = array<i32>} : memref<8x8x256xf32, #tpu.memory_space<vmem>>, vector<1x8x128xf32>,
    %c24 = arith.constant 24 : index
    %c0_40 = arith.constant 0 : index
    %129 = vector.load %arg9[%c24, %c0_40] : memref<64x768xf32, #tpu.memory_space<vmem>>, vector<8x768xf32>
    %c32 = arith.constant 32 : index
    %c0_41 = arith.constant 0 : index
    %130 = vector.load %arg9[%c32, %c0_41] : memref<64x768xf32, #tpu.memory_space<vmem>>, vector<8x768xf32>
    %131 = arith.truncf %120 : vector<8x256xf32> to vector<8x256xbf16>
    %cst_42 = arith.constant dense<0.000000e+00> : vector<8x768xf32>
    %132 = tpu.matmul %131, %7, %cst_42 {dimension_numbers = #tpu.dot_dimension_numbers<[1], [0], [0], [1], [0, 0, 1, 1], [], []>} : vector<8x256xbf16>, vector<256x768xbf16>, vector<8x768xf32> -> vector<8x768xf32>
    %133 = vector.extract_strided_slice %129 {offsets = [0, 0], sizes = [8, 128], strides = [1, 1]} : vector<8x768xf32> to vector<8x128xf32>
    %134 = vector.extract_strided_slice %130 {offsets = [0, 128], sizes = [8, 128], strides = [1, 1]} : vector<8x768xf32> to vector<8x128xf32>
    %135 = vector.extract_strided_slice %129 {offsets = [0, 256], sizes = [8, 128], strides = [1, 1]} : vector<8x768xf32> to vector<8x128xf32>
    %136 = vector.extract_strided_slice %130 {offsets = [0, 384], sizes = [8, 128], strides = [1, 1]} : vector<8x768xf32> to vector<8x128xf32>
    %137 = tpu.concatenate %133, %134, %135, %136 in 1 : vector<8x128xf32>, vector<8x128xf32>, vector<8x128xf32>, vector<8x128xf32> -> vector<8x512xf32>
    %138 = vector.extract_strided_slice %132 {offsets = [0, 0], sizes = [8, 512], strides = [1, 1]} : vector<8x768xf32> to vector<8x512xf32>
    %139 = arith.addf %137, %138 : vector<8x512xf32>
    %140 = arith.negf %139 : vector<8x512xf32>
    %141 = math.exp %140 : vector<8x512xf32>
    %cst_43 = arith.constant 1.000000e+00 : f32
    %142 = vector.broadcast %cst_43 : f32 to vector<8x512xf32>
    %143 = arith.addf %142, %141 : vector<8x512xf32>
    %144 = arith.divf %142, %143 : vector<8x512xf32>
    %145 = vector.extract_strided_slice %144 {offsets = [0, 0], sizes = [8, 256], strides = [1, 1]} : vector<8x512xf32> to vector<8x256xf32>
    %146 = vector.extract_strided_slice %144 {offsets = [0, 256], sizes = [8, 256], strides = [1, 1]} : vector<8x512xf32> to vector<8x256xf32>
    %147 = vector.extract_strided_slice %129 {offsets = [0, 512], sizes = [8, 128], strides = [1, 1]} : vector<8x768xf32> to vector<8x128xf32>
    %148 = vector.extract_strided_slice %130 {offsets = [0, 640], sizes = [8, 128], strides = [1, 1]} : vector<8x768xf32> to vector<8x128xf32>
    %149 = tpu.concatenate %147, %148 in 1 : vector<8x128xf32>, vector<8x128xf32> -> vector<8x256xf32>
    %150 = vector.extract_strided_slice %132 {offsets = [0, 512], sizes = [8, 256], strides = [1, 1]} : vector<8x768xf32> to vector<8x256xf32>
    %151 = arith.addf %150, %10 : vector<8x256xf32>
    %152 = arith.mulf %145, %151 : vector<8x256xf32>
    %153 = arith.addf %149, %152 : vector<8x256xf32>
    %154 = math.tanh %153 : vector<8x256xf32>
    %cst_44 = arith.constant 1.000000e+00 : f32
    %155 = vector.broadcast %cst_44 : f32 to vector<8x256xf32>
    %156 = arith.subf %155, %146 : vector<8x256xf32>
    %157 = arith.mulf %156, %154 : vector<8x256xf32>
    %158 = arith.mulf %146, %120 : vector<8x256xf32>
    %159 = arith.addf %157, %158 : vector<8x256xf32>
    %160 = vector.extract_strided_slice %159 {offsets = [0, 0], sizes = [8, 128], strides = [1, 1]} : vector<8x256xf32> to vector<8x128xf32>
    %c3 = arith.constant 3 : index
    %c0_45 = arith.constant 0 : index
    %c0_46 = arith.constant 0 : index
    %161 = vector.load %arg7[%c3, %c0_45, %c0_46] : memref<8x8x256xf32, #tpu.memory_space<vmem>>, vector<1x8x128xf32>
    %162 = vector.shape_cast %161 : vector<1x8x128xf32> to vector<8x128xf32>
    %163 = vector.shape_cast %160 : vector<8x128xf32> to vector<1x8x128xf32>
    tpu.vector_store %arg7[%c3, %c0_45, %c0_46], %163 {strides = array<i32>} : memref<8x8x256xf32, #tpu.memory_space<vmem>>, vector<1x8x128xf32>,
    %164 = vector.extract_strided_slice %159 {offsets = [0, 128], sizes = [8, 128], strides = [1, 1]} : vector<8x256xf32> to vector<8x128xf32>
    %c4 = arith.constant 4 : index
    %c0_47 = arith.constant 0 : index
    %c128_48 = arith.constant 128 : index
    %165 = vector.load %arg7[%c4, %c0_47, %c128_48] : memref<8x8x256xf32, #tpu.memory_space<vmem>>, vector<1x8x128xf32>
    %166 = vector.shape_cast %165 : vector<1x8x128xf32> to vector<8x128xf32>
    %167 = vector.shape_cast %164 : vector<8x128xf32> to vector<1x8x128xf32>
    tpu.vector_store %arg7[%c4, %c0_47, %c128_48], %167 {strides = array<i32>} : memref<8x8x256xf32, #tpu.memory_space<vmem>>, vector<1x8x128xf32>,
    %c32_49 = arith.constant 32 : index
    %c0_50 = arith.constant 0 : index
    %168 = vector.load %arg9[%c32_49, %c0_50] : memref<64x768xf32, #tpu.memory_space<vmem>>, vector<8x768xf32>
    %c24_51 = arith.constant 24 : index
    %c0_52 = arith.constant 0 : index
    %169 = vector.load %arg9[%c24_51, %c0_52] : memref<64x768xf32, #tpu.memory_space<vmem>>, vector<8x768xf32>
    %170 = arith.truncf %159 : vector<8x256xf32> to vector<8x256xbf16>
    %cst_53 = arith.constant dense<0.000000e+00> : vector<8x768xf32>
    %171 = tpu.matmul %170, %7, %cst_53 {dimension_numbers = #tpu.dot_dimension_numbers<[1], [0], [0], [1], [0, 0, 1, 1], [], []>} : vector<8x256xbf16>, vector<256x768xbf16>, vector<8x768xf32> -> vector<8x768xf32>
    %172 = vector.extract_strided_slice %168 {offsets = [0, 0], sizes = [8, 128], strides = [1, 1]} : vector<8x768xf32> to vector<8x128xf32>
    %173 = vector.extract_strided_slice %169 {offsets = [0, 128], sizes = [8, 128], strides = [1, 1]} : vector<8x768xf32> to vector<8x128xf32>
    %174 = vector.extract_strided_slice %168 {offsets = [0, 256], sizes = [8, 128], strides = [1, 1]} : vector<8x768xf32> to vector<8x128xf32>
    %175 = vector.extract_strided_slice %169 {offsets = [0, 384], sizes = [8, 128], strides = [1, 1]} : vector<8x768xf32> to vector<8x128xf32>
    %176 = tpu.concatenate %172, %173, %174, %175 in 1 : vector<8x128xf32>, vector<8x128xf32>, vector<8x128xf32>, vector<8x128xf32> -> vector<8x512xf32>
    %177 = vector.extract_strided_slice %171 {offsets = [0, 0], sizes = [8, 512], strides = [1, 1]} : vector<8x768xf32> to vector<8x512xf32>
    %178 = arith.addf %176, %177 : vector<8x512xf32>
    %179 = arith.negf %178 : vector<8x512xf32>
    %180 = math.exp %179 : vector<8x512xf32>
    %cst_54 = arith.constant 1.000000e+00 : f32
    %181 = vector.broadcast %cst_54 : f32 to vector<8x512xf32>
    %182 = arith.addf %181, %180 : vector<8x512xf32>
    %183 = arith.divf %181, %182 : vector<8x512xf32>
    %184 = vector.extract_strided_slice %183 {offsets = [0, 0], sizes = [8, 256], strides = [1, 1]} : vector<8x512xf32> to vector<8x256xf32>
    %185 = vector.extract_strided_slice %183 {offsets = [0, 256], sizes = [8, 256], strides = [1, 1]} : vector<8x512xf32> to vector<8x256xf32>
    %186 = vector.extract_strided_slice %168 {offsets = [0, 512], sizes = [8, 128], strides = [1, 1]} : vector<8x768xf32> to vector<8x128xf32>
    %187 = vector.extract_strided_slice %169 {offsets = [0, 640], sizes = [8, 128], strides = [1, 1]} : vector<8x768xf32> to vector<8x128xf32>
    %188 = tpu.concatenate %186, %187 in 1 : vector<8x128xf32>, vector<8x128xf32> -> vector<8x256xf32>
    %189 = vector.extract_strided_slice %171 {offsets = [0, 512], sizes = [8, 256], strides = [1, 1]} : vector<8x768xf32> to vector<8x256xf32>
    %190 = arith.addf %189, %10 : vector<8x256xf32>
    %191 = arith.mulf %184, %190 : vector<8x256xf32>
    %192 = arith.addf %188, %191 : vector<8x256xf32>
    %193 = math.tanh %192 : vector<8x256xf32>
    %cst_55 = arith.constant 1.000000e+00 : f32
    %194 = vector.broadcast %cst_55 : f32 to vector<8x256xf32>
    %195 = arith.subf %194, %185 : vector<8x256xf32>
    %196 = arith.mulf %195, %193 : vector<8x256xf32>
    %197 = arith.mulf %185, %159 : vector<8x256xf32>
    %198 = arith.addf %196, %197 : vector<8x256xf32>
    %199 = vector.extract_strided_slice %198 {offsets = [0, 0], sizes = [8, 128], strides = [1, 1]} : vector<8x256xf32> to vector<8x128xf32>
    %c4_56 = arith.constant 4 : index
    %c0_57 = arith.constant 0 : index
    %c0_58 = arith.constant 0 : index
    %200 = vector.load %arg7[%c4_56, %c0_57, %c0_58] : memref<8x8x256xf32, #tpu.memory_space<vmem>>, vector<1x8x128xf32>
    %201 = vector.shape_cast %200 : vector<1x8x128xf32> to vector<8x128xf32>
    %202 = vector.shape_cast %199 : vector<8x128xf32> to vector<1x8x128xf32>
    tpu.vector_store %arg7[%c4_56, %c0_57, %c0_58], %202 {strides = array<i32>} : memref<8x8x256xf32, #tpu.memory_space<vmem>>, vector<1x8x128xf32>,
    %203 = vector.extract_strided_slice %198 {offsets = [0, 128], sizes = [8, 128], strides = [1, 1]} : vector<8x256xf32> to vector<8x128xf32>
    %c3_59 = arith.constant 3 : index
    %c0_60 = arith.constant 0 : index
    %c128_61 = arith.constant 128 : index
    %204 = vector.load %arg7[%c3_59, %c0_60, %c128_61] : memref<8x8x256xf32, #tpu.memory_space<vmem>>, vector<1x8x128xf32>
    %205 = vector.shape_cast %204 : vector<1x8x128xf32> to vector<8x128xf32>
    %206 = vector.shape_cast %203 : vector<8x128xf32> to vector<1x8x128xf32>
    tpu.vector_store %arg7[%c3_59, %c0_60, %c128_61], %206 {strides = array<i32>} : memref<8x8x256xf32, #tpu.memory_space<vmem>>, vector<1x8x128xf32>,
    %c40_62 = arith.constant 40 : index
    %c0_63 = arith.constant 0 : index
    %207 = vector.load %arg9[%c40_62, %c0_63] : memref<64x768xf32, #tpu.memory_space<vmem>>, vector<8x768xf32>
    %c16_64 = arith.constant 16 : index
    %c0_65 = arith.constant 0 : index
    %208 = vector.load %arg9[%c16_64, %c0_65] : memref<64x768xf32, #tpu.memory_space<vmem>>, vector<8x768xf32>
    %209 = arith.truncf %198 : vector<8x256xf32> to vector<8x256xbf16>
    %cst_66 = arith.constant dense<0.000000e+00> : vector<8x768xf32>
    %210 = tpu.matmul %209, %7, %cst_66 {dimension_numbers = #tpu.dot_dimension_numbers<[1], [0], [0], [1], [0, 0, 1, 1], [], []>} : vector<8x256xbf16>, vector<256x768xbf16>, vector<8x768xf32> -> vector<8x768xf32>
    %211 = vector.extract_strided_slice %207 {offsets = [0, 0], sizes = [8, 128], strides = [1, 1]} : vector<8x768xf32> to vector<8x128xf32>
    %212 = vector.extract_strided_slice %208 {offsets = [0, 128], sizes = [8, 128], strides = [1, 1]} : vector<8x768xf32> to vector<8x128xf32>
    %213 = vector.extract_strided_slice %207 {offsets = [0, 256], sizes = [8, 128], strides = [1, 1]} : vector<8x768xf32> to vector<8x128xf32>
    %214 = vector.extract_strided_slice %208 {offsets = [0, 384], sizes = [8, 128], strides = [1, 1]} : vector<8x768xf32> to vector<8x128xf32>
    %215 = tpu.concatenate %211, %212, %213, %214 in 1 : vector<8x128xf32>, vector<8x128xf32>, vector<8x128xf32>, vector<8x128xf32> -> vector<8x512xf32>
    %216 = vector.extract_strided_slice %210 {offsets = [0, 0], sizes = [8, 512], strides = [1, 1]} : vector<8x768xf32> to vector<8x512xf32>
    %217 = arith.addf %215, %216 : vector<8x512xf32>
    %218 = arith.negf %217 : vector<8x512xf32>
    %219 = math.exp %218 : vector<8x512xf32>
    %cst_67 = arith.constant 1.000000e+00 : f32
    %220 = vector.broadcast %cst_67 : f32 to vector<8x512xf32>
    %221 = arith.addf %220, %219 : vector<8x512xf32>
    %222 = arith.divf %220, %221 : vector<8x512xf32>
    %223 = vector.extract_strided_slice %222 {offsets = [0, 0], sizes = [8, 256], strides = [1, 1]} : vector<8x512xf32> to vector<8x256xf32>
    %224 = vector.extract_strided_slice %222 {offsets = [0, 256], sizes = [8, 256], strides = [1, 1]} : vector<8x512xf32> to vector<8x256xf32>
    %225 = vector.extract_strided_slice %207 {offsets = [0, 512], sizes = [8, 128], strides = [1, 1]} : vector<8x768xf32> to vector<8x128xf32>
    %226 = vector.extract_strided_slice %208 {offsets = [0, 640], sizes = [8, 128], strides = [1, 1]} : vector<8x768xf32> to vector<8x128xf32>
    %227 = tpu.concatenate %225, %226 in 1 : vector<8x128xf32>, vector<8x128xf32> -> vector<8x256xf32>
    %228 = vector.extract_strided_slice %210 {offsets = [0, 512], sizes = [8, 256], strides = [1, 1]} : vector<8x768xf32> to vector<8x256xf32>
    %229 = arith.addf %228, %10 : vector<8x256xf32>
    %230 = arith.mulf %223, %229 : vector<8x256xf32>
    %231 = arith.addf %227, %230 : vector<8x256xf32>
    %232 = math.tanh %231 : vector<8x256xf32>
    %cst_68 = arith.constant 1.000000e+00 : f32
    %233 = vector.broadcast %cst_68 : f32 to vector<8x256xf32>
    %234 = arith.subf %233, %224 : vector<8x256xf32>
    %235 = arith.mulf %234, %232 : vector<8x256xf32>
    %236 = arith.mulf %224, %198 : vector<8x256xf32>
    %237 = arith.addf %235, %236 : vector<8x256xf32>
    %238 = vector.extract_strided_slice %237 {offsets = [0, 0], sizes = [8, 128], strides = [1, 1]} : vector<8x256xf32> to vector<8x128xf32>
    %c5_69 = arith.constant 5 : index
    %c0_70 = arith.constant 0 : index
    %c0_71 = arith.constant 0 : index
    %239 = vector.load %arg7[%c5_69, %c0_70, %c0_71] : memref<8x8x256xf32, #tpu.memory_space<vmem>>, vector<1x8x128xf32>
    %240 = vector.shape_cast %239 : vector<1x8x128xf32> to vector<8x128xf32>
    %241 = vector.shape_cast %238 : vector<8x128xf32> to vector<1x8x128xf32>
    tpu.vector_store %arg7[%c5_69, %c0_70, %c0_71], %241 {strides = array<i32>} : memref<8x8x256xf32, #tpu.memory_space<vmem>>, vector<1x8x128xf32>,
    %242 = vector.extract_strided_slice %237 {offsets = [0, 128], sizes = [8, 128], strides = [1, 1]} : vector<8x256xf32> to vector<8x128xf32>
    %c2_72 = arith.constant 2 : index
    %c0_73 = arith.constant 0 : index
    %c128_74 = arith.constant 128 : index
    %243 = vector.load %arg7[%c2_72, %c0_73, %c128_74] : memref<8x8x256xf32, #tpu.memory_space<vmem>>, vector<1x8x128xf32>
    %244 = vector.shape_cast %243 : vector<1x8x128xf32> to vector<8x128xf32>
    %245 = vector.shape_cast %242 : vector<8x128xf32> to vector<1x8x128xf32>
    tpu.vector_store %arg7[%c2_72, %c0_73, %c128_74], %245 {strides = array<i32>} : memref<8x8x256xf32, #tpu.memory_space<vmem>>, vector<1x8x128xf32>,
    %c48_75 = arith.constant 48 : index
    %c0_76 = arith.constant 0 : index
    %246 = vector.load %arg9[%c48_75, %c0_76] : memref<64x768xf32, #tpu.memory_space<vmem>>, vector<8x768xf32>
    %c8_77 = arith.constant 8 : index
    %c0_78 = arith.constant 0 : index
    %247 = vector.load %arg9[%c8_77, %c0_78] : memref<64x768xf32, #tpu.memory_space<vmem>>, vector<8x768xf32>
    %248 = arith.truncf %237 : vector<8x256xf32> to vector<8x256xbf16>
    %cst_79 = arith.constant dense<0.000000e+00> : vector<8x768xf32>
    %249 = tpu.matmul %248, %7, %cst_79 {dimension_numbers = #tpu.dot_dimension_numbers<[1], [0], [0], [1], [0, 0, 1, 1], [], []>} : vector<8x256xbf16>, vector<256x768xbf16>, vector<8x768xf32> -> vector<8x768xf32>
    %250 = vector.extract_strided_slice %246 {offsets = [0, 0], sizes = [8, 128], strides = [1, 1]} : vector<8x768xf32> to vector<8x128xf32>
    %251 = vector.extract_strided_slice %247 {offsets = [0, 128], sizes = [8, 128], strides = [1, 1]} : vector<8x768xf32> to vector<8x128xf32>
    %252 = vector.extract_strided_slice %246 {offsets = [0, 256], sizes = [8, 128], strides = [1, 1]} : vector<8x768xf32> to vector<8x128xf32>
    %253 = vector.extract_strided_slice %247 {offsets = [0, 384], sizes = [8, 128], strides = [1, 1]} : vector<8x768xf32> to vector<8x128xf32>
    %254 = tpu.concatenate %250, %251, %252, %253 in 1 : vector<8x128xf32>, vector<8x128xf32>, vector<8x128xf32>, vector<8x128xf32> -> vector<8x512xf32>
    %255 = vector.extract_strided_slice %249 {offsets = [0, 0], sizes = [8, 512], strides = [1, 1]} : vector<8x768xf32> to vector<8x512xf32>
    %256 = arith.addf %254, %255 : vector<8x512xf32>
    %257 = arith.negf %256 : vector<8x512xf32>
    %258 = math.exp %257 : vector<8x512xf32>
    %cst_80 = arith.constant 1.000000e+00 : f32
    %259 = vector.broadcast %cst_80 : f32 to vector<8x512xf32>
    %260 = arith.addf %259, %258 : vector<8x512xf32>
    %261 = arith.divf %259, %260 : vector<8x512xf32>
    %262 = vector.extract_strided_slice %261 {offsets = [0, 0], sizes = [8, 256], strides = [1, 1]} : vector<8x512xf32> to vector<8x256xf32>
    %263 = vector.extract_strided_slice %261 {offsets = [0, 256], sizes = [8, 256], strides = [1, 1]} : vector<8x512xf32> to vector<8x256xf32>
    %264 = vector.extract_strided_slice %246 {offsets = [0, 512], sizes = [8, 128], strides = [1, 1]} : vector<8x768xf32> to vector<8x128xf32>
    %265 = vector.extract_strided_slice %247 {offsets = [0, 640], sizes = [8, 128], strides = [1, 1]} : vector<8x768xf32> to vector<8x128xf32>
    %266 = tpu.concatenate %264, %265 in 1 : vector<8x128xf32>, vector<8x128xf32> -> vector<8x256xf32>
    %267 = vector.extract_strided_slice %249 {offsets = [0, 512], sizes = [8, 256], strides = [1, 1]} : vector<8x768xf32> to vector<8x256xf32>
    %268 = arith.addf %267, %10 : vector<8x256xf32>
    %269 = arith.mulf %262, %268 : vector<8x256xf32>
    %270 = arith.addf %266, %269 : vector<8x256xf32>
    %271 = math.tanh %270 : vector<8x256xf32>
    %cst_81 = arith.constant 1.000000e+00 : f32
    %272 = vector.broadcast %cst_81 : f32 to vector<8x256xf32>
    %273 = arith.subf %272, %263 : vector<8x256xf32>
    %274 = arith.mulf %273, %271 : vector<8x256xf32>
    %275 = arith.mulf %263, %237 : vector<8x256xf32>
    %276 = arith.addf %274, %275 : vector<8x256xf32>
    %277 = vector.extract_strided_slice %276 {offsets = [0, 0], sizes = [8, 128], strides = [1, 1]} : vector<8x256xf32> to vector<8x128xf32>
    %c6_82 = arith.constant 6 : index
    %c0_83 = arith.constant 0 : index
    %c0_84 = arith.constant 0 : index
    %278 = vector.load %arg7[%c6_82, %c0_83, %c0_84] : memref<8x8x256xf32, #tpu.memory_space<vmem>>, vector<1x8x128xf32>
    %279 = vector.shape_cast %278 : vector<1x8x128xf32> to vector<8x128xf32>
    %280 = vector.shape_cast %277 : vector<8x128xf32> to vector<1x8x128xf32>
    tpu.vector_store %arg7[%c6_82, %c0_83, %c0_84], %280 {strides = array<i32>} : memref<8x8x256xf32, #tpu.memory_space<vmem>>, vector<1x8x128xf32>,
    %281 = vector.extract_strided_slice %276 {offsets = [0, 128], sizes = [8, 128], strides = [1, 1]} : vector<8x256xf32> to vector<8x128xf32>
    %c1_85 = arith.constant 1 : index
    %c0_86 = arith.constant 0 : index
    %c128_87 = arith.constant 128 : index
    %282 = vector.load %arg7[%c1_85, %c0_86, %c128_87] : memref<8x8x256xf32, #tpu.memory_space<vmem>>, vector<1x8x128xf32>
    %283 = vector.shape_cast %282 : vector<1x8x128xf32> to vector<8x128xf32>
    %284 = vector.shape_cast %281 : vector<8x128xf32> to vector<1x8x128xf32>
    tpu.vector_store %arg7[%c1_85, %c0_86, %c128_87], %284 {strides = array<i32>} : memref<8x8x256xf32, #tpu.memory_space<vmem>>, vector<1x8x128xf32>,
    %c56_88 = arith.constant 56 : index
    %c0_89 = arith.constant 0 : index
    %285 = vector.load %arg9[%c56_88, %c0_89] : memref<64x768xf32, #tpu.memory_space<vmem>>, vector<8x768xf32>
    %c0_90 = arith.constant 0 : index
    %c0_91 = arith.constant 0 : index
    %286 = vector.load %arg9[%c0_90, %c0_91] : memref<64x768xf32, #tpu.memory_space<vmem>>, vector<8x768xf32>
    %287 = arith.truncf %276 : vector<8x256xf32> to vector<8x256xbf16>
    %cst_92 = arith.constant dense<0.000000e+00> : vector<8x768xf32>
    %288 = tpu.matmul %287, %7, %cst_92 {dimension_numbers = #tpu.dot_dimension_numbers<[1], [0], [0], [1], [0, 0, 1, 1], [], []>} : vector<8x256xbf16>, vector<256x768xbf16>, vector<8x768xf32> -> vector<8x768xf32>
    %289 = vector.extract_strided_slice %285 {offsets = [0, 0], sizes = [8, 128], strides = [1, 1]} : vector<8x768xf32> to vector<8x128xf32>
    %290 = vector.extract_strided_slice %286 {offsets = [0, 128], sizes = [8, 128], strides = [1, 1]} : vector<8x768xf32> to vector<8x128xf32>
    %291 = vector.extract_strided_slice %285 {offsets = [0, 256], sizes = [8, 128], strides = [1, 1]} : vector<8x768xf32> to vector<8x128xf32>
    %292 = vector.extract_strided_slice %286 {offsets = [0, 384], sizes = [8, 128], strides = [1, 1]} : vector<8x768xf32> to vector<8x128xf32>
    %293 = tpu.concatenate %289, %290, %291, %292 in 1 : vector<8x128xf32>, vector<8x128xf32>, vector<8x128xf32>, vector<8x128xf32> -> vector<8x512xf32>
    %294 = vector.extract_strided_slice %288 {offsets = [0, 0], sizes = [8, 512], strides = [1, 1]} : vector<8x768xf32> to vector<8x512xf32>
    %295 = arith.addf %293, %294 : vector<8x512xf32>
    %296 = arith.negf %295 : vector<8x512xf32>
    %297 = math.exp %296 : vector<8x512xf32>
    %cst_93 = arith.constant 1.000000e+00 : f32
    %298 = vector.broadcast %cst_93 : f32 to vector<8x512xf32>
    %299 = arith.addf %298, %297 : vector<8x512xf32>
    %300 = arith.divf %298, %299 : vector<8x512xf32>
    %301 = vector.extract_strided_slice %300 {offsets = [0, 0], sizes = [8, 256], strides = [1, 1]} : vector<8x512xf32> to vector<8x256xf32>
    %302 = vector.extract_strided_slice %300 {offsets = [0, 256], sizes = [8, 256], strides = [1, 1]} : vector<8x512xf32> to vector<8x256xf32>
    %303 = vector.extract_strided_slice %285 {offsets = [0, 512], sizes = [8, 128], strides = [1, 1]} : vector<8x768xf32> to vector<8x128xf32>
    %304 = vector.extract_strided_slice %286 {offsets = [0, 640], sizes = [8, 128], strides = [1, 1]} : vector<8x768xf32> to vector<8x128xf32>
    %305 = tpu.concatenate %303, %304 in 1 : vector<8x128xf32>, vector<8x128xf32> -> vector<8x256xf32>
    %306 = vector.extract_strided_slice %288 {offsets = [0, 512], sizes = [8, 256], strides = [1, 1]} : vector<8x768xf32> to vector<8x256xf32>
    %307 = arith.addf %306, %10 : vector<8x256xf32>
    %308 = arith.mulf %301, %307 : vector<8x256xf32>
    %309 = arith.addf %305, %308 : vector<8x256xf32>
    %310 = math.tanh %309 : vector<8x256xf32>
    %cst_94 = arith.constant 1.000000e+00 : f32
    %311 = vector.broadcast %cst_94 : f32 to vector<8x256xf32>
    %312 = arith.subf %311, %302 : vector<8x256xf32>
    %313 = arith.mulf %312, %310 : vector<8x256xf32>
    %314 = arith.mulf %302, %276 : vector<8x256xf32>
    %315 = arith.addf %313, %314 : vector<8x256xf32>
    %316 = vector.extract_strided_slice %315 {offsets = [0, 0], sizes = [8, 128], strides = [1, 1]} : vector<8x256xf32> to vector<8x128xf32>
    %c7_95 = arith.constant 7 : index
    %c0_96 = arith.constant 0 : index
    %c0_97 = arith.constant 0 : index
    %317 = vector.load %arg7[%c7_95, %c0_96, %c0_97] : memref<8x8x256xf32, #tpu.memory_space<vmem>>, vector<1x8x128xf32>
    %318 = vector.shape_cast %317 : vector<1x8x128xf32> to vector<8x128xf32>
    %319 = vector.shape_cast %316 : vector<8x128xf32> to vector<1x8x128xf32>
    tpu.vector_store %arg7[%c7_95, %c0_96, %c0_97], %319 {strides = array<i32>} : memref<8x8x256xf32, #tpu.memory_space<vmem>>, vector<1x8x128xf32>,
    %320 = vector.extract_strided_slice %315 {offsets = [0, 128], sizes = [8, 128], strides = [1, 1]} : vector<8x256xf32> to vector<8x128xf32>
    %c0_98 = arith.constant 0 : index
    %c0_99 = arith.constant 0 : index
    %c128_100 = arith.constant 128 : index
    %321 = vector.load %arg7[%c0_98, %c0_99, %c128_100] : memref<8x8x256xf32, #tpu.memory_space<vmem>>, vector<1x8x128xf32>
    %322 = vector.shape_cast %321 : vector<1x8x128xf32> to vector<8x128xf32>
    %323 = vector.shape_cast %320 : vector<8x128xf32> to vector<1x8x128xf32>
    tpu.vector_store %arg7[%c0_98, %c0_99, %c128_100], %323 {strides = array<i32>} : memref<8x8x256xf32, #tpu.memory_space<vmem>>, vector<1x8x128xf32>,
    %324 = arith.truncf %315 : vector<8x256xf32> to vector<8x256xbf16>
    %c0_101 = arith.constant 0 : index
    %c0_102 = arith.constant 0 : index
    %325 = vector.load %arg5[%c0_101, %c0_102] : memref<256x128xbf16, #tpu.memory_space<vmem>>, vector<256x128xbf16>
    %cst_103 = arith.constant dense<0.000000e+00> : vector<8x128xf32>
    %326 = tpu.matmul %324, %325, %cst_103 {dimension_numbers = #tpu.dot_dimension_numbers<[1], [0], [0], [1], [0, 0, 1, 1], [], []>} : vector<8x256xbf16>, vector<256x128xbf16>, vector<8x128xf32> -> vector<8x128xf32>
    %c0_104 = arith.constant 0 : index
    %c0_105 = arith.constant 0 : index
    %327 = vector.load %arg6[%c0_104, %c0_105] : memref<1x128xf32, #tpu.memory_space<vmem>>, vector<1x128xf32>
    %328 = vector.broadcast %327 : vector<1x128xf32> to vector<8x128xf32>
    %329 = arith.addf %326, %328 : vector<8x128xf32>
    %330 = math.tanh %329 : vector<8x128xf32>
    %c0_106 = arith.constant 0 : index
    %c0_107 = arith.constant 0 : index
    %331 = vector.load %arg8[%c0_106, %c0_107] : memref<8x128xf32, #tpu.memory_space<vmem>>, vector<8x128xf32>
    tpu.vector_store %arg8[%c0_106, %c0_107], %330 {strides = array<i32>} : memref<8x128xf32, #tpu.memory_space<vmem>>, vector<8x128xf32>,
    return
  }
}

</mosaic_0001>

<llo_original>
// kernel: tpu_custom_call.1
$region0: #{tpu_custom_call.1}
  #allocation0 [shape = 'u32[]', space=smem, size = 0x4, offset = 0x4, fixed_abs, tag = 'smem constant byte address 0x4 - core index']
  #allocation1 [shape = 'u32[72,128]{1,0:T(1,128)}', space=vmem, size = 0x9000, scoped, tag = 'internal scratch']
  #allocation2 [shape = 'f32[64,768]{1,0:T(8,128)}', space=vmem, size = 0x30000, scoped, tag = 'scratch operand']
  %s0 = inlined_call_operand.hbm [shape: bf16[64,128], index: 0, kind: input, shape index: {}]
  %s1 = inlined_call_operand.hbm [shape: bf16[128,768], index: 1, kind: input, shape index: {}]
  %s2 = inlined_call_operand.hbm [shape: f32[1,768], index: 2, kind: input, shape index: {}]
  %s3 = inlined_call_operand.hbm [shape: bf16[256,768], index: 3, kind: input, shape index: {}]
  %s4 = inlined_call_operand.vmem [shape: f32[1,256], index: 4, kind: input, shape index: {}]
  %s5 = inlined_call_operand.hbm [shape: bf16[256,128], index: 5, kind: input, shape index: {}]
  %s6 = inlined_call_operand.vmem [shape: f32[1,128], index: 6, kind: input, shape index: {}]
  %s7 = inlined_call_operand.hbm [shape: f32[8,8,256], index: 7, kind: output, shape index: {0}]
  %s8 = inlined_call_operand.hbm [shape: f32[8,128], index: 8, kind: output, shape index: {1}]
  %9 = xla_tuple %s7, %s8
  %s10 = sld [smem:[#allocation0]]
  $region66: #{tpu_custom_call.1} parent=0
    _
  %s12 = ssub.s32 1, %s10
  %s13 = scalar_select 0, %s12, %s10
  $region1: #{tpu_custom_call.1} parent=0
    #allocation3 [shape = 'u8[16384]{0}', space=vmem, size = 0x4000, scoped, tag = 'input window, operand 0, single buffered']
    #allocation4 [shape = 's32[1]{0}', space=sflag, size = 0x4, scoped, tag = 'scoped memory for tpu_custom_call.1']
    #allocation5 [shape = 's32[1]{0}', space=sflag, size = 0x4, scoped, tag = 'scoped memory for tpu_custom_call.1']
    #allocation6 [shape = 'u8[196608]{0}', space=vmem, size = 0x30000, scoped, tag = 'input window, operand 1, single buffered']
    #allocation7 [shape = 's32[1]{0}', space=sflag, size = 0x4, scoped, tag = 'scoped memory for tpu_custom_call.1']
    #allocation8 [shape = 'u8[3072]{0}', space=vmem, size = 0xc00, scoped, tag = 'input window, operand 2, single buffered']
    #allocation9 [shape = 'u8[393216]{0}', space=vmem, size = 0x60000, scoped, tag = 'input window, operand 3, single buffered']
    #allocation10 [shape = 's32[1]{0}', space=sflag, size = 0x4, scoped, tag = 'scoped memory for tpu_custom_call.1']
    #allocation11 [shape = 'u8[65536]{0}', space=vmem, size = 0x10000, scoped, tag = 'input window, operand 5, single buffered']
    #allocation12 [shape = 'u8[65536]{0}', space=vmem, size = 0x10000, scoped, tag = 'output window, operand 0, single buffered']
    #allocation13 [shape = 'u8[4096]{0}', space=vmem, size = 0x1000, scoped, tag = 'output window, operand 1, single buffered']
    #allocation14 [shape = 's32[1]{0}', space=sflag, size = 0x4, scoped, tag = 'scoped memory for tpu_custom_call.1']
    %14 = vsyncpa [#allocation4], 0
    %15 = vsyncpa [#allocation7], 0
    %16 = vsyncpa [#allocation10], 0
    %17 = vsyncpa [#allocation5], 0
    %18 = vsyncpa [#allocation14], 0
    // Predicated region
    $region2: #{tpu_custom_call.1} parent=1 // pred_check
      _
    $region3: #{tpu_custom_call.1} parent=1 // pred_check_branch
      %20 = sbr.rel (0) target = $region5
    $region4: #{tpu_custom_call.1} parent=1 // pred_region
      %22 = vsyncadd [#allocation4], 0
      %s23 = sshll.u32 %s0, 4
      %s24 = int_to_ptr.hbm [resolvable:$true] %s23
      %s25 = sshll.u32 [#allocation3], 4
      %s26 = int_to_ptr.vmem [resolvable:$true] %s25
      %31 = dma.hbm_to_vmem [thread:$0]  %s24, 512, %s26, [#allocation4], 64, 64, 4
    $region5: #{tpu_custom_call.1} parent=1 // pred_fallthru
      _
    // Predicated region
    $region6: #{tpu_custom_call.1} parent=1 // pred_check
      _
    $region7: #{tpu_custom_call.1} parent=1 // pred_check_branch
      %33 = sbr.rel (0) target = $region9
    $region8: #{tpu_custom_call.1} parent=1 // pred_region
      %35 = vsyncadd [#allocation7], 0
      %s36 = sshll.u32 %s1, 4
      %s37 = int_to_ptr.hbm [resolvable:$true] %s36
      %s38 = sshll.u32 [#allocation6], 4
      %s39 = int_to_ptr.vmem [resolvable:$true] %s38
      %44 = dma.hbm_to_vmem [thread:$0]  %s37, 6144, %s39, [#allocation7], 384, 384, 24
    $region9: #{tpu_custom_call.1} parent=1 // pred_fallthru
      _
    // Predicated region
    $region10: #{tpu_custom_call.1} parent=1 // pred_check
      _
    $region11: #{tpu_custom_call.1} parent=1 // pred_check_branch
      %46 = sbr.rel (0) target = $region13
    $region12: #{tpu_custom_call.1} parent=1 // pred_region
      %48 = vsyncadd [#allocation7], 0
      %s50 = sshll.u32 %s2, 4
      %s51 = int_to_ptr.hbm [resolvable:$true] %s50
      %s52 = sshll.u32 [#allocation8], 4
      %s53 = int_to_ptr.vmem [resolvable:$true] %s52
      %55 = dma.hbm_to_vmem [thread:$0]  %s51, 96, %s53, [#allocation7]
    $region13: #{tpu_custom_call.1} parent=1 // pred_fallthru
      _
    // Predicated region
    $region14: #{tpu_custom_call.1} parent=1 // pred_check
      _
    $region15: #{tpu_custom_call.1} parent=1 // pred_check_branch
      %57 = sbr.rel (0) target = $region17
    $region16: #{tpu_custom_call.1} parent=1 // pred_region
      %59 = vsyncadd [#allocation10], 0
      %s60 = sshll.u32 %s3, 4
      %s61 = int_to_ptr.hbm [resolvable:$true] %s60
      %s62 = sshll.u32 [#allocation9], 4
      %s63 = int_to_ptr.vmem [resolvable:$true] %s62
      %68 = dma.hbm_to_vmem [thread:$0]  %s61, 12288, %s63, [#allocation10], 384, 384, 24
    $region17: #{tpu_custom_call.1} parent=1 // pred_fallthru
      _
    // Predicated region
    $region18: #{tpu_custom_call.1} parent=1 // pred_check
      _
    $region19: #{tpu_custom_call.1} parent=1 // pred_check_branch
      %70 = sbr.rel (0) target = $region21
    $region20: #{tpu_custom_call.1} parent=1 // pred_region
      _
    $region21: #{tpu_custom_call.1} parent=1 // pred_fallthru
      _
    // Predicated region
    $region22: #{tpu_custom_call.1} parent=1 // pred_check
      _
    $region23: #{tpu_custom_call.1} parent=1 // pred_check_branch
      %72 = sbr.rel (0) target = $region25
    $region24: #{tpu_custom_call.1} parent=1 // pred_region
      %74 = vsyncadd [#allocation10], 0
      %s75 = sshll.u32 %s5, 4
      %s76 = int_to_ptr.hbm [resolvable:$true] %s75
      %s77 = sshll.u32 [#allocation11], 4
      %s78 = int_to_ptr.vmem [resolvable:$true] %s77
      %83 = dma.hbm_to_vmem [thread:$0]  %s76, 2048, %s78, [#allocation10], 64, 64, 4
    $region25: #{tpu_custom_call.1} parent=1 // pred_fallthru
      _
    // Predicated region
    $region26: #{tpu_custom_call.1} parent=1 // pred_check
      _
    $region27: #{tpu_custom_call.1} parent=1 // pred_check_branch
      %85 = sbr.rel (0) target = $region29
    $region28: #{tpu_custom_call.1} parent=1 // pred_region
      _
    $region29: #{tpu_custom_call.1} parent=1 // pred_fallthru
      _
    // Predicated region
    $region30: #{tpu_custom_call.1} parent=1 // pred_check
      _
    $region31: #{tpu_custom_call.1} parent=1 // pred_check_branch
      %87 = sbr.rel (0) target = $region33
    $region32: #{tpu_custom_call.1} parent=1 // pred_region
      %89 = dma.done [#allocation4], 512
    $region33: #{tpu_custom_call.1} parent=1 // pred_fallthru
      _
    // Predicated region
    $region34: #{tpu_custom_call.1} parent=1 // pred_check
      _
    $region35: #{tpu_custom_call.1} parent=1 // pred_check_branch
      %91 = sbr.rel (0) target = $region37
    $region36: #{tpu_custom_call.1} parent=1 // pred_region
      %93 = dma.done [#allocation7], 6144
    $region37: #{tpu_custom_call.1} parent=1 // pred_fallthru
      _
    // Predicated region
    $region38: #{tpu_custom_call.1} parent=1 // pred_check
      _
    $region39: #{tpu_custom_call.1} parent=1 // pred_check_branch
      %95 = sbr.rel (0) target = $region41
    $region40: #{tpu_custom_call.1} parent=1 // pred_region
      %97 = dma.done [#allocation7], 96
    $region41: #{tpu_custom_call.1} parent=1 // pred_fallthru
      _
    // Predicated region
    $region42: #{tpu_custom_call.1} parent=1 // pred_check
      _
    $region43: #{tpu_custom_call.1} parent=1 // pred_check_branch
      %99 = sbr.rel (0) target = $region45
    $region44: #{tpu_custom_call.1} parent=1 // pred_region
      %101 = dma.done [#allocation10], 12288
    $region45: #{tpu_custom_call.1} parent=1 // pred_fallthru
      _
    // Predicated region
    $region46: #{tpu_custom_call.1} parent=1 // pred_check
      _
    $region47: #{tpu_custom_call.1} parent=1 // pred_check_branch
      %103 = sbr.rel (0) target = $region49
    $region48: #{tpu_custom_call.1} parent=1 // pred_region
      %105 = dma.done [#allocation10], 2048
    $region49: #{tpu_custom_call.1} parent=1 // pred_fallthru
      _
    %v107 = vld [vmem:[#allocation3] sm:$0xf]
    %v108 = vld [vmem:[#allocation3 + $0x4] sm:$0xf]
    %v109 = vld [vmem:[#allocation3 + $0x8] sm:$0xf]
    %v110 = vld [vmem:[#allocation3 + $0xc] sm:$0xf]
    %v111 = vld [vmem:[#allocation3 + $0x10] sm:$0xf]
    %v112 = vld [vmem:[#allocation3 + $0x14] sm:$0xf]
    %v113 = vld [vmem:[#allocation3 + $0x18] sm:$0xf]
    %v114 = vld [vmem:[#allocation3 + $0x1c] sm:$0xf]
    %v115 = vld [vmem:[#allocation6] sm:$0xff]
    %v116 = vld [vmem:[#allocation6 + $0x8] sm:$0xff]
    %v117 = vld [vmem:[#allocation6 + $0x10] sm:$0xff]
    %v118 = vld [vmem:[#allocation6 + $0x18] sm:$0xff]
    %v119 = vld [vmem:[#allocation6 + $0x20] sm:$0xff]
    %v120 = vld [vmem:[#allocation6 + $0x28] sm:$0xff]
    %v121 = vld [vmem:[#allocation6 + $0x30] sm:$0xff]
    %v122 = vld [vmem:[#allocation6 + $0x38] sm:$0xff]
    %v123 = vld [vmem:[#allocation6 + $0x40] sm:$0xff]
    %v124 = vld [vmem:[#allocation6 + $0x48] sm:$0xff]
    %v125 = vld [vmem:[#allocation6 + $0x50] sm:$0xff]
    %v126 = vld [vmem:[#allocation6 + $0x58] sm:$0xff]
    %v127 = vld [vmem:[#allocation6 + $0x60] sm:$0xff]
    %v128 = vld [vmem:[#allocation6 + $0x68] sm:$0xff]
    %v129 = vld [vmem:[#allocation6 + $0x70] sm:$0xff]
    %v130 = vld [vmem:[#allocation6 + $0x78] sm:$0xff]
    %v131 = vld [vmem:[#allocation6 + $0x80] sm:$0xff]
    %v132 = vld [vmem:[#allocation6 + $0x88] sm:$0xff]
    %v133 = vld [vmem:[#allocation6 + $0x90] sm:$0xff]
    %v134 = vld [vmem:[#allocation6 + $0x98] sm:$0xff]
    %v135 = vld [vmem:[#allocation6 + $0xa0] sm:$0xff]
    %v136 = vld [vmem:[#allocation6 + $0xa8] sm:$0xff]
    %v137 = vld [vmem:[#allocation6 + $0xb0] sm:$0xff]
    %v138 = vld [vmem:[#allocation6 + $0xb8] sm:$0xff]
    %v139 = vld [vmem:[#allocation6 + $0xc0] sm:$0xff]
    %v140 = vld [vmem:[#allocation6 + $0xc8] sm:$0xff]
    %v141 = vld [vmem:[#allocation6 + $0xd0] sm:$0xff]
    %v142 = vld [vmem:[#allocation6 + $0xd8] sm:$0xff]
    %v143 = vld [vmem:[#allocation6 + $0xe0] sm:$0xff]
    %v144 = vld [vmem:[#allocation6 + $0xe8] sm:$0xff]
    %v145 = vld [vmem:[#allocation6 + $0xf0] sm:$0xff]
    %v146 = vld [vmem:[#allocation6 + $0xf8] sm:$0xff]
    %v147 = vld [vmem:[#allocation6 + $0x100] sm:$0xff]
    %v148 = vld [vmem:[#allocation6 + $0x108] sm:$0xff]
    %v149 = vld [vmem:[#allocation6 + $0x110] sm:$0xff]
    %v150 = vld [vmem:[#allocation6 + $0x118] sm:$0xff]
    %v151 = vld [vmem:[#allocation6 + $0x120] sm:$0xff]
    %v152 = vld [vmem:[#allocation6 + $0x128] sm:$0xff]
    %v153 = vld [vmem:[#allocation6 + $0x130] sm:$0xff]
    %v154 = vld [vmem:[#allocation6 + $0x138] sm:$0xff]
    %v155 = vld [vmem:[#allocation6 + $0x140] sm:$0xff]
    %v156 = vld [vmem:[#allocation6 + $0x148] sm:$0xff]
    %v157 = vld [vmem:[#allocation6 + $0x150] sm:$0xff]
    %v158 = vld [vmem:[#allocation6 + $0x158] sm:$0xff]
    %v159 = vld [vmem:[#allocation6 + $0x160] sm:$0xff]
    %v160 = vld [vmem:[#allocation6 + $0x168] sm:$0xff]
    %v161 = vld [vmem:[#allocation6 + $0x170] sm:$0xff]
    %v162 = vld [vmem:[#allocation6 + $0x178] sm:$0xff]
    %v163 = vld [vmem:[#allocation8] sm:$0x3f]
    %v165 = vperm.slane %v163, 0
    %v166 = vperm.slane %v163, 1
    %v167 = vperm.slane %v163, 2
    %v168 = vperm.slane %v163, 3
    %v169 = vperm.slane %v163, 4
    %v170 = vperm.slane %v163, 5
    %v185 = vunpack.c.l.b16 %v107
    %v186 = vunpack.c.l.b16 %v108
    %v187 = vunpack.c.l.b16 %v109
    %v188 = vunpack.c.l.b16 %v110
    %v189 = vunpack.c.l.b16 %v111
    %v190 = vunpack.c.l.b16 %v112
    %v191 = vunpack.c.l.b16 %v113
    %v192 = vunpack.c.l.b16 %v114
    %v193 = vpack.c.b16 %v186, %v185
    %v194 = vpack.c.b16 %v188, %v187
    %v195 = vpack.c.b16 %v190, %v189
    %v196 = vpack.c.b16 %v192, %v191
    %v249 = vunpack.c.l.b16 %v115
    %v250 = vunpack.c.h.b16 %v115
    %v251 = vunpack.c.l.b16 %v116
    %v252 = vunpack.c.h.b16 %v116
    %v253 = vunpack.c.l.b16 %v117
    %v254 = vunpack.c.h.b16 %v117
    %v255 = vunpack.c.l.b16 %v118
    %v256 = vunpack.c.h.b16 %v118
    %v257 = vunpack.c.l.b16 %v119
    %v258 = vunpack.c.h.b16 %v119
    %v259 = vunpack.c.l.b16 %v120
    %v260 = vunpack.c.h.b16 %v120
    %v261 = vunpack.c.l.b16 %v121
    %v262 = vunpack.c.h.b16 %v121
    %v263 = vunpack.c.l.b16 %v122
    %v264 = vunpack.c.h.b16 %v122
    %v265 = vunpack.c.l.b16 %v123
    %v266 = vunpack.c.h.b16 %v123
    %v267 = vunpack.c.l.b16 %v124
    %v268 = vunpack.c.h.b16 %v124
    %v269 = vunpack.c.l.b16 %v125
    %v270 = vunpack.c.h.b16 %v125
    %v271 = vunpack.c.l.b16 %v126
    %v272 = vunpack.c.h.b16 %v126
    %v273 = vunpack.c.l.b16 %v127
    %v274 = vunpack.c.h.b16 %v127
    %v275 = vunpack.c.l.b16 %v128
    %v276 = vunpack.c.h.b16 %v128
    %v277 = vunpack.c.l.b16 %v129
    %v278 = vunpack.c.h.b16 %v129
    %v279 = vunpack.c.l.b16 %v130
    %v280 = vunpack.c.h.b16 %v130
    %v281 = vunpack.c.l.b16 %v131
    %v282 = vunpack.c.h.b16 %v131
    %v283 = vunpack.c.l.b16 %v132
    %v284 = vunpack.c.h.b16 %v132
    %v285 = vunpack.c.l.b16 %v133
    %v286 = vunpack.c.h.b16 %v133
    %v287 = vunpack.c.l.b16 %v134
    %v288 = vunpack.c.h.b16 %v134
    %v289 = vunpack.c.l.b16 %v135
    %v290 = vunpack.c.h.b16 %v135
    %v291 = vunpack.c.l.b16 %v136
    %v292 = vunpack.c.h.b16 %v136
    %v293 = vunpack.c.l.b16 %v137
    %v294 = vunpack.c.h.b16 %v137
    %v295 = vunpack.c.l.b16 %v138
    %v296 = vunpack.c.h.b16 %v138
    %v297 = vunpack.c.l.b16 %v139
    %v298 = vunpack.c.h.b16 %v139
    %v299 = vunpack.c.l.b16 %v140
    %v300 = vunpack.c.h.b16 %v140
    %v301 = vunpack.c.l.b16 %v141
    %v302 = vunpack.c.h.b16 %v141
    %v303 = vunpack.c.l.b16 %v142
    %v304 = vunpack.c.h.b16 %v142
    %v305 = vunpack.c.l.b16 %v143
    %v306 = vunpack.c.h.b16 %v143
    %v307 = vunpack.c.l.b16 %v144
    %v308 = vunpack.c.h.b16 %v144
    %v309 = vunpack.c.l.b16 %v145
    %v310 = vunpack.c.h.b16 %v145
    %v311 = vunpack.c.l.b16 %v146
    %v312 = vunpack.c.h.b16 %v146
    %v313 = vunpack.c.l.b16 %v147
    %v314 = vunpack.c.h.b16 %v147
    %v315 = vunpack.c.l.b16 %v148
    %v316 = vunpack.c.h.b16 %v148
    %v317 = vunpack.c.l.b16 %v149
    %v318 = vunpack.c.h.b16 %v149
    %v319 = vunpack.c.l.b16 %v150
    %v320 = vunpack.c.h.b16 %v150
    %v321 = vunpack.c.l.b16 %v151
    %v322 = vunpack.c.h.b16 %v151
    %v323 = vunpack.c.l.b16 %v152
    %v324 = vunpack.c.h.b16 %v152
    %v325 = vunpack.c.l.b16 %v153
    %v326 = vunpack.c.h.b16 %v153
    %v327 = vunpack.c.l.b16 %v154
    %v328 = vunpack.c.h.b16 %v154
    %v329 = vunpack.c.l.b16 %v155
    %v330 = vunpack.c.h.b16 %v155
    %v331 = vunpack.c.l.b16 %v156
    %v332 = vunpack.c.h.b16 %v156
    %v333 = vunpack.c.l.b16 %v157
    %v334 = vunpack.c.h.b16 %v157
    %v335 = vunpack.c.l.b16 %v158
    %v336 = vunpack.c.h.b16 %v158
    %v337 = vunpack.c.l.b16 %v159
    %v338 = vunpack.c.h.b16 %v159
    %v339 = vunpack.c.l.b16 %v160
    %v340 = vunpack.c.h.b16 %v160
    %v341 = vunpack.c.l.b16 %v161
    %v342 = vunpack.c.h.b16 %v161
    %v343 = vunpack.c.l.b16 %v162
    %v344 = vunpack.c.h.b16 %v162
    %v345 = vpack.c.b16 %v255, %v249
    %v346 = vpack.c.b16 %v256, %v250
    %v347 = vpack.c.b16 %v257, %v251
    %v348 = vpack.c.b16 %v258, %v252
    %v349 = vpack.c.b16 %v259, %v253
    %v350 = vpack.c.b16 %v260, %v254
    %v351 = vpack.c.b16 %v267, %v261
    %v352 = vpack.c.b16 %v268, %v262
    %v353 = vpack.c.b16 %v269, %v263
    %v354 = vpack.c.b16 %v270, %v264
    %v355 = vpack.c.b16 %v271, %v265
    %v356 = vpack.c.b16 %v272, %v266
    %v357 = vpack.c.b16 %v279, %v273
    %v358 = vpack.c.b16 %v280, %v274
    %v359 = vpack.c.b16 %v281, %v275
    %v360 = vpack.c.b16 %v282, %v276
    %v361 = vpack.c.b16 %v283, %v277
    %v362 = vpack.c.b16 %v284, %v278
    %v363 = vpack.c.b16 %v291, %v285
    %v364 = vpack.c.b16 %v292, %v286
    %v365 = vpack.c.b16 %v293, %v287
    %v366 = vpack.c.b16 %v294, %v288
    %v367 = vpack.c.b16 %v295, %v289
    %v368 = vpack.c.b16 %v296, %v290
    %v369 = vpack.c.b16 %v303, %v297
    %v370 = vpack.c.b16 %v304, %v298
    %v371 = vpack.c.b16 %v305, %v299
    %v372 = vpack.c.b16 %v306, %v300
    %v373 = vpack.c.b16 %v307, %v301
    %v374 = vpack.c.b16 %v308, %v302
    %v375 = vpack.c.b16 %v315, %v309
    %v376 = vpack.c.b16 %v316, %v310
    %v377 = vpack.c.b16 %v317, %v311
    %v378 = vpack.c.b16 %v318, %v312
    %v379 = vpack.c.b16 %v319, %v313
    %v380 = vpack.c.b16 %v320, %v314
    %v381 = vpack.c.b16 %v327, %v321
    %v382 = vpack.c.b16 %v328, %v322
    %v383 = vpack.c.b16 %v329, %v323
    %v384 = vpack.c.b16 %v330, %v324
    %v385 = vpack.c.b16 %v331, %v325
    %v386 = vpack.c.b16 %v332, %v326
    %v387 = vpack.c.b16 %v339, %v333
    %v388 = vpack.c.b16 %v340, %v334
    %v389 = vpack.c.b16 %v341, %v335
    %v390 = vpack.c.b16 %v342, %v336
    %v391 = vpack.c.b16 %v343, %v337
    %v392 = vpack.c.b16 %v344, %v338
    %441 = vmatpush.bf16.msra.mxu0 %v387
    %442 = vmatpush.bf16.msra.mxu0 %v381
    %443 = vmatpush.bf16.msra.mxu0 %v375
    %444 = vmatpush.bf16.msra.mxu0 %v369
    %445 = vmatpush.bf16.msra.mxu0 %v363
    %446 = vmatpush.bf16.msra.mxu0 %v357
    %447 = vmatpush.bf16.msra.mxu0 %v351
    %448 = vmatpush.bf16.msra.mxu0 %v345
    %449 = vmatmul.bf16.gmra.mxu0 %v193
    %v450 = vpop.f32.mrf.mxu0
    %v451 = vadd.f32 %v165, %v450
    %v452 = vpop.f32.mrf.mxu0
    %v453 = vadd.f32 %v165, %v452
    %454 = vmatmul.bf16.gmra.mxu0 %v194
    %v455 = vpop.f32.mrf.mxu0
    %v456 = vadd.f32 %v165, %v455
    %v457 = vpop.f32.mrf.mxu0
    %v458 = vadd.f32 %v165, %v457
    %459 = vmatmul.bf16.gmra.mxu0 %v195
    %v460 = vpop.f32.mrf.mxu0
    %v461 = vadd.f32 %v165, %v460
    %v462 = vpop.f32.mrf.mxu0
    %v463 = vadd.f32 %v165, %v462
    %464 = vmatmul.bf16.gmra.mxu0 %v196
    %v465 = vpop.f32.mrf.mxu0
    %v466 = vadd.f32 %v165, %v465
    %v467 = vpop.f32.mrf.mxu0
    %v468 = vadd.f32 %v165, %v467
    %469 = vdwg.mxu0
    %470 = vmatpush.bf16.msra.mxu0 %v388
    %471 = vmatpush.bf16.msra.mxu0 %v382
    %472 = vmatpush.bf16.msra.mxu0 %v376
    %473 = vmatpush.bf16.msra.mxu0 %v370
    %474 = vmatpush.bf16.msra.mxu0 %v364
    %475 = vmatpush.bf16.msra.mxu0 %v358
    %476 = vmatpush.bf16.msra.mxu0 %v352
    %477 = vmatpush.bf16.msra.mxu0 %v346
    %478 = vmatmul.bf16.gmra.mxu0 %v193
    %v479 = vpop.f32.mrf.mxu0
    %v480 = vadd.f32 %v166, %v479
    %v481 = vpop.f32.mrf.mxu0
    %v482 = vadd.f32 %v166, %v481
    %483 = vmatmul.bf16.gmra.mxu0 %v194
    %v484 = vpop.f32.mrf.mxu0
    %v485 = vadd.f32 %v166, %v484
    %v486 = vpop.f32.mrf.mxu0
    %v487 = vadd.f32 %v166, %v486
    %488 = vmatmul.bf16.gmra.mxu0 %v195
    %v489 = vpop.f32.mrf.mxu0
    %v490 = vadd.f32 %v166, %v489
    %v491 = vpop.f32.mrf.mxu0
    %v492 = vadd.f32 %v166, %v491
    %493 = vmatmul.bf16.gmra.mxu0 %v196
    %v494 = vpop.f32.mrf.mxu0
    %v495 = vadd.f32 %v166, %v494
    %v496 = vpop.f32.mrf.mxu0
    %v497 = vadd.f32 %v166, %v496
    %498 = vdwg.mxu0
    %499 = vmatpush.bf16.msra.mxu0 %v389
    %500 = vmatpush.bf16.msra.mxu0 %v383
    %501 = vmatpush.bf16.msra.mxu0 %v377
    %502 = vmatpush.bf16.msra.mxu0 %v371
    %503 = vmatpush.bf16.msra.mxu0 %v365
    %504 = vmatpush.bf16.msra.mxu0 %v359
    %505 = vmatpush.bf16.msra.mxu0 %v353
    %506 = vmatpush.bf16.msra.mxu0 %v347
    %507 = vmatmul.bf16.gmra.mxu0 %v193
    %v508 = vpop.f32.mrf.mxu0
    %v509 = vadd.f32 %v167, %v508
    %v510 = vpop.f32.mrf.mxu0
    %v511 = vadd.f32 %v167, %v510
    %512 = vmatmul.bf16.gmra.mxu0 %v194
    %v513 = vpop.f32.mrf.mxu0
    %v514 = vadd.f32 %v167, %v513
    %v515 = vpop.f32.mrf.mxu0
    %v516 = vadd.f32 %v167, %v515
    %517 = vmatmul.bf16.gmra.mxu0 %v195
    %v518 = vpop.f32.mrf.mxu0
    %v519 = vadd.f32 %v167, %v518
    %v520 = vpop.f32.mrf.mxu0
    %v521 = vadd.f32 %v167, %v520
    %522 = vmatmul.bf16.gmra.mxu0 %v196
    %v523 = vpop.f32.mrf.mxu0
    %v524 = vadd.f32 %v167, %v523
    %v525 = vpop.f32.mrf.mxu0
    %v526 = vadd.f32 %v167, %v525
    %527 = vdwg.mxu0
    %528 = vmatpush.bf16.msra.mxu0 %v390
    %529 = vmatpush.bf16.msra.mxu0 %v384
    %530 = vmatpush.bf16.msra.mxu0 %v378
    %531 = vmatpush.bf16.msra.mxu0 %v372
    %532 = vmatpush.bf16.msra.mxu0 %v366
    %533 = vmatpush.bf16.msra.mxu0 %v360
    %534 = vmatpush.bf16.msra.mxu0 %v354
    %535 = vmatpush.bf16.msra.mxu0 %v348
    %536 = vmatmul.bf16.gmra.mxu0 %v193
    %v537 = vpop.f32.mrf.mxu0
    %v538 = vadd.f32 %v168, %v537
    %v539 = vpop.f32.mrf.mxu0
    %v540 = vadd.f32 %v168, %v539
    %541 = vmatmul.bf16.gmra.mxu0 %v194
    %v542 = vpop.f32.mrf.mxu0
    %v543 = vadd.f32 %v168, %v542
    %v544 = vpop.f32.mrf.mxu0
    %v545 = vadd.f32 %v168, %v544
    %546 = vmatmul.bf16.gmra.mxu0 %v195
    %v547 = vpop.f32.mrf.mxu0
    %v548 = vadd.f32 %v168, %v547
    %v549 = vpop.f32.mrf.mxu0
    %v550 = vadd.f32 %v168, %v549
    %551 = vmatmul.bf16.gmra.mxu0 %v196
    %v552 = vpop.f32.mrf.mxu0
    %v553 = vadd.f32 %v168, %v552
    %v554 = vpop.f32.mrf.mxu0
    %v555 = vadd.f32 %v168, %v554
    %556 = vdwg.mxu0
    %557 = vmatpush.bf16.msra.mxu0 %v391
    %558 = vmatpush.bf16.msra.mxu0 %v385
    %559 = vmatpush.bf16.msra.mxu0 %v379
    %560 = vmatpush.bf16.msra.mxu0 %v373
    %561 = vmatpush.bf16.msra.mxu0 %v367
    %562 = vmatpush.bf16.msra.mxu0 %v361
    %563 = vmatpush.bf16.msra.mxu0 %v355
    %564 = vmatpush.bf16.msra.mxu0 %v349
    %565 = vmatmul.bf16.gmra.mxu0 %v193
    %v566 = vpop.f32.mrf.mxu0
    %v567 = vadd.f32 %v169, %v566
    %v568 = vpop.f32.mrf.mxu0
    %v569 = vadd.f32 %v169, %v568
    %570 = vmatmul.bf16.gmra.mxu0 %v194
    %v571 = vpop.f32.mrf.mxu0
    %v572 = vadd.f32 %v169, %v571
    %v573 = vpop.f32.mrf.mxu0
    %v574 = vadd.f32 %v169, %v573
    %575 = vmatmul.bf16.gmra.mxu0 %v195
    %v576 = vpop.f32.mrf.mxu0
    %v577 = vadd.f32 %v169, %v576
    %v578 = vpop.f32.mrf.mxu0
    %v579 = vadd.f32 %v169, %v578
    %580 = vmatmul.bf16.gmra.mxu0 %v196
    %v581 = vpop.f32.mrf.mxu0
    %v582 = vadd.f32 %v169, %v581
    %v583 = vpop.f32.mrf.mxu0
    %v584 = vadd.f32 %v169, %v583
    %585 = vdwg.mxu0
    %586 = vmatpush.bf16.msra.mxu0 %v392
    %587 = vmatpush.bf16.msra.mxu0 %v386
    %588 = vmatpush.bf16.msra.mxu0 %v380
    %589 = vmatpush.bf16.msra.mxu0 %v374
    %590 = vmatpush.bf16.msra.mxu0 %v368
    %591 = vmatpush.bf16.msra.mxu0 %v362
    %592 = vmatpush.bf16.msra.mxu0 %v356
    %593 = vmatpush.bf16.msra.mxu0 %v350
    %594 = vmatmul.bf16.gmra.mxu0 %v193
    %v595 = vpop.f32.mrf.mxu0
    %v596 = vadd.f32 %v170, %v595
    %v597 = vpop.f32.mrf.mxu0
    %v598 = vadd.f32 %v170, %v597
    %599 = vmatmul.bf16.gmra.mxu0 %v194
    %v600 = vpop.f32.mrf.mxu0
    %v601 = vadd.f32 %v170, %v600
    %v602 = vpop.f32.mrf.mxu0
    %v603 = vadd.f32 %v170, %v602
    %604 = vmatmul.bf16.gmra.mxu0 %v195
    %v605 = vpop.f32.mrf.mxu0
    %v606 = vadd.f32 %v170, %v605
    %v607 = vpop.f32.mrf.mxu0
    %v608 = vadd.f32 %v170, %v607
    %609 = vmatmul.bf16.gmra.mxu0 %v196
    %v610 = vpop.f32.mrf.mxu0
    %v611 = vadd.f32 %v170, %v610
    %v612 = vpop.f32.mrf.mxu0
    %v613 = vadd.f32 %v170, %v612
    %614 = vdwg.mxu0
    %615 = vst [vmem:[#allocation2] sm:$0xff] %v451
    %616 = vst [vmem:[#allocation2 + $0x8] sm:$0xff] %v480
    %617 = vst [vmem:[#allocation2 + $0x10] sm:$0xff] %v509
    %618 = vst [vmem:[#allocation2 + $0x18] sm:$0xff] %v538
    %619 = vst [vmem:[#allocation2 + $0x20] sm:$0xff] %v567
    %620 = vst [vmem:[#allocation2 + $0x28] sm:$0xff] %v596
    %621 = vst [vmem:[#allocation2 + $0x30] sm:$0xff] %v453
    %622 = vst [vmem:[#allocation2 + $0x38] sm:$0xff] %v482
    %623 = vst [vmem:[#allocation2 + $0x40] sm:$0xff] %v511
    %624 = vst [vmem:[#allocation2 + $0x48] sm:$0xff] %v540
    %625 = vst [vmem:[#allocation2 + $0x50] sm:$0xff] %v569
    %626 = vst [vmem:[#allocation2 + $0x58] sm:$0xff] %v598
    %627 = vst [vmem:[#allocation2 + $0x60] sm:$0xff] %v456
    %628 = vst [vmem:[#allocation2 + $0x68] sm:$0xff] %v485
    %629 = vst [vmem:[#allocation2 + $0x70] sm:$0xff] %v514
    %630 = vst [vmem:[#allocation2 + $0x78] sm:$0xff] %v543
    %631 = vst [vmem:[#allocation2 + $0x80] sm:$0xff] %v572
    %632 = vst [vmem:[#allocation2 + $0x88] sm:$0xff] %v601
    %633 = vst [vmem:[#allocation2 + $0x90] sm:$0xff] %v458
    %634 = vst [vmem:[#allocation2 + $0x98] sm:$0xff] %v487
    %635 = vst [vmem:[#allocation2 + $0xa0] sm:$0xff] %v516
    %636 = vst [vmem:[#allocation2 + $0xa8] sm:$0xff] %v545
    %637 = vst [vmem:[#allocation2 + $0xb0] sm:$0xff] %v574
    %638 = vst [vmem:[#allocation2 + $0xb8] sm:$0xff] %v603
    %639 = vst [vmem:[#allocation2 + $0xc0] sm:$0xff] %v461
    %640 = vst [vmem:[#allocation2 + $0xc8] sm:$0xff] %v490
    %641 = vst [vmem:[#allocation2 + $0xd0] sm:$0xff] %v519
    %642 = vst [vmem:[#allocation2 + $0xd8] sm:$0xff] %v548
    %643 = vst [vmem:[#allocation2 + $0xe0] sm:$0xff] %v577
    %644 = vst [vmem:[#allocation2 + $0xe8] sm:$0xff] %v606
    %645 = vst [vmem:[#allocation2 + $0xf0] sm:$0xff] %v463
    %646 = vst [vmem:[#allocation2 + $0xf8] sm:$0xff] %v492
    %647 = vst [vmem:[#allocation2 + $0x100] sm:$0xff] %v521
    %648 = vst [vmem:[#allocation2 + $0x108] sm:$0xff] %v550
    %649 = vst [vmem:[#allocation2 + $0x110] sm:$0xff] %v579
    %650 = vst [vmem:[#allocation2 + $0x118] sm:$0xff] %v608
    %651 = vst [vmem:[#allocation2 + $0x120] sm:$0xff] %v466
    %652 = vst [vmem:[#allocation2 + $0x128] sm:$0xff] %v495
    %653 = vst [vmem:[#allocation2 + $0x130] sm:$0xff] %v524
    %654 = vst [vmem:[#allocation2 + $0x138] sm:$0xff] %v553
    %655 = vst [vmem:[#allocation2 + $0x140] sm:$0xff] %v582
    %656 = vst [vmem:[#allocation2 + $0x148] sm:$0xff] %v611
    %657 = vst [vmem:[#allocation2 + $0x150] sm:$0xff] %v468
    %658 = vst [vmem:[#allocation2 + $0x158] sm:$0xff] %v497
    %659 = vst [vmem:[#allocation2 + $0x160] sm:$0xff] %v526
    %660 = vst [vmem:[#allocation2 + $0x168] sm:$0xff] %v555
    %661 = vst [vmem:[#allocation2 + $0x170] sm:$0xff] %v584
    %662 = vst [vmem:[#allocation2 + $0x178] sm:$0xff] %v613
    %v663 = vld [vmem:[#allocation9] sm:$0xff]
    %v664 = vld [vmem:[#allocation9 + $0x8] sm:$0xff]
    %v665 = vld [vmem:[#allocation9 + $0x10] sm:$0xff]
    %v666 = vld [vmem:[#allocation9 + $0x18] sm:$0xff]
    %v667 = vld [vmem:[#allocation9 + $0x20] sm:$0xff]
    %v668 = vld [vmem:[#allocation9 + $0x28] sm:$0xff]
    %v669 = vld [vmem:[#allocation9 + $0x30] sm:$0xff]
    %v670 = vld [vmem:[#allocation9 + $0x38] sm:$0xff]
    %v671 = vld [vmem:[#allocation9 + $0x40] sm:$0xff]
    %v672 = vld [vmem:[#allocation9 + $0x48] sm:$0xff]
    %v673 = vld [vmem:[#allocation9 + $0x50] sm:$0xff]
    %v674 = vld [vmem:[#allocation9 + $0x58] sm:$0xff]
    %v675 = vld [vmem:[#allocation9 + $0x60] sm:$0xff]
    %v676 = vld [vmem:[#allocation9 + $0x68] sm:$0xff]
    %v677 = vld [vmem:[#allocation9 + $0x70] sm:$0xff]
    %v678 = vld [vmem:[#allocation9 + $0x78] sm:$0xff]
    %v679 = vld [vmem:[#allocation9 + $0x80] sm:$0xff]
    %v680 = vld [vmem:[#allocation9 + $0x88] sm:$0xff]
    %v681 = vld [vmem:[#allocation9 + $0x90] sm:$0xff]
    %v682 = vld [vmem:[#allocation9 + $0x98] sm:$0xff]
    %v683 = vld [vmem:[#allocation9 + $0xa0] sm:$0xff]
    %v684 = vld [vmem:[#allocation9 + $0xa8] sm:$0xff]
    %v685 = vld [vmem:[#allocation9 + $0xb0] sm:$0xff]
    %v686 = vld [vmem:[#allocation9 + $0xb8] sm:$0xff]
    %v687 = vld [vmem:[#allocation9 + $0xc0] sm:$0xff]
    %v688 = vld [vmem:[#allocation9 + $0xc8] sm:$0xff]
    %v689 = vld [vmem:[#allocation9 + $0xd0] sm:$0xff]
    %v690 = vld [vmem:[#allocation9 + $0xd8] sm:$0xff]
    %v691 = vld [vmem:[#allocation9 + $0xe0] sm:$0xff]
    %v692 = vld [vmem:[#allocation9 + $0xe8] sm:$0xff]
    %v693 = vld [vmem:[#allocation9 + $0xf0] sm:$0xff]
    %v694 = vld [vmem:[#allocation9 + $0xf8] sm:$0xff]
    %v695 = vld [vmem:[#allocation9 + $0x100] sm:$0xff]
    %v696 = vld [vmem:[#allocation9 + $0x108] sm:$0xff]
    %v697 = vld [vmem:[#allocation9 + $0x110] sm:$0xff]
    %v698 = vld [vmem:[#allocation9 + $0x118] sm:$0xff]
    %v699 = vld [vmem:[#allocation9 + $0x120] sm:$0xff]
    %v700 = vld [vmem:[#allocation9 + $0x128] sm:$0xff]
    %v701 = vld [vmem:[#allocation9 + $0x130] sm:$0xff]
    %v702 = vld [vmem:[#allocation9 + $0x138] sm:$0xff]
    %v703 = vld [vmem:[#allocation9 + $0x140] sm:$0xff]
    %v704 = vld [vmem:[#allocation9 + $0x148] sm:$0xff]
    %v705 = vld [vmem:[#allocation9 + $0x150] sm:$0xff]
    %v706 = vld [vmem:[#allocation9 + $0x158] sm:$0xff]
    %v707 = vld [vmem:[#allocation9 + $0x160] sm:$0xff]
    %v708 = vld [vmem:[#allocation9 + $0x168] sm:$0xff]
    %v709 = vld [vmem:[#allocation9 + $0x170] sm:$0xff]
    %v710 = vld [vmem:[#allocation9 + $0x178] sm:$0xff]
    %v711 = vld [vmem:[#allocation9 + $0x180] sm:$0xff]
    %v712 = vld [vmem:[#allocation9 + $0x188] sm:$0xff]
    %v713 = vld [vmem:[#allocation9 + $0x190] sm:$0xff]
    %v714 = vld [vmem:[#allocation9 + $0x198] sm:$0xff]
    %v715 = vld [vmem:[#allocation9 + $0x1a0] sm:$0xff]
    %v716 = vld [vmem:[#allocation9 + $0x1a8] sm:$0xff]
    %v717 = vld [vmem:[#allocation9 + $0x1b0] sm:$0xff]
    %v718 = vld [vmem:[#allocation9 + $0x1b8] sm:$0xff]
    %v719 = vld [vmem:[#allocation9 + $0x1c0] sm:$0xff]
    %v720 = vld [vmem:[#allocation9 + $0x1c8] sm:$0xff]
    %v721 = vld [vmem:[#allocation9 + $0x1d0] sm:$0xff]
    %v722 = vld [vmem:[#allocation9 + $0x1d8] sm:$0xff]
    %v723 = vld [vmem:[#allocation9 + $0x1e0] sm:$0xff]
    %v724 = vld [vmem:[#allocation9 + $0x1e8] sm:$0xff]
    %v725 = vld [vmem:[#allocation9 + $0x1f0] sm:$0xff]
    %v726 = vld [vmem:[#allocation9 + $0x1f8] sm:$0xff]
    %v727 = vld [vmem:[#allocation9 + $0x200] sm:$0xff]
    %v728 = vld [vmem:[#allocation9 + $0x208] sm:$0xff]
    %v729 = vld [vmem:[#allocation9 + $0x210] sm:$0xff]
    %v730 = vld [vmem:[#allocation9 + $0x218] sm:$0xff]
    %v731 = vld [vmem:[#allocation9 + $0x220] sm:$0xff]
    %v732 = vld [vmem:[#allocation9 + $0x228] sm:$0xff]
    %v733 = vld [vmem:[#allocation9 + $0x230] sm:$0xff]
    %v734 = vld [vmem:[#allocation9 + $0x238] sm:$0xff]
    %v735 = vld [vmem:[#allocation9 + $0x240] sm:$0xff]
    %v736 = vld [vmem:[#allocation9 + $0x248] sm:$0xff]
    %v737 = vld [vmem:[#allocation9 + $0x250] sm:$0xff]
    %v738 = vld [vmem:[#allocation9 + $0x258] sm:$0xff]
    %v739 = vld [vmem:[#allocation9 + $0x260] sm:$0xff]
    %v740 = vld [vmem:[#allocation9 + $0x268] sm:$0xff]
    %v741 = vld [vmem:[#allocation9 + $0x270] sm:$0xff]
    %v742 = vld [vmem:[#allocation9 + $0x278] sm:$0xff]
    %v743 = vld [vmem:[#allocation9 + $0x280] sm:$0xff]
    %v744 = vld [vmem:[#allocation9 + $0x288] sm:$0xff]
    %v745 = vld [vmem:[#allocation9 + $0x290] sm:$0xff]
    %v746 = vld [vmem:[#allocation9 + $0x298] sm:$0xff]
    %v747 = vld [vmem:[#allocation9 + $0x2a0] sm:$0xff]
    %v748 = vld [vmem:[#allocation9 + $0x2a8] sm:$0xff]
    %v749 = vld [vmem:[#allocation9 + $0x2b0] sm:$0xff]
    %v750 = vld [vmem:[#allocation9 + $0x2b8] sm:$0xff]
    %v751 = vld [vmem:[#allocation9 + $0x2c0] sm:$0xff]
    %v752 = vld [vmem:[#allocation9 + $0x2c8] sm:$0xff]
    %v753 = vld [vmem:[#allocation9 + $0x2d0] sm:$0xff]
    %v754 = vld [vmem:[#allocation9 + $0x2d8] sm:$0xff]
    %v755 = vld [vmem:[#allocation9 + $0x2e0] sm:$0xff]
    %v756 = vld [vmem:[#allocation9 + $0x2e8] sm:$0xff]
    %v757 = vld [vmem:[#allocation9 + $0x2f0] sm:$0xff]
    %v758 = vld [vmem:[#allocation9 + $0x2f8] sm:$0xff]
    %v759 = vld [vmem:[%s4] sm:$0x3]
    %v761 = vperm.slane %v759, 0
    %v762 = vperm.slane %v759, 1
    %v765 = vld [vmem:[#allocation2] sm:$0xff]
    %v766 = vld [vmem:[#allocation2 + $0x10] sm:$0xff]
    %v767 = vld [vmem:[#allocation2 + $0x20] sm:$0xff]
    %v768 = vld [vmem:[#allocation2 + $0x158] sm:$0xff]
    %v769 = vld [vmem:[#allocation2 + $0x168] sm:$0xff]
    %v770 = vld [vmem:[#allocation2 + $0x178] sm:$0xff]
    %v867 = vunpack.c.l.b16 %v663
    %v868 = vunpack.c.h.b16 %v663
    %v869 = vunpack.c.l.b16 %v664
    %v870 = vunpack.c.h.b16 %v664
    %v871 = vunpack.c.l.b16 %v665
    %v872 = vunpack.c.h.b16 %v665
    %v873 = vunpack.c.l.b16 %v666
    %v874 = vunpack.c.h.b16 %v666
    %v875 = vunpack.c.l.b16 %v667
    %v876 = vunpack.c.h.b16 %v667
    %v877 = vunpack.c.l.b16 %v668
    %v878 = vunpack.c.h.b16 %v668
    %v879 = vunpack.c.l.b16 %v669
    %v880 = vunpack.c.h.b16 %v669
    %v881 = vunpack.c.l.b16 %v670
    %v882 = vunpack.c.h.b16 %v670
    %v883 = vunpack.c.l.b16 %v671
    %v884 = vunpack.c.h.b16 %v671
    %v885 = vunpack.c.l.b16 %v672
    %v886 = vunpack.c.h.b16 %v672
    %v887 = vunpack.c.l.b16 %v673
    %v888 = vunpack.c.h.b16 %v673
    %v889 = vunpack.c.l.b16 %v674
    %v890 = vunpack.c.h.b16 %v674
    %v891 = vunpack.c.l.b16 %v675
    %v892 = vunpack.c.h.b16 %v675
    %v893 = vunpack.c.l.b16 %v676
    %v894 = vunpack.c.h.b16 %v676
    %v895 = vunpack.c.l.b16 %v677
    %v896 = vunpack.c.h.b16 %v677
    %v897 = vunpack.c.l.b16 %v678
    %v898 = vunpack.c.h.b16 %v678
    %v899 = vunpack.c.l.b16 %v679
    %v900 = vunpack.c.h.b16 %v679
    %v901 = vunpack.c.l.b16 %v680
    %v902 = vunpack.c.h.b16 %v680
    %v903 = vunpack.c.l.b16 %v681
    %v904 = vunpack.c.h.b16 %v681
    %v905 = vunpack.c.l.b16 %v682
    %v906 = vunpack.c.h.b16 %v682
    %v907 = vunpack.c.l.b16 %v683
    %v908 = vunpack.c.h.b16 %v683
    %v909 = vunpack.c.l.b16 %v684
    %v910 = vunpack.c.h.b16 %v684
    %v911 = vunpack.c.l.b16 %v685
    %v912 = vunpack.c.h.b16 %v685
    %v913 = vunpack.c.l.b16 %v686
    %v914 = vunpack.c.h.b16 %v686
    %v915 = vunpack.c.l.b16 %v687
    %v916 = vunpack.c.h.b16 %v687
    %v917 = vunpack.c.l.b16 %v688
    %v918 = vunpack.c.h.b16 %v688
    %v919 = vunpack.c.l.b16 %v689
    %v920 = vunpack.c.h.b16 %v689
    %v921 = vunpack.c.l.b16 %v690
    %v922 = vunpack.c.h.b16 %v690
    %v923 = vunpack.c.l.b16 %v691
    %v924 = vunpack.c.h.b16 %v691
    %v925 = vunpack.c.l.b16 %v692
    %v926 = vunpack.c.h.b16 %v692
    %v927 = vunpack.c.l.b16 %v693
    %v928 = vunpack.c.h.b16 %v693
    %v929 = vunpack.c.l.b16 %v694
    %v930 = vunpack.c.h.b16 %v694
    %v931 = vunpack.c.l.b16 %v695
    %v932 = vunpack.c.h.b16 %v695
    %v933 = vunpack.c.l.b16 %v696
    %v934 = vunpack.c.h.b16 %v696
    %v935 = vunpack.c.l.b16 %v697
    %v936 = vunpack.c.h.b16 %v697
    %v937 = vunpack.c.l.b16 %v698
    %v938 = vunpack.c.h.b16 %v698
    %v939 = vunpack.c.l.b16 %v699
    %v940 = vunpack.c.h.b16 %v699
    %v941 = vunpack.c.l.b16 %v700
    %v942 = vunpack.c.h.b16 %v700
    %v943 = vunpack.c.l.b16 %v701
    %v944 = vunpack.c.h.b16 %v701
    %v945 = vunpack.c.l.b16 %v702
    %v946 = vunpack.c.h.b16 %v702
    %v947 = vunpack.c.l.b16 %v703
    %v948 = vunpack.c.h.b16 %v703
    %v949 = vunpack.c.l.b16 %v704
    %v950 = vunpack.c.h.b16 %v704
    %v951 = vunpack.c.l.b16 %v705
    %v952 = vunpack.c.h.b16 %v705
    %v953 = vunpack.c.l.b16 %v706
    %v954 = vunpack.c.h.b16 %v706
    %v955 = vunpack.c.l.b16 %v707
    %v956 = vunpack.c.h.b16 %v707
    %v957 = vunpack.c.l.b16 %v708
    %v958 = vunpack.c.h.b16 %v708
    %v959 = vunpack.c.l.b16 %v709
    %v960 = vunpack.c.h.b16 %v709
    %v961 = vunpack.c.l.b16 %v710
    %v962 = vunpack.c.h.b16 %v710
    %v963 = vunpack.c.l.b16 %v711
    %v964 = vunpack.c.h.b16 %v711
    %v965 = vunpack.c.l.b16 %v712
    %v966 = vunpack.c.h.b16 %v712
    %v967 = vunpack.c.l.b16 %v713
    %v968 = vunpack.c.h.b16 %v713
    %v969 = vunpack.c.l.b16 %v714
    %v970 = vunpack.c.h.b16 %v714
    %v971 = vunpack.c.l.b16 %v715
    %v972 = vunpack.c.h.b16 %v715
    %v973 = vunpack.c.l.b16 %v716
    %v974 = vunpack.c.h.b16 %v716
    %v975 = vunpack.c.l.b16 %v717
    %v976 = vunpack.c.h.b16 %v717
    %v977 = vunpack.c.l.b16 %v718
    %v978 = vunpack.c.h.b16 %v718
    %v979 = vunpack.c.l.b16 %v719
    %v980 = vunpack.c.h.b16 %v719
    %v981 = vunpack.c.l.b16 %v720
    %v982 = vunpack.c.h.b16 %v720
    %v983 = vunpack.c.l.b16 %v721
    %v984 = vunpack.c.h.b16 %v721
    %v985 = vunpack.c.l.b16 %v722
    %v986 = vunpack.c.h.b16 %v722
    %v987 = vunpack.c.l.b16 %v723
    %v988 = vunpack.c.h.b16 %v723
    %v989 = vunpack.c.l.b16 %v724
    %v990 = vunpack.c.h.b16 %v724
    %v991 = vunpack.c.l.b16 %v725
    %v992 = vunpack.c.h.b16 %v725
    %v993 = vunpack.c.l.b16 %v726
    %v994 = vunpack.c.h.b16 %v726
    %v995 = vunpack.c.l.b16 %v727
    %v996 = vunpack.c.h.b16 %v727
    %v997 = vunpack.c.l.b16 %v728
    %v998 = vunpack.c.h.b16 %v728
    %v999 = vunpack.c.l.b16 %v729
    %v1000 = vunpack.c.h.b16 %v729
    %v1001 = vunpack.c.l.b16 %v730
    %v1002 = vunpack.c.h.b16 %v730
    %v1003 = vunpack.c.l.b16 %v731
    %v1004 = vunpack.c.h.b16 %v731
    %v1005 = vunpack.c.l.b16 %v732
    %v1006 = vunpack.c.h.b16 %v732
    %v1007 = vunpack.c.l.b16 %v733
    %v1008 = vunpack.c.h.b16 %v733
    %v1009 = vunpack.c.l.b16 %v734
    %v1010 = vunpack.c.h.b16 %v734
    %v1011 = vunpack.c.l.b16 %v735
    %v1012 = vunpack.c.h.b16 %v735
    %v1013 = vunpack.c.l.b16 %v736
    %v1014 = vunpack.c.h.b16 %v736
    %v1015 = vunpack.c.l.b16 %v737
    %v1016 = vunpack.c.h.b16 %v737
    %v1017 = vunpack.c.l.b16 %v738
    %v1018 = vunpack.c.h.b16 %v738
    %v1019 = vunpack.c.l.b16 %v739
    %v1020 = vunpack.c.h.b16 %v739
    %v1021 = vunpack.c.l.b16 %v740
    %v1022 = vunpack.c.h.b16 %v740
    %v1023 = vunpack.c.l.b16 %v741
    %v1024 = vunpack.c.h.b16 %v741
    %v1025 = vunpack.c.l.b16 %v742
    %v1026 = vunpack.c.h.b16 %v742
    %v1027 = vunpack.c.l.b16 %v743
    %v1028 = vunpack.c.h.b16 %v743
    %v1029 = vunpack.c.l.b16 %v744
    %v1030 = vunpack.c.h.b16 %v744
    %v1031 = vunpack.c.l.b16 %v745
    %v1032 = vunpack.c.h.b16 %v745
    %v1033 = vunpack.c.l.b16 %v746
    %v1034 = vunpack.c.h.b16 %v746
    %v1035 = vunpack.c.l.b16 %v747
    %v1036 = vunpack.c.h.b16 %v747
    %v1037 = vunpack.c.l.b16 %v748
    %v1038 = vunpack.c.h.b16 %v748
    %v1039 = vunpack.c.l.b16 %v749
    %v1040 = vunpack.c.h.b16 %v749
    %v1041 = vunpack.c.l.b16 %v750
    %v1042 = vunpack.c.h.b16 %v750
    %v1043 = vunpack.c.l.b16 %v751
    %v1044 = vunpack.c.h.b16 %v751
    %v1045 = vunpack.c.l.b16 %v752
    %v1046 = vunpack.c.h.b16 %v752
    %v1047 = vunpack.c.l.b16 %v753
    %v1048 = vunpack.c.h.b16 %v753
    %v1049 = vunpack.c.l.b16 %v754
    %v1050 = vunpack.c.h.b16 %v754
    %v1051 = vunpack.c.l.b16 %v755
    %v1052 = vunpack.c.h.b16 %v755
    %v1053 = vunpack.c.l.b16 %v756
    %v1054 = vunpack.c.h.b16 %v756
    %v1055 = vunpack.c.l.b16 %v757
    %v1056 = vunpack.c.h.b16 %v757
    %v1057 = vunpack.c.l.b16 %v758
    %v1058 = vunpack.c.h.b16 %v758
    %v1059 = vpack.c.b16 %v873, %v867
    %v1060 = vpack.c.b16 %v874, %v868
    %v1061 = vpack.c.b16 %v875, %v869
    %v1062 = vpack.c.b16 %v876, %v870
    %v1063 = vpack.c.b16 %v877, %v871
    %v1064 = vpack.c.b16 %v878, %v872
    %v1065 = vpack.c.b16 %v885, %v879
    %v1066 = vpack.c.b16 %v886, %v880
    %v1067 = vpack.c.b16 %v887, %v881
    %v1068 = vpack.c.b16 %v888, %v882
    %v1069 = vpack.c.b16 %v889, %v883
    %v1070 = vpack.c.b16 %v890, %v884
    %v1071 = vpack.c.b16 %v897, %v891
    %v1072 = vpack.c.b16 %v898, %v892
    %v1073 = vpack.c.b16 %v899, %v893
    %v1074 = vpack.c.b16 %v900, %v894
    %v1075 = vpack.c.b16 %v901, %v895
    %v1076 = vpack.c.b16 %v902, %v896
    %v1077 = vpack.c.b16 %v909, %v903
    %v1078 = vpack.c.b16 %v910, %v904
    %v1079 = vpack.c.b16 %v911, %v905
    %v1080 = vpack.c.b16 %v912, %v906
    %v1081 = vpack.c.b16 %v913, %v907
    %v1082 = vpack.c.b16 %v914, %v908
    %v1083 = vpack.c.b16 %v921, %v915
    %v1084 = vpack.c.b16 %v922, %v916
    %v1085 = vpack.c.b16 %v923, %v917
    %v1086 = vpack.c.b16 %v924, %v918
    %v1087 = vpack.c.b16 %v925, %v919
    %v1088 = vpack.c.b16 %v926, %v920
    %v1089 = vpack.c.b16 %v933, %v927
    %v1090 = vpack.c.b16 %v934, %v928
    %v1091 = vpack.c.b16 %v935, %v929
    %v1092 = vpack.c.b16 %v936, %v930
    %v1093 = vpack.c.b16 %v937, %v931
    %v1094 = vpack.c.b16 %v938, %v932
    %v1095 = vpack.c.b16 %v945, %v939
    %v1096 = vpack.c.b16 %v946, %v940
    %v1097 = vpack.c.b16 %v947, %v941
    %v1098 = vpack.c.b16 %v948, %v942
    %v1099 = vpack.c.b16 %v949, %v943
    %v1100 = vpack.c.b16 %v950, %v944
    %v1101 = vpack.c.b16 %v957, %v951
    %v1102 = vpack.c.b16 %v958, %v952
    %v1103 = vpack.c.b16 %v959, %v953
    %v1104 = vpack.c.b16 %v960, %v954
    %v1105 = vpack.c.b16 %v961, %v955
    %v1106 = vpack.c.b16 %v962, %v956
    %v1107 = vpack.c.b16 %v969, %v963
    %v1108 = vpack.c.b16 %v970, %v964
    %v1109 = vpack.c.b16 %v971, %v965
    %v1110 = vpack.c.b16 %v972, %v966
    %v1111 = vpack.c.b16 %v973, %v967
    %v1112 = vpack.c.b16 %v974, %v968
    %v1113 = vpack.c.b16 %v981, %v975
    %v1114 = vpack.c.b16 %v982, %v976
    %v1115 = vpack.c.b16 %v983, %v977
    %v1116 = vpack.c.b16 %v984, %v978
    %v1117 = vpack.c.b16 %v985, %v979
    %v1118 = vpack.c.b16 %v986, %v980
    %v1119 = vpack.c.b16 %v993, %v987
    %v1120 = vpack.c.b16 %v994, %v988
    %v1121 = vpack.c.b16 %v995, %v989
    %v1122 = vpack.c.b16 %v996, %v990
    %v1123 = vpack.c.b16 %v997, %v991
    %v1124 = vpack.c.b16 %v998, %v992
    %v1125 = vpack.c.b16 %v1005, %v999
    %v1126 = vpack.c.b16 %v1006, %v1000
    %v1127 = vpack.c.b16 %v1007, %v1001
    %v1128 = vpack.c.b16 %v1008, %v1002
    %v1129 = vpack.c.b16 %v1009, %v1003
    %v1130 = vpack.c.b16 %v1010, %v1004
    %v1131 = vpack.c.b16 %v1017, %v1011
    %v1132 = vpack.c.b16 %v1018, %v1012
    %v1133 = vpack.c.b16 %v1019, %v1013
    %v1134 = vpack.c.b16 %v1020, %v1014
    %v1135 = vpack.c.b16 %v1021, %v1015
    %v1136 = vpack.c.b16 %v1022, %v1016
    %v1137 = vpack.c.b16 %v1029, %v1023
    %v1138 = vpack.c.b16 %v1030, %v1024
    %v1139 = vpack.c.b16 %v1031, %v1025
    %v1140 = vpack.c.b16 %v1032, %v1026
    %v1141 = vpack.c.b16 %v1033, %v1027
    %v1142 = vpack.c.b16 %v1034, %v1028
    %v1143 = vpack.c.b16 %v1041, %v1035
    %v1144 = vpack.c.b16 %v1042, %v1036
    %v1145 = vpack.c.b16 %v1043, %v1037
    %v1146 = vpack.c.b16 %v1044, %v1038
    %v1147 = vpack.c.b16 %v1045, %v1039
    %v1148 = vpack.c.b16 %v1046, %v1040
    %v1149 = vpack.c.b16 %v1053, %v1047
    %v1150 = vpack.c.b16 %v1054, %v1048
    %v1151 = vpack.c.b16 %v1055, %v1049
    %v1152 = vpack.c.b16 %v1056, %v1050
    %v1153 = vpack.c.b16 %v1057, %v1051
    %v1154 = vpack.c.b16 %v1058, %v1052
    %1251 = vmatpush.bf16.msra.mxu0 %v1101
    %1252 = vmatpush.bf16.msra.mxu0 %v1095
    %1253 = vmatpush.bf16.msra.mxu0 %v1089
    %1254 = vmatpush.bf16.msra.mxu0 %v1083
    %1255 = vmatpush.bf16.msra.mxu0 %v1077
    %1256 = vmatpush.bf16.msra.mxu0 %v1071
    %1257 = vmatpush.bf16.msra.mxu0 %v1065
    %1258 = vmatpush.bf16.msra.mxu0 %v1059
    %1259 = vmatmul.bf16.gmra.mxu0 0
    %v1260 = vpop.f32.mrf.mxu0
    %v1261 = vadd.f32 0.0, %v1260
    %v1262 = vpop.f32.mrf.mxu0
    %1263 = vdwg.mxu0
    %1264 = vmatpush.bf16.msra.mxu0 %v1149
    %1265 = vmatpush.bf16.msra.mxu0 %v1143
    %1266 = vmatpush.bf16.msra.mxu0 %v1137
    %1267 = vmatpush.bf16.msra.mxu0 %v1131
    %1268 = vmatpush.bf16.msra.mxu0 %v1125
    %1269 = vmatpush.bf16.msra.mxu0 %v1119
    %1270 = vmatpush.bf16.msra.mxu0 %v1113
    %1271 = vmatpush.bf16.msra.mxu0 %v1107
    %1272 = vmatmul.bf16.gmra.mxu0 0
    %v1273 = vpop.f32.mrf.mxu0
    %v1274 = vadd.f32 %v1261, %v1273
    %v1275 = vpop.f32.mrf.mxu0
    %1276 = vdwg.mxu0
    %1277 = vmatpush.bf16.msra.mxu0 %v1102
    %1278 = vmatpush.bf16.msra.mxu0 %v1096
    %1279 = vmatpush.bf16.msra.mxu0 %v1090
    %1280 = vmatpush.bf16.msra.mxu0 %v1084
    %1281 = vmatpush.bf16.msra.mxu0 %v1078
    %1282 = vmatpush.bf16.msra.mxu0 %v1072
    %1283 = vmatpush.bf16.msra.mxu0 %v1066
    %1284 = vmatpush.bf16.msra.mxu0 %v1060
    %1285 = vmatmul.bf16.gmra.mxu0 0
    %v1286 = vpop.f32.mrf.mxu0
    %v1287 = vadd.f32 0.0, %v1286
    %v1288 = vpop.f32.mrf.mxu0
    %1289 = vdwg.mxu0
    %1290 = vmatpush.bf16.msra.mxu0 %v1150
    %1291 = vmatpush.bf16.msra.mxu0 %v1144
    %1292 = vmatpush.bf16.msra.mxu0 %v1138
    %1293 = vmatpush.bf16.msra.mxu0 %v1132
    %1294 = vmatpush.bf16.msra.mxu0 %v1126
    %1295 = vmatpush.bf16.msra.mxu0 %v1120
    %1296 = vmatpush.bf16.msra.mxu0 %v1114
    %1297 = vmatpush.bf16.msra.mxu0 %v1108
    %1298 = vmatmul.bf16.gmra.mxu0 0
    %v1299 = vpop.f32.mrf.mxu0
    %v1300 = vadd.f32 %v1287, %v1299
    %v1301 = vpop.f32.mrf.mxu0
    %1302 = vdwg.mxu0
    %1303 = vmatpush.bf16.msra.mxu0 %v1103
    %1304 = vmatpush.bf16.msra.mxu0 %v1097
    %1305 = vmatpush.bf16.msra.mxu0 %v1091
    %1306 = vmatpush.bf16.msra.mxu0 %v1085
    %1307 = vmatpush.bf16.msra.mxu0 %v1079
    %1308 = vmatpush.bf16.msra.mxu0 %v1073
    %1309 = vmatpush.bf16.msra.mxu0 %v1067
    %1310 = vmatpush.bf16.msra.mxu0 %v1061
    %1311 = vmatmul.bf16.gmra.mxu0 0
    %v1312 = vpop.f32.mrf.mxu0
    %v1313 = vadd.f32 0.0, %v1312
    %v1314 = vpop.f32.mrf.mxu0
    %1315 = vdwg.mxu0
    %1316 = vmatpush.bf16.msra.mxu0 %v1151
    %1317 = vmatpush.bf16.msra.mxu0 %v1145
    %1318 = vmatpush.bf16.msra.mxu0 %v1139
    %1319 = vmatpush.bf16.msra.mxu0 %v1133
    %1320 = vmatpush.bf16.msra.mxu0 %v1127
    %1321 = vmatpush.bf16.msra.mxu0 %v1121
    %1322 = vmatpush.bf16.msra.mxu0 %v1115
    %1323 = vmatpush.bf16.msra.mxu0 %v1109
    %1324 = vmatmul.bf16.gmra.mxu0 0
    %v1325 = vpop.f32.mrf.mxu0
    %v1326 = vadd.f32 %v1313, %v1325
    %v1327 = vpop.f32.mrf.mxu0
    %1328 = vdwg.mxu0
    %1329 = vmatpush.bf16.msra.mxu0 %v1104
    %1330 = vmatpush.bf16.msra.mxu0 %v1098
    %1331 = vmatpush.bf16.msra.mxu0 %v1092
    %1332 = vmatpush.bf16.msra.mxu0 %v1086
    %1333 = vmatpush.bf16.msra.mxu0 %v1080
    %1334 = vmatpush.bf16.msra.mxu0 %v1074
    %1335 = vmatpush.bf16.msra.mxu0 %v1068
    %1336 = vmatpush.bf16.msra.mxu0 %v1062
    %1337 = vmatmul.bf16.gmra.mxu0 0
    %v1338 = vpop.f32.mrf.mxu0
    %v1339 = vadd.f32 0.0, %v1338
    %v1340 = vpop.f32.mrf.mxu0
    %1341 = vdwg.mxu0
    %1342 = vmatpush.bf16.msra.mxu0 %v1152
    %1343 = vmatpush.bf16.msra.mxu0 %v1146
    %1344 = vmatpush.bf16.msra.mxu0 %v1140
    %1345 = vmatpush.bf16.msra.mxu0 %v1134
    %1346 = vmatpush.bf16.msra.mxu0 %v1128
    %1347 = vmatpush.bf16.msra.mxu0 %v1122
    %1348 = vmatpush.bf16.msra.mxu0 %v1116
    %1349 = vmatpush.bf16.msra.mxu0 %v1110
    %1350 = vmatmul.bf16.gmra.mxu0 0
    %v1351 = vpop.f32.mrf.mxu0
    %v1352 = vadd.f32 %v1339, %v1351
    %v1353 = vpop.f32.mrf.mxu0
    %1354 = vdwg.mxu0
    %1355 = vmatpush.bf16.msra.mxu0 %v1105
    %1356 = vmatpush.bf16.msra.mxu0 %v1099
    %1357 = vmatpush.bf16.msra.mxu0 %v1093
    %1358 = vmatpush.bf16.msra.mxu0 %v1087
    %1359 = vmatpush.bf16.msra.mxu0 %v1081
    %1360 = vmatpush.bf16.msra.mxu0 %v1075
    %1361 = vmatpush.bf16.msra.mxu0 %v1069
    %1362 = vmatpush.bf16.msra.mxu0 %v1063
    %1363 = vmatmul.bf16.gmra.mxu0 0
    %v1364 = vpop.f32.mrf.mxu0
    %v1365 = vadd.f32 0.0, %v1364
    %v1366 = vpop.f32.mrf.mxu0
    %1367 = vdwg.mxu0
    %1368 = vmatpush.bf16.msra.mxu0 %v1153
    %1369 = vmatpush.bf16.msra.mxu0 %v1147
    %1370 = vmatpush.bf16.msra.mxu0 %v1141
    %1371 = vmatpush.bf16.msra.mxu0 %v1135
    %1372 = vmatpush.bf16.msra.mxu0 %v1129
    %1373 = vmatpush.bf16.msra.mxu0 %v1123
    %1374 = vmatpush.bf16.msra.mxu0 %v1117
    %1375 = vmatpush.bf16.msra.mxu0 %v1111
    %1376 = vmatmul.bf16.gmra.mxu0 0
    %v1377 = vpop.f32.mrf.mxu0
    %v1378 = vadd.f32 %v1365, %v1377
    %v1379 = vpop.f32.mrf.mxu0
    %1380 = vdwg.mxu0
    %1381 = vmatpush.bf16.msra.mxu0 %v1106
    %1382 = vmatpush.bf16.msra.mxu0 %v1100
    %1383 = vmatpush.bf16.msra.mxu0 %v1094
    %1384 = vmatpush.bf16.msra.mxu0 %v1088
    %1385 = vmatpush.bf16.msra.mxu0 %v1082
    %1386 = vmatpush.bf16.msra.mxu0 %v1076
    %1387 = vmatpush.bf16.msra.mxu0 %v1070
    %1388 = vmatpush.bf16.msra.mxu0 %v1064
    %1389 = vmatmul.bf16.gmra.mxu0 0
    %v1390 = vpop.f32.mrf.mxu0
    %v1391 = vadd.f32 0.0, %v1390
    %v1392 = vpop.f32.mrf.mxu0
    %1393 = vdwg.mxu0
    %1394 = vmatpush.bf16.msra.mxu0 %v1154
    %1395 = vmatpush.bf16.msra.mxu0 %v1148
    %1396 = vmatpush.bf16.msra.mxu0 %v1142
    %1397 = vmatpush.bf16.msra.mxu0 %v1136
    %1398 = vmatpush.bf16.msra.mxu0 %v1130
    %1399 = vmatpush.bf16.msra.mxu0 %v1124
    %1400 = vmatpush.bf16.msra.mxu0 %v1118
    %1401 = vmatpush.bf16.msra.mxu0 %v1112
    %1402 = vmatmul.bf16.gmra.mxu0 0
    %v1403 = vpop.f32.mrf.mxu0
    %v1404 = vadd.f32 %v1391, %v1403
    %v1405 = vpop.f32.mrf.mxu0
    %1406 = vdwg.mxu0
    %v1407 = vadd.f32 %v765, %v1274
    %v1408 = vadd.f32 %v768, %v1300
    %v1409 = vadd.f32 %v766, %v1326
    %v1410 = vadd.f32 %v769, %v1352
    %v1411 = vxor.u32 %v1407, 2147483648
    %v1412 = vxor.u32 %v1408, 2147483648
    %v1413 = vxor.u32 %v1409, 2147483648
    %v1414 = vxor.u32 %v1410, 2147483648
    %v1415 = vmul.f32 %v1411, 1.442695
    %v1416 = vpow.pop %v1415
    %v1417 = vmul.f32 %v1412, 1.442695
    %v1418 = vpow.pop %v1417
    %v1419 = vmul.f32 %v1413, 1.442695
    %v1420 = vpow.pop %v1419
    %v1421 = vmul.f32 %v1414, 1.442695
    %v1422 = vpow.pop %v1421
    %v1423 = vadd.f32 %v1416, 1.0
    %v1424 = vadd.f32 %v1418, 1.0
    %v1425 = vadd.f32 %v1420, 1.0
    %v1426 = vadd.f32 %v1422, 1.0
    %v1427 = vrcp.pop %v1423
    %v1428 = vmul.f32 %v1423, %v1427
    %v1429 = vsub.f32 1.0, %v1428
    %v1430 = vmul.f32 %v1427, %v1429
    %v1431 = vadd.f32 %v1427, %v1430
    %vm1432 = vweird.f32 %v1423
    %vm1433 = vweird.f32 %v1427
    %vm1434 = vmor %vm1432, %vm1433
    %v1435 = vsel %vm1434, %v1427, %v1431
    %v1436 = vand.u32 2147483647, %v1423
    %vm1437 = vcmp.eq.f32.partialorder %v1436, 8.507059e+37
    %v1438 = vand.u32 %v1423, 2147483648
    %v1439 = vor.u32 1.1754944e-38, %v1438
    %v1440 = vsel %vm1437, %v1439, %v1435
    %v1441 = vmul.f32 1.0, %v1440
    %v1442 = vrcp.pop %v1424
    %v1443 = vmul.f32 %v1424, %v1442
    %v1444 = vsub.f32 1.0, %v1443
    %v1445 = vmul.f32 %v1442, %v1444
    %v1446 = vadd.f32 %v1442, %v1445
    %vm1447 = vweird.f32 %v1424
    %vm1448 = vweird.f32 %v1442
    %vm1449 = vmor %vm1447, %vm1448
    %v1450 = vsel %vm1449, %v1442, %v1446
    %v1451 = vand.u32 2147483647, %v1424
    %vm1452 = vcmp.eq.f32.partialorder %v1451, 8.507059e+37
    %v1453 = vand.u32 %v1424, 2147483648
    %v1454 = vor.u32 1.1754944e-38, %v1453
    %v1455 = vsel %vm1452, %v1454, %v1450
    %v1456 = vmul.f32 1.0, %v1455
    %v1457 = vrcp.pop %v1425
    %v1458 = vmul.f32 %v1425, %v1457
    %v1459 = vsub.f32 1.0, %v1458
    %v1460 = vmul.f32 %v1457, %v1459
    %v1461 = vadd.f32 %v1457, %v1460
    %vm1462 = vweird.f32 %v1425
    %vm1463 = vweird.f32 %v1457
    %vm1464 = vmor %vm1462, %vm1463
    %v1465 = vsel %vm1464, %v1457, %v1461
    %v1466 = vand.u32 2147483647, %v1425
    %vm1467 = vcmp.eq.f32.partialorder %v1466, 8.507059e+37
    %v1468 = vand.u32 %v1425, 2147483648
    %v1469 = vor.u32 1.1754944e-38, %v1468
    %v1470 = vsel %vm1467, %v1469, %v1465
    %v1471 = vmul.f32 1.0, %v1470
    %v1472 = vrcp.pop %v1426
    %v1473 = vmul.f32 %v1426, %v1472
    %v1474 = vsub.f32 1.0, %v1473
    %v1475 = vmul.f32 %v1472, %v1474
    %v1476 = vadd.f32 %v1472, %v1475
    %vm1477 = vweird.f32 %v1426
    %vm1478 = vweird.f32 %v1472
    %vm1479 = vmor %vm1477, %vm1478
    %v1480 = vsel %vm1479, %v1472, %v1476
    %v1481 = vand.u32 2147483647, %v1426
    %vm1482 = vcmp.eq.f32.partialorder %v1481, 8.507059e+37
    %v1483 = vand.u32 %v1426, 2147483648
    %v1484 = vor.u32 1.1754944e-38, %v1483
    %v1485 = vsel %vm1482, %v1484, %v1480
    %v1486 = vmul.f32 1.0, %v1485
    %v1487 = vadd.f32 %v1378, %v761
    %v1488 = vadd.f32 %v1404, %v762
    %v1489 = vmul.f32 %v1441, %v1487
    %v1490 = vmul.f32 %v1456, %v1488
    %v1491 = vadd.f32 %v767, %v1489
    %v1492 = vadd.f32 %v770, %v1490
    %v1493 = vtanh.pop %v1491
    %v1494 = vtanh.pop %v1492
    %v1495 = vsub.f32 1.0, %v1471
    %v1496 = vsub.f32 1.0, %v1486
    %v1497 = vmul.f32 %v1495, %v1493
    %v1498 = vmul.f32 %v1496, %v1494
    %v1499 = vmul.f32 %v1471, 0.0
    %v1500 = vmul.f32 %v1486, 0.0
    %v1501 = vadd.f32 %v1497, %v1499
    %v1502 = vadd.f32 %v1498, %v1500
    %1503 = vst [vmem:[#allocation12] sm:$0xff] %v1501
    %s1504 = scalar_lea.vmem [#allocation12], 112
    %1505 = vst [vmem:[%s1504 + $0x8] sm:$0xff] %v1502
    %v1506 = vld [vmem:[#allocation2 + $0x30] sm:$0xff]
    %v1507 = vld [vmem:[#allocation2 + $0x40] sm:$0xff]
    %v1508 = vld [vmem:[#allocation2 + $0x50] sm:$0xff]
    %v1509 = vld [vmem:[#allocation2 + $0x128] sm:$0xff]
    %v1510 = vld [vmem:[#allocation2 + $0x138] sm:$0xff]
    %v1511 = vld [vmem:[#allocation2 + $0x148] sm:$0xff]
    %v1512 = vpack.c.bf16 %v1501, %v1501
    %v1513 = vpack.c.bf16 %v1502, %v1502
    %1514 = vmatpush.bf16.msra.mxu0 %v1101
    %1515 = vmatpush.bf16.msra.mxu0 %v1095
    %1516 = vmatpush.bf16.msra.mxu0 %v1089
    %1517 = vmatpush.bf16.msra.mxu0 %v1083
    %1518 = vmatpush.bf16.msra.mxu0 %v1077
    %1519 = vmatpush.bf16.msra.mxu0 %v1071
    %1520 = vmatpush.bf16.msra.mxu0 %v1065
    %1521 = vmatpush.bf16.msra.mxu0 %v1059
    %1522 = vmatmul.bf16.gmra.mxu0 %v1512
    %v1523 = vpop.f32.mrf.mxu0
    %v1524 = vadd.f32 0.0, %v1523
    %v1525 = vpop.f32.mrf.mxu0
    %1526 = vdwg.mxu0
    %1527 = vmatpush.bf16.msra.mxu0 %v1149
    %1528 = vmatpush.bf16.msra.mxu0 %v1143
    %1529 = vmatpush.bf16.msra.mxu0 %v1137
    %1530 = vmatpush.bf16.msra.mxu0 %v1131
    %1531 = vmatpush.bf16.msra.mxu0 %v1125
    %1532 = vmatpush.bf16.msra.mxu0 %v1119
    %1533 = vmatpush.bf16.msra.mxu0 %v1113
    %1534 = vmatpush.bf16.msra.mxu0 %v1107
    %1535 = vmatmul.bf16.gmra.mxu0 %v1513
    %v1536 = vpop.f32.mrf.mxu0
    %v1537 = vadd.f32 %v1524, %v1536
    %v1538 = vpop.f32.mrf.mxu0
    %1539 = vdwg.mxu0
    %1540 = vmatpush.bf16.msra.mxu0 %v1102
    %1541 = vmatpush.bf16.msra.mxu0 %v1096
    %1542 = vmatpush.bf16.msra.mxu0 %v1090
    %1543 = vmatpush.bf16.msra.mxu0 %v1084
    %1544 = vmatpush.bf16.msra.mxu0 %v1078
    %1545 = vmatpush.bf16.msra.mxu0 %v1072
    %1546 = vmatpush.bf16.msra.mxu0 %v1066
    %1547 = vmatpush.bf16.msra.mxu0 %v1060
    %1548 = vmatmul.bf16.gmra.mxu0 %v1512
    %v1549 = vpop.f32.mrf.mxu0
    %v1550 = vadd.f32 0.0, %v1549
    %v1551 = vpop.f32.mrf.mxu0
    %1552 = vdwg.mxu0
    %1553 = vmatpush.bf16.msra.mxu0 %v1150
    %1554 = vmatpush.bf16.msra.mxu0 %v1144
    %1555 = vmatpush.bf16.msra.mxu0 %v1138
    %1556 = vmatpush.bf16.msra.mxu0 %v1132
    %1557 = vmatpush.bf16.msra.mxu0 %v1126
    %1558 = vmatpush.bf16.msra.mxu0 %v1120
    %1559 = vmatpush.bf16.msra.mxu0 %v1114
    %1560 = vmatpush.bf16.msra.mxu0 %v1108
    %1561 = vmatmul.bf16.gmra.mxu0 %v1513
    %v1562 = vpop.f32.mrf.mxu0
    %v1563 = vadd.f32 %v1550, %v1562
    %v1564 = vpop.f32.mrf.mxu0
    %1565 = vdwg.mxu0
    %1566 = vmatpush.bf16.msra.mxu0 %v1103
    %1567 = vmatpush.bf16.msra.mxu0 %v1097
    %1568 = vmatpush.bf16.msra.mxu0 %v1091
    %1569 = vmatpush.bf16.msra.mxu0 %v1085
    %1570 = vmatpush.bf16.msra.mxu0 %v1079
    %1571 = vmatpush.bf16.msra.mxu0 %v1073
    %1572 = vmatpush.bf16.msra.mxu0 %v1067
    %1573 = vmatpush.bf16.msra.mxu0 %v1061
    %1574 = vmatmul.bf16.gmra.mxu0 %v1512
    %v1575 = vpop.f32.mrf.mxu0
    %v1576 = vadd.f32 0.0, %v1575
    %v1577 = vpop.f32.mrf.mxu0
    %1578 = vdwg.mxu0
    %1579 = vmatpush.bf16.msra.mxu0 %v1151
    %1580 = vmatpush.bf16.msra.mxu0 %v1145
    %1581 = vmatpush.bf16.msra.mxu0 %v1139
    %1582 = vmatpush.bf16.msra.mxu0 %v1133
    %1583 = vmatpush.bf16.msra.mxu0 %v1127
    %1584 = vmatpush.bf16.msra.mxu0 %v1121
    %1585 = vmatpush.bf16.msra.mxu0 %v1115
    %1586 = vmatpush.bf16.msra.mxu0 %v1109
    %1587 = vmatmul.bf16.gmra.mxu0 %v1513
    %v1588 = vpop.f32.mrf.mxu0
    %v1589 = vadd.f32 %v1576, %v1588
    %v1590 = vpop.f32.mrf.mxu0
    %1591 = vdwg.mxu0
    %1592 = vmatpush.bf16.msra.mxu0 %v1104
    %1593 = vmatpush.bf16.msra.mxu0 %v1098
    %1594 = vmatpush.bf16.msra.mxu0 %v1092
    %1595 = vmatpush.bf16.msra.mxu0 %v1086
    %1596 = vmatpush.bf16.msra.mxu0 %v1080
    %1597 = vmatpush.bf16.msra.mxu0 %v1074
    %1598 = vmatpush.bf16.msra.mxu0 %v1068
    %1599 = vmatpush.bf16.msra.mxu0 %v1062
    %1600 = vmatmul.bf16.gmra.mxu0 %v1512
    %v1601 = vpop.f32.mrf.mxu0
    %v1602 = vadd.f32 0.0, %v1601
    %v1603 = vpop.f32.mrf.mxu0
    %1604 = vdwg.mxu0
    %1605 = vmatpush.bf16.msra.mxu0 %v1152
    %1606 = vmatpush.bf16.msra.mxu0 %v1146
    %1607 = vmatpush.bf16.msra.mxu0 %v1140
    %1608 = vmatpush.bf16.msra.mxu0 %v1134
    %1609 = vmatpush.bf16.msra.mxu0 %v1128
    %1610 = vmatpush.bf16.msra.mxu0 %v1122
    %1611 = vmatpush.bf16.msra.mxu0 %v1116
    %1612 = vmatpush.bf16.msra.mxu0 %v1110
    %1613 = vmatmul.bf16.gmra.mxu0 %v1513
    %v1614 = vpop.f32.mrf.mxu0
    %v1615 = vadd.f32 %v1602, %v1614
    %v1616 = vpop.f32.mrf.mxu0
    %1617 = vdwg.mxu0
    %1618 = vmatpush.bf16.msra.mxu0 %v1105
    %1619 = vmatpush.bf16.msra.mxu0 %v1099
    %1620 = vmatpush.bf16.msra.mxu0 %v1093
    %1621 = vmatpush.bf16.msra.mxu0 %v1087
    %1622 = vmatpush.bf16.msra.mxu0 %v1081
    %1623 = vmatpush.bf16.msra.mxu0 %v1075
    %1624 = vmatpush.bf16.msra.mxu0 %v1069
    %1625 = vmatpush.bf16.msra.mxu0 %v1063
    %1626 = vmatmul.bf16.gmra.mxu0 %v1512
    %v1627 = vpop.f32.mrf.mxu0
    %v1628 = vadd.f32 0.0, %v1627
    %v1629 = vpop.f32.mrf.mxu0
    %1630 = vdwg.mxu0
    %1631 = vmatpush.bf16.msra.mxu0 %v1153
    %1632 = vmatpush.bf16.msra.mxu0 %v1147
    %1633 = vmatpush.bf16.msra.mxu0 %v1141
    %1634 = vmatpush.bf16.msra.mxu0 %v1135
    %1635 = vmatpush.bf16.msra.mxu0 %v1129
    %1636 = vmatpush.bf16.msra.mxu0 %v1123
    %1637 = vmatpush.bf16.msra.mxu0 %v1117
    %1638 = vmatpush.bf16.msra.mxu0 %v1111
    %1639 = vmatmul.bf16.gmra.mxu0 %v1513
    %v1640 = vpop.f32.mrf.mxu0
    %v1641 = vadd.f32 %v1628, %v1640
    %v1642 = vpop.f32.mrf.mxu0
    %1643 = vdwg.mxu0
    %1644 = vmatpush.bf16.msra.mxu0 %v1106
    %1645 = vmatpush.bf16.msra.mxu0 %v1100
    %1646 = vmatpush.bf16.msra.mxu0 %v1094
    %1647 = vmatpush.bf16.msra.mxu0 %v1088
    %1648 = vmatpush.bf16.msra.mxu0 %v1082
    %1649 = vmatpush.bf16.msra.mxu0 %v1076
    %1650 = vmatpush.bf16.msra.mxu0 %v1070
    %1651 = vmatpush.bf16.msra.mxu0 %v1064
    %1652 = vmatmul.bf16.gmra.mxu0 %v1512
    %v1653 = vpop.f32.mrf.mxu0
    %v1654 = vadd.f32 0.0, %v1653
    %v1655 = vpop.f32.mrf.mxu0
    %1656 = vdwg.mxu0
    %1657 = vmatpush.bf16.msra.mxu0 %v1154
    %1658 = vmatpush.bf16.msra.mxu0 %v1148
    %1659 = vmatpush.bf16.msra.mxu0 %v1142
    %1660 = vmatpush.bf16.msra.mxu0 %v1136
    %1661 = vmatpush.bf16.msra.mxu0 %v1130
    %1662 = vmatpush.bf16.msra.mxu0 %v1124
    %1663 = vmatpush.bf16.msra.mxu0 %v1118
    %1664 = vmatpush.bf16.msra.mxu0 %v1112
    %1665 = vmatmul.bf16.gmra.mxu0 %v1513
    %v1666 = vpop.f32.mrf.mxu0
    %v1667 = vadd.f32 %v1654, %v1666
    %v1668 = vpop.f32.mrf.mxu0
    %1669 = vdwg.mxu0
    %v1670 = vadd.f32 %v1506, %v1537
    %v1671 = vadd.f32 %v1509, %v1563
    %v1672 = vadd.f32 %v1507, %v1589
    %v1673 = vadd.f32 %v1510, %v1615
    %v1674 = vxor.u32 %v1670, 2147483648
    %v1675 = vxor.u32 %v1671, 2147483648
    %v1676 = vxor.u32 %v1672, 2147483648
    %v1677 = vxor.u32 %v1673, 2147483648
    %v1678 = vmul.f32 %v1674, 1.442695
    %v1679 = vpow.pop %v1678
    %v1680 = vmul.f32 %v1675, 1.442695
    %v1681 = vpow.pop %v1680
    %v1682 = vmul.f32 %v1676, 1.442695
    %v1683 = vpow.pop %v1682
    %v1684 = vmul.f32 %v1677, 1.442695
    %v1685 = vpow.pop %v1684
    %v1686 = vadd.f32 %v1679, 1.0
    %v1687 = vadd.f32 %v1681, 1.0
    %v1688 = vadd.f32 %v1683, 1.0
    %v1689 = vadd.f32 %v1685, 1.0
    %v1690 = vrcp.pop %v1686
    %v1691 = vmul.f32 %v1686, %v1690
    %v1692 = vsub.f32 1.0, %v1691
    %v1693 = vmul.f32 %v1690, %v1692
    %v1694 = vadd.f32 %v1690, %v1693
    %vm1695 = vweird.f32 %v1686
    %vm1696 = vweird.f32 %v1690
    %vm1697 = vmor %vm1695, %vm1696
    %v1698 = vsel %vm1697, %v1690, %v1694
    %v1699 = vand.u32 2147483647, %v1686
    %vm1700 = vcmp.eq.f32.partialorder %v1699, 8.507059e+37
    %v1701 = vand.u32 %v1686, 2147483648
    %v1702 = vor.u32 1.1754944e-38, %v1701
    %v1703 = vsel %vm1700, %v1702, %v1698
    %v1704 = vmul.f32 1.0, %v1703
    %v1705 = vrcp.pop %v1687
    %v1706 = vmul.f32 %v1687, %v1705
    %v1707 = vsub.f32 1.0, %v1706
    %v1708 = vmul.f32 %v1705, %v1707
    %v1709 = vadd.f32 %v1705, %v1708
    %vm1710 = vweird.f32 %v1687
    %vm1711 = vweird.f32 %v1705
    %vm1712 = vmor %vm1710, %vm1711
    %v1713 = vsel %vm1712, %v1705, %v1709
    %v1714 = vand.u32 2147483647, %v1687
    %vm1715 = vcmp.eq.f32.partialorder %v1714, 8.507059e+37
    %v1716 = vand.u32 %v1687, 2147483648
    %v1717 = vor.u32 1.1754944e-38, %v1716
    %v1718 = vsel %vm1715, %v1717, %v1713
    %v1719 = vmul.f32 1.0, %v1718
    %v1720 = vrcp.pop %v1688
    %v1721 = vmul.f32 %v1688, %v1720
    %v1722 = vsub.f32 1.0, %v1721
    %v1723 = vmul.f32 %v1720, %v1722
    %v1724 = vadd.f32 %v1720, %v1723
    %vm1725 = vweird.f32 %v1688
    %vm1726 = vweird.f32 %v1720
    %vm1727 = vmor %vm1725, %vm1726
    %v1728 = vsel %vm1727, %v1720, %v1724
    %v1729 = vand.u32 2147483647, %v1688
    %vm1730 = vcmp.eq.f32.partialorder %v1729, 8.507059e+37
    %v1731 = vand.u32 %v1688, 2147483648
    %v1732 = vor.u32 1.1754944e-38, %v1731
    %v1733 = vsel %vm1730, %v1732, %v1728
    %v1734 = vmul.f32 1.0, %v1733
    %v1735 = vrcp.pop %v1689
    %v1736 = vmul.f32 %v1689, %v1735
    %v1737 = vsub.f32 1.0, %v1736
    %v1738 = vmul.f32 %v1735, %v1737
    %v1739 = vadd.f32 %v1735, %v1738
    %vm1740 = vweird.f32 %v1689
    %vm1741 = vweird.f32 %v1735
    %vm1742 = vmor %vm1740, %vm1741
    %v1743 = vsel %vm1742, %v1735, %v1739
    %v1744 = vand.u32 2147483647, %v1689
    %vm1745 = vcmp.eq.f32.partialorder %v1744, 8.507059e+37
    %v1746 = vand.u32 %v1689, 2147483648
    %v1747 = vor.u32 1.1754944e-38, %v1746
    %v1748 = vsel %vm1745, %v1747, %v1743
    %v1749 = vmul.f32 1.0, %v1748
    %v1750 = vadd.f32 %v1641, %v761
    %v1751 = vadd.f32 %v1667, %v762
    %v1752 = vmul.f32 %v1704, %v1750
    %v1753 = vmul.f32 %v1719, %v1751
    %v1754 = vadd.f32 %v1508, %v1752
    %v1755 = vadd.f32 %v1511, %v1753
    %v1756 = vtanh.pop %v1754
    %v1757 = vtanh.pop %v1755
    %v1758 = vsub.f32 1.0, %v1734
    %v1759 = vsub.f32 1.0, %v1749
    %v1760 = vmul.f32 %v1758, %v1756
    %v1761 = vmul.f32 %v1759, %v1757
    %v1762 = vmul.f32 %v1734, %v1501
    %v1763 = vmul.f32 %v1749, %v1502
    %v1764 = vadd.f32 %v1760, %v1762
    %v1765 = vadd.f32 %v1761, %v1763
    %s1766 = scalar_lea.vmem [#allocation12], 16
    %1767 = vst [vmem:[%s1766] sm:$0xff] %v1764
    %s1768 = scalar_lea.vmem [#allocation12], 96
    %1769 = vst [vmem:[%s1768 + $0x8] sm:$0xff] %v1765
    %v1770 = vld [vmem:[#allocation2 + $0x60] sm:$0xff]
    %v1771 = vld [vmem:[#allocation2 + $0x70] sm:$0xff]
    %v1772 = vld [vmem:[#allocation2 + $0x80] sm:$0xff]
    %v1773 = vld [vmem:[#allocation2 + $0xf8] sm:$0xff]
    %v1774 = vld [vmem:[#allocation2 + $0x108] sm:$0xff]
    %v1775 = vld [vmem:[#allocation2 + $0x118] sm:$0xff]
    %v1776 = vpack.c.bf16 %v1764, %v1764
    %v1777 = vpack.c.bf16 %v1765, %v1765
    %1778 = vmatpush.bf16.msra.mxu0 %v1101
    %1779 = vmatpush.bf16.msra.mxu0 %v1095
    %1780 = vmatpush.bf16.msra.mxu0 %v1089
    %1781 = vmatpush.bf16.msra.mxu0 %v1083
    %1782 = vmatpush.bf16.msra.mxu0 %v1077
    %1783 = vmatpush.bf16.msra.mxu0 %v1071
    %1784 = vmatpush.bf16.msra.mxu0 %v1065
    %1785 = vmatpush.bf16.msra.mxu0 %v1059
    %1786 = vmatmul.bf16.gmra.mxu0 %v1776
    %v1787 = vpop.f32.mrf.mxu0
    %v1788 = vadd.f32 0.0, %v1787
    %v1789 = vpop.f32.mrf.mxu0
    %1790 = vdwg.mxu0
    %1791 = vmatpush.bf16.msra.mxu0 %v1149
    %1792 = vmatpush.bf16.msra.mxu0 %v1143
    %1793 = vmatpush.bf16.msra.mxu0 %v1137
    %1794 = vmatpush.bf16.msra.mxu0 %v1131
    %1795 = vmatpush.bf16.msra.mxu0 %v1125
    %1796 = vmatpush.bf16.msra.mxu0 %v1119
    %1797 = vmatpush.bf16.msra.mxu0 %v1113
    %1798 = vmatpush.bf16.msra.mxu0 %v1107
    %1799 = vmatmul.bf16.gmra.mxu0 %v1777
    %v1800 = vpop.f32.mrf.mxu0
    %v1801 = vadd.f32 %v1788, %v1800
    %v1802 = vpop.f32.mrf.mxu0
    %1803 = vdwg.mxu0
    %1804 = vmatpush.bf16.msra.mxu0 %v1102
    %1805 = vmatpush.bf16.msra.mxu0 %v1096
    %1806 = vmatpush.bf16.msra.mxu0 %v1090
    %1807 = vmatpush.bf16.msra.mxu0 %v1084
    %1808 = vmatpush.bf16.msra.mxu0 %v1078
    %1809 = vmatpush.bf16.msra.mxu0 %v1072
    %1810 = vmatpush.bf16.msra.mxu0 %v1066
    %1811 = vmatpush.bf16.msra.mxu0 %v1060
    %1812 = vmatmul.bf16.gmra.mxu0 %v1776
    %v1813 = vpop.f32.mrf.mxu0
    %v1814 = vadd.f32 0.0, %v1813
    %v1815 = vpop.f32.mrf.mxu0
    %1816 = vdwg.mxu0
    %1817 = vmatpush.bf16.msra.mxu0 %v1150
    %1818 = vmatpush.bf16.msra.mxu0 %v1144
    %1819 = vmatpush.bf16.msra.mxu0 %v1138
    %1820 = vmatpush.bf16.msra.mxu0 %v1132
    %1821 = vmatpush.bf16.msra.mxu0 %v1126
    %1822 = vmatpush.bf16.msra.mxu0 %v1120
    %1823 = vmatpush.bf16.msra.mxu0 %v1114
    %1824 = vmatpush.bf16.msra.mxu0 %v1108
    %1825 = vmatmul.bf16.gmra.mxu0 %v1777
    %v1826 = vpop.f32.mrf.mxu0
    %v1827 = vadd.f32 %v1814, %v1826
    %v1828 = vpop.f32.mrf.mxu0
    %1829 = vdwg.mxu0
    %1830 = vmatpush.bf16.msra.mxu0 %v1103
    %1831 = vmatpush.bf16.msra.mxu0 %v1097
    %1832 = vmatpush.bf16.msra.mxu0 %v1091
    %1833 = vmatpush.bf16.msra.mxu0 %v1085
    %1834 = vmatpush.bf16.msra.mxu0 %v1079
    %1835 = vmatpush.bf16.msra.mxu0 %v1073
    %1836 = vmatpush.bf16.msra.mxu0 %v1067
    %1837 = vmatpush.bf16.msra.mxu0 %v1061
    %1838 = vmatmul.bf16.gmra.mxu0 %v1776
    %v1839 = vpop.f32.mrf.mxu0
    %v1840 = vadd.f32 0.0, %v1839
    %v1841 = vpop.f32.mrf.mxu0
    %1842 = vdwg.mxu0
    %1843 = vmatpush.bf16.msra.mxu0 %v1151
    %1844 = vmatpush.bf16.msra.mxu0 %v1145
    %1845 = vmatpush.bf16.msra.mxu0 %v1139
    %1846 = vmatpush.bf16.msra.mxu0 %v1133
    %1847 = vmatpush.bf16.msra.mxu0 %v1127
    %1848 = vmatpush.bf16.msra.mxu0 %v1121
    %1849 = vmatpush.bf16.msra.mxu0 %v1115
    %1850 = vmatpush.bf16.msra.mxu0 %v1109
    %1851 = vmatmul.bf16.gmra.mxu0 %v1777
    %v1852 = vpop.f32.mrf.mxu0
    %v1853 = vadd.f32 %v1840, %v1852
    %v1854 = vpop.f32.mrf.mxu0
    %1855 = vdwg.mxu0
    %1856 = vmatpush.bf16.msra.mxu0 %v1104
    %1857 = vmatpush.bf16.msra.mxu0 %v1098
    %1858 = vmatpush.bf16.msra.mxu0 %v1092
    %1859 = vmatpush.bf16.msra.mxu0 %v1086
    %1860 = vmatpush.bf16.msra.mxu0 %v1080
    %1861 = vmatpush.bf16.msra.mxu0 %v1074
    %1862 = vmatpush.bf16.msra.mxu0 %v1068
    %1863 = vmatpush.bf16.msra.mxu0 %v1062
    %1864 = vmatmul.bf16.gmra.mxu0 %v1776
    %v1865 = vpop.f32.mrf.mxu0
    %v1866 = vadd.f32 0.0, %v1865
    %v1867 = vpop.f32.mrf.mxu0
    %1868 = vdwg.mxu0
    %1869 = vmatpush.bf16.msra.mxu0 %v1152
    %1870 = vmatpush.bf16.msra.mxu0 %v1146
    %1871 = vmatpush.bf16.msra.mxu0 %v1140
    %1872 = vmatpush.bf16.msra.mxu0 %v1134
    %1873 = vmatpush.bf16.msra.mxu0 %v1128
    %1874 = vmatpush.bf16.msra.mxu0 %v1122
    %1875 = vmatpush.bf16.msra.mxu0 %v1116
    %1876 = vmatpush.bf16.msra.mxu0 %v1110
    %1877 = vmatmul.bf16.gmra.mxu0 %v1777
    %v1878 = vpop.f32.mrf.mxu0
    %v1879 = vadd.f32 %v1866, %v1878
    %v1880 = vpop.f32.mrf.mxu0
    %1881 = vdwg.mxu0
    %1882 = vmatpush.bf16.msra.mxu0 %v1105
    %1883 = vmatpush.bf16.msra.mxu0 %v1099
    %1884 = vmatpush.bf16.msra.mxu0 %v1093
    %1885 = vmatpush.bf16.msra.mxu0 %v1087
    %1886 = vmatpush.bf16.msra.mxu0 %v1081
    %1887 = vmatpush.bf16.msra.mxu0 %v1075
    %1888 = vmatpush.bf16.msra.mxu0 %v1069
    %1889 = vmatpush.bf16.msra.mxu0 %v1063
    %1890 = vmatmul.bf16.gmra.mxu0 %v1776
    %v1891 = vpop.f32.mrf.mxu0
    %v1892 = vadd.f32 0.0, %v1891
    %v1893 = vpop.f32.mrf.mxu0
    %1894 = vdwg.mxu0
    %1895 = vmatpush.bf16.msra.mxu0 %v1153
    %1896 = vmatpush.bf16.msra.mxu0 %v1147
    %1897 = vmatpush.bf16.msra.mxu0 %v1141
    %1898 = vmatpush.bf16.msra.mxu0 %v1135
    %1899 = vmatpush.bf16.msra.mxu0 %v1129
    %1900 = vmatpush.bf16.msra.mxu0 %v1123
    %1901 = vmatpush.bf16.msra.mxu0 %v1117
    %1902 = vmatpush.bf16.msra.mxu0 %v1111
    %1903 = vmatmul.bf16.gmra.mxu0 %v1777
    %v1904 = vpop.f32.mrf.mxu0
    %v1905 = vadd.f32 %v1892, %v1904
    %v1906 = vpop.f32.mrf.mxu0
    %1907 = vdwg.mxu0
    %1908 = vmatpush.bf16.msra.mxu0 %v1106
    %1909 = vmatpush.bf16.msra.mxu0 %v1100
    %1910 = vmatpush.bf16.msra.mxu0 %v1094
    %1911 = vmatpush.bf16.msra.mxu0 %v1088
    %1912 = vmatpush.bf16.msra.mxu0 %v1082
    %1913 = vmatpush.bf16.msra.mxu0 %v1076
    %1914 = vmatpush.bf16.msra.mxu0 %v1070
    %1915 = vmatpush.bf16.msra.mxu0 %v1064
    %1916 = vmatmul.bf16.gmra.mxu0 %v1776
    %v1917 = vpop.f32.mrf.mxu0
    %v1918 = vadd.f32 0.0, %v1917
    %v1919 = vpop.f32.mrf.mxu0
    %1920 = vdwg.mxu0
    %1921 = vmatpush.bf16.msra.mxu0 %v1154
    %1922 = vmatpush.bf16.msra.mxu0 %v1148
    %1923 = vmatpush.bf16.msra.mxu0 %v1142
    %1924 = vmatpush.bf16.msra.mxu0 %v1136
    %1925 = vmatpush.bf16.msra.mxu0 %v1130
    %1926 = vmatpush.bf16.msra.mxu0 %v1124
    %1927 = vmatpush.bf16.msra.mxu0 %v1118
    %1928 = vmatpush.bf16.msra.mxu0 %v1112
    %1929 = vmatmul.bf16.gmra.mxu0 %v1777
    %v1930 = vpop.f32.mrf.mxu0
    %v1931 = vadd.f32 %v1918, %v1930
    %v1932 = vpop.f32.mrf.mxu0
    %1933 = vdwg.mxu0
    %v1934 = vadd.f32 %v1770, %v1801
    %v1935 = vadd.f32 %v1773, %v1827
    %v1936 = vadd.f32 %v1771, %v1853
    %v1937 = vadd.f32 %v1774, %v1879
    %v1938 = vxor.u32 %v1934, 2147483648
    %v1939 = vxor.u32 %v1935, 2147483648
    %v1940 = vxor.u32 %v1936, 2147483648
    %v1941 = vxor.u32 %v1937, 2147483648
    %v1942 = vmul.f32 %v1938, 1.442695
    %v1943 = vpow.pop %v1942
    %v1944 = vmul.f32 %v1939, 1.442695
    %v1945 = vpow.pop %v1944
    %v1946 = vmul.f32 %v1940, 1.442695
    %v1947 = vpow.pop %v1946
    %v1948 = vmul.f32 %v1941, 1.442695
    %v1949 = vpow.pop %v1948
    %v1950 = vadd.f32 %v1943, 1.0
    %v1951 = vadd.f32 %v1945, 1.0
    %v1952 = vadd.f32 %v1947, 1.0
    %v1953 = vadd.f32 %v1949, 1.0
    %v1954 = vrcp.pop %v1950
    %v1955 = vmul.f32 %v1950, %v1954
    %v1956 = vsub.f32 1.0, %v1955
    %v1957 = vmul.f32 %v1954, %v1956
    %v1958 = vadd.f32 %v1954, %v1957
    %vm1959 = vweird.f32 %v1950
    %vm1960 = vweird.f32 %v1954
    %vm1961 = vmor %vm1959, %vm1960
    %v1962 = vsel %vm1961, %v1954, %v1958
    %v1963 = vand.u32 2147483647, %v1950
    %vm1964 = vcmp.eq.f32.partialorder %v1963, 8.507059e+37
    %v1965 = vand.u32 %v1950, 2147483648
    %v1966 = vor.u32 1.1754944e-38, %v1965
    %v1967 = vsel %vm1964, %v1966, %v1962
    %v1968 = vmul.f32 1.0, %v1967
    %v1969 = vrcp.pop %v1951
    %v1970 = vmul.f32 %v1951, %v1969
    %v1971 = vsub.f32 1.0, %v1970
    %v1972 = vmul.f32 %v1969, %v1971
    %v1973 = vadd.f32 %v1969, %v1972
    %vm1974 = vweird.f32 %v1951
    %vm1975 = vweird.f32 %v1969
    %vm1976 = vmor %vm1974, %vm1975
    %v1977 = vsel %vm1976, %v1969, %v1973
    %v1978 = vand.u32 2147483647, %v1951
    %vm1979 = vcmp.eq.f32.partialorder %v1978, 8.507059e+37
    %v1980 = vand.u32 %v1951, 2147483648
    %v1981 = vor.u32 1.1754944e-38, %v1980
    %v1982 = vsel %vm1979, %v1981, %v1977
    %v1983 = vmul.f32 1.0, %v1982
    %v1984 = vrcp.pop %v1952
    %v1985 = vmul.f32 %v1952, %v1984
    %v1986 = vsub.f32 1.0, %v1985
    %v1987 = vmul.f32 %v1984, %v1986
    %v1988 = vadd.f32 %v1984, %v1987
    %vm1989 = vweird.f32 %v1952
    %vm1990 = vweird.f32 %v1984
    %vm1991 = vmor %vm1989, %vm1990
    %v1992 = vsel %vm1991, %v1984, %v1988
    %v1993 = vand.u32 2147483647, %v1952
    %vm1994 = vcmp.eq.f32.partialorder %v1993, 8.507059e+37
    %v1995 = vand.u32 %v1952, 2147483648
    %v1996 = vor.u32 1.1754944e-38, %v1995
    %v1997 = vsel %vm1994, %v1996, %v1992
    %v1998 = vmul.f32 1.0, %v1997
    %v1999 = vrcp.pop %v1953
    %v2000 = vmul.f32 %v1953, %v1999
    %v2001 = vsub.f32 1.0, %v2000
    %v2002 = vmul.f32 %v1999, %v2001
    %v2003 = vadd.f32 %v1999, %v2002
    %vm2004 = vweird.f32 %v1953
    %vm2005 = vweird.f32 %v1999
    %vm2006 = vmor %vm2004, %vm2005
    %v2007 = vsel %vm2006, %v1999, %v2003
    %v2008 = vand.u32 2147483647, %v1953
    %vm2009 = vcmp.eq.f32.partialorder %v2008, 8.507059e+37
    %v2010 = vand.u32 %v1953, 2147483648
    %v2011 = vor.u32 1.1754944e-38, %v2010
    %v2012 = vsel %vm2009, %v2011, %v2007
    %v2013 = vmul.f32 1.0, %v2012
    %v2014 = vadd.f32 %v1905, %v761
    %v2015 = vadd.f32 %v1931, %v762
    %v2016 = vmul.f32 %v1968, %v2014
    %v2017 = vmul.f32 %v1983, %v2015
    %v2018 = vadd.f32 %v1772, %v2016
    %v2019 = vadd.f32 %v1775, %v2017
    %v2020 = vtanh.pop %v2018
    %v2021 = vtanh.pop %v2019
    %v2022 = vsub.f32 1.0, %v1998
    %v2023 = vsub.f32 1.0, %v2013
    %v2024 = vmul.f32 %v2022, %v2020
    %v2025 = vmul.f32 %v2023, %v2021
    %v2026 = vmul.f32 %v1998, %v1764
    %v2027 = vmul.f32 %v2013, %v1765
    %v2028 = vadd.f32 %v2024, %v2026
    %v2029 = vadd.f32 %v2025, %v2027
    %s2030 = scalar_lea.vmem [#allocation12], 32
    %2031 = vst [vmem:[%s2030] sm:$0xff] %v2028
    %s2032 = scalar_lea.vmem [#allocation12], 80
    %2033 = vst [vmem:[%s2032 + $0x8] sm:$0xff] %v2029
    %v2034 = vld [vmem:[#allocation2 + $0x90] sm:$0xff]
    %v2035 = vld [vmem:[#allocation2 + $0xa0] sm:$0xff]
    %v2036 = vld [vmem:[#allocation2 + $0xb0] sm:$0xff]
    %v2037 = vld [vmem:[#allocation2 + $0xc8] sm:$0xff]
    %v2038 = vld [vmem:[#allocation2 + $0xd8] sm:$0xff]
    %v2039 = vld [vmem:[#allocation2 + $0xe8] sm:$0xff]
    %v2040 = vpack.c.bf16 %v2028, %v2028
    %v2041 = vpack.c.bf16 %v2029, %v2029
    %2042 = vmatpush.bf16.msra.mxu0 %v1101
    %2043 = vmatpush.bf16.msra.mxu0 %v1095
    %2044 = vmatpush.bf16.msra.mxu0 %v1089
    %2045 = vmatpush.bf16.msra.mxu0 %v1083
    %2046 = vmatpush.bf16.msra.mxu0 %v1077
    %2047 = vmatpush.bf16.msra.mxu0 %v1071
    %2048 = vmatpush.bf16.msra.mxu0 %v1065
    %2049 = vmatpush.bf16.msra.mxu0 %v1059
    %2050 = vmatmul.bf16.gmra.mxu0 %v2040
    %v2051 = vpop.f32.mrf.mxu0
    %v2052 = vadd.f32 0.0, %v2051
    %v2053 = vpop.f32.mrf.mxu0
    %2054 = vdwg.mxu0
    %2055 = vmatpush.bf16.msra.mxu0 %v1149
    %2056 = vmatpush.bf16.msra.mxu0 %v1143
    %2057 = vmatpush.bf16.msra.mxu0 %v1137
    %2058 = vmatpush.bf16.msra.mxu0 %v1131
    %2059 = vmatpush.bf16.msra.mxu0 %v1125
    %2060 = vmatpush.bf16.msra.mxu0 %v1119
    %2061 = vmatpush.bf16.msra.mxu0 %v1113
    %2062 = vmatpush.bf16.msra.mxu0 %v1107
    %2063 = vmatmul.bf16.gmra.mxu0 %v2041
    %v2064 = vpop.f32.mrf.mxu0
    %v2065 = vadd.f32 %v2052, %v2064
    %v2066 = vpop.f32.mrf.mxu0
    %2067 = vdwg.mxu0
    %2068 = vmatpush.bf16.msra.mxu0 %v1102
    %2069 = vmatpush.bf16.msra.mxu0 %v1096
    %2070 = vmatpush.bf16.msra.mxu0 %v1090
    %2071 = vmatpush.bf16.msra.mxu0 %v1084
    %2072 = vmatpush.bf16.msra.mxu0 %v1078
    %2073 = vmatpush.bf16.msra.mxu0 %v1072
    %2074 = vmatpush.bf16.msra.mxu0 %v1066
    %2075 = vmatpush.bf16.msra.mxu0 %v1060
    %2076 = vmatmul.bf16.gmra.mxu0 %v2040
    %v2077 = vpop.f32.mrf.mxu0
    %v2078 = vadd.f32 0.0, %v2077
    %v2079 = vpop.f32.mrf.mxu0
    %2080 = vdwg.mxu0
    %2081 = vmatpush.bf16.msra.mxu0 %v1150
    %2082 = vmatpush.bf16.msra.mxu0 %v1144
    %2083 = vmatpush.bf16.msra.mxu0 %v1138
    %2084 = vmatpush.bf16.msra.mxu0 %v1132
    %2085 = vmatpush.bf16.msra.mxu0 %v1126
    %2086 = vmatpush.bf16.msra.mxu0 %v1120
    %2087 = vmatpush.bf16.msra.mxu0 %v1114
    %2088 = vmatpush.bf16.msra.mxu0 %v1108
    %2089 = vmatmul.bf16.gmra.mxu0 %v2041
    %v2090 = vpop.f32.mrf.mxu0
    %v2091 = vadd.f32 %v2078, %v2090
    %v2092 = vpop.f32.mrf.mxu0
    %2093 = vdwg.mxu0
    %2094 = vmatpush.bf16.msra.mxu0 %v1103
    %2095 = vmatpush.bf16.msra.mxu0 %v1097
    %2096 = vmatpush.bf16.msra.mxu0 %v1091
    %2097 = vmatpush.bf16.msra.mxu0 %v1085
    %2098 = vmatpush.bf16.msra.mxu0 %v1079
    %2099 = vmatpush.bf16.msra.mxu0 %v1073
    %2100 = vmatpush.bf16.msra.mxu0 %v1067
    %2101 = vmatpush.bf16.msra.mxu0 %v1061
    %2102 = vmatmul.bf16.gmra.mxu0 %v2040
    %v2103 = vpop.f32.mrf.mxu0
    %v2104 = vadd.f32 0.0, %v2103
    %v2105 = vpop.f32.mrf.mxu0
    %2106 = vdwg.mxu0
    %2107 = vmatpush.bf16.msra.mxu0 %v1151
    %2108 = vmatpush.bf16.msra.mxu0 %v1145
    %2109 = vmatpush.bf16.msra.mxu0 %v1139
    %2110 = vmatpush.bf16.msra.mxu0 %v1133
    %2111 = vmatpush.bf16.msra.mxu0 %v1127
    %2112 = vmatpush.bf16.msra.mxu0 %v1121
    %2113 = vmatpush.bf16.msra.mxu0 %v1115
    %2114 = vmatpush.bf16.msra.mxu0 %v1109
    %2115 = vmatmul.bf16.gmra.mxu0 %v2041
    %v2116 = vpop.f32.mrf.mxu0
    %v2117 = vadd.f32 %v2104, %v2116
    %v2118 = vpop.f32.mrf.mxu0
    %2119 = vdwg.mxu0
    %2120 = vmatpush.bf16.msra.mxu0 %v1104
    %2121 = vmatpush.bf16.msra.mxu0 %v1098
    %2122 = vmatpush.bf16.msra.mxu0 %v1092
    %2123 = vmatpush.bf16.msra.mxu0 %v1086
    %2124 = vmatpush.bf16.msra.mxu0 %v1080
    %2125 = vmatpush.bf16.msra.mxu0 %v1074
    %2126 = vmatpush.bf16.msra.mxu0 %v1068
    %2127 = vmatpush.bf16.msra.mxu0 %v1062
    %2128 = vmatmul.bf16.gmra.mxu0 %v2040
    %v2129 = vpop.f32.mrf.mxu0
    %v2130 = vadd.f32 0.0, %v2129
    %v2131 = vpop.f32.mrf.mxu0
    %2132 = vdwg.mxu0
    %2133 = vmatpush.bf16.msra.mxu0 %v1152
    %2134 = vmatpush.bf16.msra.mxu0 %v1146
    %2135 = vmatpush.bf16.msra.mxu0 %v1140
    %2136 = vmatpush.bf16.msra.mxu0 %v1134
    %2137 = vmatpush.bf16.msra.mxu0 %v1128
    %2138 = vmatpush.bf16.msra.mxu0 %v1122
    %2139 = vmatpush.bf16.msra.mxu0 %v1116
    %2140 = vmatpush.bf16.msra.mxu0 %v1110
    %2141 = vmatmul.bf16.gmra.mxu0 %v2041
    %v2142 = vpop.f32.mrf.mxu0
    %v2143 = vadd.f32 %v2130, %v2142
    %v2144 = vpop.f32.mrf.mxu0
    %2145 = vdwg.mxu0
    %2146 = vmatpush.bf16.msra.mxu0 %v1105
    %2147 = vmatpush.bf16.msra.mxu0 %v1099
    %2148 = vmatpush.bf16.msra.mxu0 %v1093
    %2149 = vmatpush.bf16.msra.mxu0 %v1087
    %2150 = vmatpush.bf16.msra.mxu0 %v1081
    %2151 = vmatpush.bf16.msra.mxu0 %v1075
    %2152 = vmatpush.bf16.msra.mxu0 %v1069
    %2153 = vmatpush.bf16.msra.mxu0 %v1063
    %2154 = vmatmul.bf16.gmra.mxu0 %v2040
    %v2155 = vpop.f32.mrf.mxu0
    %v2156 = vadd.f32 0.0, %v2155
    %v2157 = vpop.f32.mrf.mxu0
    %2158 = vdwg.mxu0
    %2159 = vmatpush.bf16.msra.mxu0 %v1153
    %2160 = vmatpush.bf16.msra.mxu0 %v1147
    %2161 = vmatpush.bf16.msra.mxu0 %v1141
    %2162 = vmatpush.bf16.msra.mxu0 %v1135
    %2163 = vmatpush.bf16.msra.mxu0 %v1129
    %2164 = vmatpush.bf16.msra.mxu0 %v1123
    %2165 = vmatpush.bf16.msra.mxu0 %v1117
    %2166 = vmatpush.bf16.msra.mxu0 %v1111
    %2167 = vmatmul.bf16.gmra.mxu0 %v2041
    %v2168 = vpop.f32.mrf.mxu0
    %v2169 = vadd.f32 %v2156, %v2168
    %v2170 = vpop.f32.mrf.mxu0
    %2171 = vdwg.mxu0
    %2172 = vmatpush.bf16.msra.mxu0 %v1106
    %2173 = vmatpush.bf16.msra.mxu0 %v1100
    %2174 = vmatpush.bf16.msra.mxu0 %v1094
    %2175 = vmatpush.bf16.msra.mxu0 %v1088
    %2176 = vmatpush.bf16.msra.mxu0 %v1082
    %2177 = vmatpush.bf16.msra.mxu0 %v1076
    %2178 = vmatpush.bf16.msra.mxu0 %v1070
    %2179 = vmatpush.bf16.msra.mxu0 %v1064
    %2180 = vmatmul.bf16.gmra.mxu0 %v2040
    %v2181 = vpop.f32.mrf.mxu0
    %v2182 = vadd.f32 0.0, %v2181
    %v2183 = vpop.f32.mrf.mxu0
    %2184 = vdwg.mxu0
    %2185 = vmatpush.bf16.msra.mxu0 %v1154
    %2186 = vmatpush.bf16.msra.mxu0 %v1148
    %2187 = vmatpush.bf16.msra.mxu0 %v1142
    %2188 = vmatpush.bf16.msra.mxu0 %v1136
    %2189 = vmatpush.bf16.msra.mxu0 %v1130
    %2190 = vmatpush.bf16.msra.mxu0 %v1124
    %2191 = vmatpush.bf16.msra.mxu0 %v1118
    %2192 = vmatpush.bf16.msra.mxu0 %v1112
    %2193 = vmatmul.bf16.gmra.mxu0 %v2041
    %v2194 = vpop.f32.mrf.mxu0
    %v2195 = vadd.f32 %v2182, %v2194
    %v2196 = vpop.f32.mrf.mxu0
    %2197 = vdwg.mxu0
    %v2198 = vadd.f32 %v2034, %v2065
    %v2199 = vadd.f32 %v2037, %v2091
    %v2200 = vadd.f32 %v2035, %v2117
    %v2201 = vadd.f32 %v2038, %v2143
    %v2202 = vxor.u32 %v2198, 2147483648
    %v2203 = vxor.u32 %v2199, 2147483648
    %v2204 = vxor.u32 %v2200, 2147483648
    %v2205 = vxor.u32 %v2201, 2147483648
    %v2206 = vmul.f32 %v2202, 1.442695
    %v2207 = vpow.pop %v2206
    %v2208 = vmul.f32 %v2203, 1.442695
    %v2209 = vpow.pop %v2208
    %v2210 = vmul.f32 %v2204, 1.442695
    %v2211 = vpow.pop %v2210
    %v2212 = vmul.f32 %v2205, 1.442695
    %v2213 = vpow.pop %v2212
    %v2214 = vadd.f32 %v2207, 1.0
    %v2215 = vadd.f32 %v2209, 1.0
    %v2216 = vadd.f32 %v2211, 1.0
    %v2217 = vadd.f32 %v2213, 1.0
    %v2218 = vrcp.pop %v2214
    %v2219 = vmul.f32 %v2214, %v2218
    %v2220 = vsub.f32 1.0, %v2219
    %v2221 = vmul.f32 %v2218, %v2220
    %v2222 = vadd.f32 %v2218, %v2221
    %vm2223 = vweird.f32 %v2214
    %vm2224 = vweird.f32 %v2218
    %vm2225 = vmor %vm2223, %vm2224
    %v2226 = vsel %vm2225, %v2218, %v2222
    %v2227 = vand.u32 2147483647, %v2214
    %vm2228 = vcmp.eq.f32.partialorder %v2227, 8.507059e+37
    %v2229 = vand.u32 %v2214, 2147483648
    %v2230 = vor.u32 1.1754944e-38, %v2229
    %v2231 = vsel %vm2228, %v2230, %v2226
    %v2232 = vmul.f32 1.0, %v2231
    %v2233 = vrcp.pop %v2215
    %v2234 = vmul.f32 %v2215, %v2233
    %v2235 = vsub.f32 1.0, %v2234
    %v2236 = vmul.f32 %v2233, %v2235
    %v2237 = vadd.f32 %v2233, %v2236
    %vm2238 = vweird.f32 %v2215
    %vm2239 = vweird.f32 %v2233
    %vm2240 = vmor %vm2238, %vm2239
    %v2241 = vsel %vm2240, %v2233, %v2237
    %v2242 = vand.u32 2147483647, %v2215
    %vm2243 = vcmp.eq.f32.partialorder %v2242, 8.507059e+37
    %v2244 = vand.u32 %v2215, 2147483648
    %v2245 = vor.u32 1.1754944e-38, %v2244
    %v2246 = vsel %vm2243, %v2245, %v2241
    %v2247 = vmul.f32 1.0, %v2246
    %v2248 = vrcp.pop %v2216
    %v2249 = vmul.f32 %v2216, %v2248
    %v2250 = vsub.f32 1.0, %v2249
    %v2251 = vmul.f32 %v2248, %v2250
    %v2252 = vadd.f32 %v2248, %v2251
    %vm2253 = vweird.f32 %v2216
    %vm2254 = vweird.f32 %v2248
    %vm2255 = vmor %vm2253, %vm2254
    %v2256 = vsel %vm2255, %v2248, %v2252
    %v2257 = vand.u32 2147483647, %v2216
    %vm2258 = vcmp.eq.f32.partialorder %v2257, 8.507059e+37
    %v2259 = vand.u32 %v2216, 2147483648
    %v2260 = vor.u32 1.1754944e-38, %v2259
    %v2261 = vsel %vm2258, %v2260, %v2256
    %v2262 = vmul.f32 1.0, %v2261
    %v2263 = vrcp.pop %v2217
    %v2264 = vmul.f32 %v2217, %v2263
    %v2265 = vsub.f32 1.0, %v2264
    %v2266 = vmul.f32 %v2263, %v2265
    %v2267 = vadd.f32 %v2263, %v2266
    %vm2268 = vweird.f32 %v2217
    %vm2269 = vweird.f32 %v2263
    %vm2270 = vmor %vm2268, %vm2269
    %v2271 = vsel %vm2270, %v2263, %v2267
    %v2272 = vand.u32 2147483647, %v2217
    %vm2273 = vcmp.eq.f32.partialorder %v2272, 8.507059e+37
    %v2274 = vand.u32 %v2217, 2147483648
    %v2275 = vor.u32 1.1754944e-38, %v2274
    %v2276 = vsel %vm2273, %v2275, %v2271
    %v2277 = vmul.f32 1.0, %v2276
    %v2278 = vadd.f32 %v2169, %v761
    %v2279 = vadd.f32 %v2195, %v762
    %v2280 = vmul.f32 %v2232, %v2278
    %v2281 = vmul.f32 %v2247, %v2279
    %v2282 = vadd.f32 %v2036, %v2280
    %v2283 = vadd.f32 %v2039, %v2281
    %v2284 = vtanh.pop %v2282
    %v2285 = vtanh.pop %v2283
    %v2286 = vsub.f32 1.0, %v2262
    %v2287 = vsub.f32 1.0, %v2277
    %v2288 = vmul.f32 %v2286, %v2284
    %v2289 = vmul.f32 %v2287, %v2285
    %v2290 = vmul.f32 %v2262, %v2028
    %v2291 = vmul.f32 %v2277, %v2029
    %v2292 = vadd.f32 %v2288, %v2290
    %v2293 = vadd.f32 %v2289, %v2291
    %s2294 = scalar_lea.vmem [#allocation12], 48
    %2295 = vst [vmem:[%s2294] sm:$0xff] %v2292
    %s2296 = scalar_lea.vmem [#allocation12], 64
    %2297 = vst [vmem:[%s2296 + $0x8] sm:$0xff] %v2293
    %v2298 = vld [vmem:[#allocation2 + $0xc0] sm:$0xff]
    %v2299 = vld [vmem:[#allocation2 + $0xd0] sm:$0xff]
    %v2300 = vld [vmem:[#allocation2 + $0xe0] sm:$0xff]
    %v2301 = vld [vmem:[#allocation2 + $0x98] sm:$0xff]
    %v2302 = vld [vmem:[#allocation2 + $0xa8] sm:$0xff]
    %v2303 = vld [vmem:[#allocation2 + $0xb8] sm:$0xff]
    %v2304 = vpack.c.bf16 %v2292, %v2292
    %v2305 = vpack.c.bf16 %v2293, %v2293
    %2306 = vmatpush.bf16.msra.mxu0 %v1101
    %2307 = vmatpush.bf16.msra.mxu0 %v1095
    %2308 = vmatpush.bf16.msra.mxu0 %v1089
    %2309 = vmatpush.bf16.msra.mxu0 %v1083
    %2310 = vmatpush.bf16.msra.mxu0 %v1077
    %2311 = vmatpush.bf16.msra.mxu0 %v1071
    %2312 = vmatpush.bf16.msra.mxu0 %v1065
    %2313 = vmatpush.bf16.msra.mxu0 %v1059
    %2314 = vmatmul.bf16.gmra.mxu0 %v2304
    %v2315 = vpop.f32.mrf.mxu0
    %v2316 = vadd.f32 0.0, %v2315
    %v2317 = vpop.f32.mrf.mxu0
    %2318 = vdwg.mxu0
    %2319 = vmatpush.bf16.msra.mxu0 %v1149
    %2320 = vmatpush.bf16.msra.mxu0 %v1143
    %2321 = vmatpush.bf16.msra.mxu0 %v1137
    %2322 = vmatpush.bf16.msra.mxu0 %v1131
    %2323 = vmatpush.bf16.msra.mxu0 %v1125
    %2324 = vmatpush.bf16.msra.mxu0 %v1119
    %2325 = vmatpush.bf16.msra.mxu0 %v1113
    %2326 = vmatpush.bf16.msra.mxu0 %v1107
    %2327 = vmatmul.bf16.gmra.mxu0 %v2305
    %v2328 = vpop.f32.mrf.mxu0
    %v2329 = vadd.f32 %v2316, %v2328
    %v2330 = vpop.f32.mrf.mxu0
    %2331 = vdwg.mxu0
    %2332 = vmatpush.bf16.msra.mxu0 %v1102
    %2333 = vmatpush.bf16.msra.mxu0 %v1096
    %2334 = vmatpush.bf16.msra.mxu0 %v1090
    %2335 = vmatpush.bf16.msra.mxu0 %v1084
    %2336 = vmatpush.bf16.msra.mxu0 %v1078
    %2337 = vmatpush.bf16.msra.mxu0 %v1072
    %2338 = vmatpush.bf16.msra.mxu0 %v1066
    %2339 = vmatpush.bf16.msra.mxu0 %v1060
    %2340 = vmatmul.bf16.gmra.mxu0 %v2304
    %v2341 = vpop.f32.mrf.mxu0
    %v2342 = vadd.f32 0.0, %v2341
    %v2343 = vpop.f32.mrf.mxu0
    %2344 = vdwg.mxu0
    %2345 = vmatpush.bf16.msra.mxu0 %v1150
    %2346 = vmatpush.bf16.msra.mxu0 %v1144
    %2347 = vmatpush.bf16.msra.mxu0 %v1138
    %2348 = vmatpush.bf16.msra.mxu0 %v1132
    %2349 = vmatpush.bf16.msra.mxu0 %v1126
    %2350 = vmatpush.bf16.msra.mxu0 %v1120
    %2351 = vmatpush.bf16.msra.mxu0 %v1114
    %2352 = vmatpush.bf16.msra.mxu0 %v1108
    %2353 = vmatmul.bf16.gmra.mxu0 %v2305
    %v2354 = vpop.f32.mrf.mxu0
    %v2355 = vadd.f32 %v2342, %v2354
    %v2356 = vpop.f32.mrf.mxu0
    %2357 = vdwg.mxu0
    %2358 = vmatpush.bf16.msra.mxu0 %v1103
    %2359 = vmatpush.bf16.msra.mxu0 %v1097
    %2360 = vmatpush.bf16.msra.mxu0 %v1091
    %2361 = vmatpush.bf16.msra.mxu0 %v1085
    %2362 = vmatpush.bf16.msra.mxu0 %v1079
    %2363 = vmatpush.bf16.msra.mxu0 %v1073
    %2364 = vmatpush.bf16.msra.mxu0 %v1067
    %2365 = vmatpush.bf16.msra.mxu0 %v1061
    %2366 = vmatmul.bf16.gmra.mxu0 %v2304
    %v2367 = vpop.f32.mrf.mxu0
    %v2368 = vadd.f32 0.0, %v2367
    %v2369 = vpop.f32.mrf.mxu0
    %2370 = vdwg.mxu0
    %2371 = vmatpush.bf16.msra.mxu0 %v1151
    %2372 = vmatpush.bf16.msra.mxu0 %v1145
    %2373 = vmatpush.bf16.msra.mxu0 %v1139
    %2374 = vmatpush.bf16.msra.mxu0 %v1133
    %2375 = vmatpush.bf16.msra.mxu0 %v1127
    %2376 = vmatpush.bf16.msra.mxu0 %v1121
    %2377 = vmatpush.bf16.msra.mxu0 %v1115
    %2378 = vmatpush.bf16.msra.mxu0 %v1109
    %2379 = vmatmul.bf16.gmra.mxu0 %v2305
    %v2380 = vpop.f32.mrf.mxu0
    %v2381 = vadd.f32 %v2368, %v2380
    %v2382 = vpop.f32.mrf.mxu0
    %2383 = vdwg.mxu0
    %2384 = vmatpush.bf16.msra.mxu0 %v1104
    %2385 = vmatpush.bf16.msra.mxu0 %v1098
    %2386 = vmatpush.bf16.msra.mxu0 %v1092
    %2387 = vmatpush.bf16.msra.mxu0 %v1086
    %2388 = vmatpush.bf16.msra.mxu0 %v1080
    %2389 = vmatpush.bf16.msra.mxu0 %v1074
    %2390 = vmatpush.bf16.msra.mxu0 %v1068
    %2391 = vmatpush.bf16.msra.mxu0 %v1062
    %2392 = vmatmul.bf16.gmra.mxu0 %v2304
    %v2393 = vpop.f32.mrf.mxu0
    %v2394 = vadd.f32 0.0, %v2393
    %v2395 = vpop.f32.mrf.mxu0
    %2396 = vdwg.mxu0
    %2397 = vmatpush.bf16.msra.mxu0 %v1152
    %2398 = vmatpush.bf16.msra.mxu0 %v1146
    %2399 = vmatpush.bf16.msra.mxu0 %v1140
    %2400 = vmatpush.bf16.msra.mxu0 %v1134
    %2401 = vmatpush.bf16.msra.mxu0 %v1128
    %2402 = vmatpush.bf16.msra.mxu0 %v1122
    %2403 = vmatpush.bf16.msra.mxu0 %v1116
    %2404 = vmatpush.bf16.msra.mxu0 %v1110
    %2405 = vmatmul.bf16.gmra.mxu0 %v2305
    %v2406 = vpop.f32.mrf.mxu0
    %v2407 = vadd.f32 %v2394, %v2406
    %v2408 = vpop.f32.mrf.mxu0
    %2409 = vdwg.mxu0
    %2410 = vmatpush.bf16.msra.mxu0 %v1105
    %2411 = vmatpush.bf16.msra.mxu0 %v1099
    %2412 = vmatpush.bf16.msra.mxu0 %v1093
    %2413 = vmatpush.bf16.msra.mxu0 %v1087
    %2414 = vmatpush.bf16.msra.mxu0 %v1081
    %2415 = vmatpush.bf16.msra.mxu0 %v1075
    %2416 = vmatpush.bf16.msra.mxu0 %v1069
    %2417 = vmatpush.bf16.msra.mxu0 %v1063
    %2418 = vmatmul.bf16.gmra.mxu0 %v2304
    %v2419 = vpop.f32.mrf.mxu0
    %v2420 = vadd.f32 0.0, %v2419
    %v2421 = vpop.f32.mrf.mxu0
    %2422 = vdwg.mxu0
    %2423 = vmatpush.bf16.msra.mxu0 %v1153
    %2424 = vmatpush.bf16.msra.mxu0 %v1147
    %2425 = vmatpush.bf16.msra.mxu0 %v1141
    %2426 = vmatpush.bf16.msra.mxu0 %v1135
    %2427 = vmatpush.bf16.msra.mxu0 %v1129
    %2428 = vmatpush.bf16.msra.mxu0 %v1123
    %2429 = vmatpush.bf16.msra.mxu0 %v1117
    %2430 = vmatpush.bf16.msra.mxu0 %v1111
    %2431 = vmatmul.bf16.gmra.mxu0 %v2305
    %v2432 = vpop.f32.mrf.mxu0
    %v2433 = vadd.f32 %v2420, %v2432
    %v2434 = vpop.f32.mrf.mxu0
    %2435 = vdwg.mxu0
    %2436 = vmatpush.bf16.msra.mxu0 %v1106
    %2437 = vmatpush.bf16.msra.mxu0 %v1100
    %2438 = vmatpush.bf16.msra.mxu0 %v1094
    %2439 = vmatpush.bf16.msra.mxu0 %v1088
    %2440 = vmatpush.bf16.msra.mxu0 %v1082
    %2441 = vmatpush.bf16.msra.mxu0 %v1076
    %2442 = vmatpush.bf16.msra.mxu0 %v1070
    %2443 = vmatpush.bf16.msra.mxu0 %v1064
    %2444 = vmatmul.bf16.gmra.mxu0 %v2304
    %v2445 = vpop.f32.mrf.mxu0
    %v2446 = vadd.f32 0.0, %v2445
    %v2447 = vpop.f32.mrf.mxu0
    %2448 = vdwg.mxu0
    %2449 = vmatpush.bf16.msra.mxu0 %v1154
    %2450 = vmatpush.bf16.msra.mxu0 %v1148
    %2451 = vmatpush.bf16.msra.mxu0 %v1142
    %2452 = vmatpush.bf16.msra.mxu0 %v1136
    %2453 = vmatpush.bf16.msra.mxu0 %v1130
    %2454 = vmatpush.bf16.msra.mxu0 %v1124
    %2455 = vmatpush.bf16.msra.mxu0 %v1118
    %2456 = vmatpush.bf16.msra.mxu0 %v1112
    %2457 = vmatmul.bf16.gmra.mxu0 %v2305
    %v2458 = vpop.f32.mrf.mxu0
    %v2459 = vadd.f32 %v2446, %v2458
    %v2460 = vpop.f32.mrf.mxu0
    %2461 = vdwg.mxu0
    %v2462 = vadd.f32 %v2298, %v2329
    %v2463 = vadd.f32 %v2301, %v2355
    %v2464 = vadd.f32 %v2299, %v2381
    %v2465 = vadd.f32 %v2302, %v2407
    %v2466 = vxor.u32 %v2462, 2147483648
    %v2467 = vxor.u32 %v2463, 2147483648
    %v2468 = vxor.u32 %v2464, 2147483648
    %v2469 = vxor.u32 %v2465, 2147483648
    %v2470 = vmul.f32 %v2466, 1.442695
    %v2471 = vpow.pop %v2470
    %v2472 = vmul.f32 %v2467, 1.442695
    %v2473 = vpow.pop %v2472
    %v2474 = vmul.f32 %v2468, 1.442695
    %v2475 = vpow.pop %v2474
    %v2476 = vmul.f32 %v2469, 1.442695
    %v2477 = vpow.pop %v2476
    %v2478 = vadd.f32 %v2471, 1.0
    %v2479 = vadd.f32 %v2473, 1.0
    %v2480 = vadd.f32 %v2475, 1.0
    %v2481 = vadd.f32 %v2477, 1.0
    %v2482 = vrcp.pop %v2478
    %v2483 = vmul.f32 %v2478, %v2482
    %v2484 = vsub.f32 1.0, %v2483
    %v2485 = vmul.f32 %v2482, %v2484
    %v2486 = vadd.f32 %v2482, %v2485
    %vm2487 = vweird.f32 %v2478
    %vm2488 = vweird.f32 %v2482
    %vm2489 = vmor %vm2487, %vm2488
    %v2490 = vsel %vm2489, %v2482, %v2486
    %v2491 = vand.u32 2147483647, %v2478
    %vm2492 = vcmp.eq.f32.partialorder %v2491, 8.507059e+37
    %v2493 = vand.u32 %v2478, 2147483648
    %v2494 = vor.u32 1.1754944e-38, %v2493
    %v2495 = vsel %vm2492, %v2494, %v2490
    %v2496 = vmul.f32 1.0, %v2495
    %v2497 = vrcp.pop %v2479
    %v2498 = vmul.f32 %v2479, %v2497
    %v2499 = vsub.f32 1.0, %v2498
    %v2500 = vmul.f32 %v2497, %v2499
    %v2501 = vadd.f32 %v2497, %v2500
    %vm2502 = vweird.f32 %v2479
    %vm2503 = vweird.f32 %v2497
    %vm2504 = vmor %vm2502, %vm2503
    %v2505 = vsel %vm2504, %v2497, %v2501
    %v2506 = vand.u32 2147483647, %v2479
    %vm2507 = vcmp.eq.f32.partialorder %v2506, 8.507059e+37
    %v2508 = vand.u32 %v2479, 2147483648
    %v2509 = vor.u32 1.1754944e-38, %v2508
    %v2510 = vsel %vm2507, %v2509, %v2505
    %v2511 = vmul.f32 1.0, %v2510
    %v2512 = vrcp.pop %v2480
    %v2513 = vmul.f32 %v2480, %v2512
    %v2514 = vsub.f32 1.0, %v2513
    %v2515 = vmul.f32 %v2512, %v2514
    %v2516 = vadd.f32 %v2512, %v2515
    %vm2517 = vweird.f32 %v2480
    %vm2518 = vweird.f32 %v2512
    %vm2519 = vmor %vm2517, %vm2518
    %v2520 = vsel %vm2519, %v2512, %v2516
    %v2521 = vand.u32 2147483647, %v2480
    %vm2522 = vcmp.eq.f32.partialorder %v2521, 8.507059e+37
    %v2523 = vand.u32 %v2480, 2147483648
    %v2524 = vor.u32 1.1754944e-38, %v2523
    %v2525 = vsel %vm2522, %v2524, %v2520
    %v2526 = vmul.f32 1.0, %v2525
    %v2527 = vrcp.pop %v2481
    %v2528 = vmul.f32 %v2481, %v2527
    %v2529 = vsub.f32 1.0, %v2528
    %v2530 = vmul.f32 %v2527, %v2529
    %v2531 = vadd.f32 %v2527, %v2530
    %vm2532 = vweird.f32 %v2481
    %vm2533 = vweird.f32 %v2527
    %vm2534 = vmor %vm2532, %vm2533
    %v2535 = vsel %vm2534, %v2527, %v2531
    %v2536 = vand.u32 2147483647, %v2481
    %vm2537 = vcmp.eq.f32.partialorder %v2536, 8.507059e+37
    %v2538 = vand.u32 %v2481, 2147483648
    %v2539 = vor.u32 1.1754944e-38, %v2538
    %v2540 = vsel %vm2537, %v2539, %v2535
    %v2541 = vmul.f32 1.0, %v2540
    %v2542 = vadd.f32 %v2433, %v761
    %v2543 = vadd.f32 %v2459, %v762
    %v2544 = vmul.f32 %v2496, %v2542
    %v2545 = vmul.f32 %v2511, %v2543
    %v2546 = vadd.f32 %v2300, %v2544
    %v2547 = vadd.f32 %v2303, %v2545
    %v2548 = vtanh.pop %v2546
    %v2549 = vtanh.pop %v2547
    %v2550 = vsub.f32 1.0, %v2526
    %v2551 = vsub.f32 1.0, %v2541
    %v2552 = vmul.f32 %v2550, %v2548
    %v2553 = vmul.f32 %v2551, %v2549
    %v2554 = vmul.f32 %v2526, %v2292
    %v2555 = vmul.f32 %v2541, %v2293
    %v2556 = vadd.f32 %v2552, %v2554
    %v2557 = vadd.f32 %v2553, %v2555
    %2558 = vst [vmem:[%s2296] sm:$0xff] %v2556
    %2559 = vst [vmem:[%s2294 + $0x8] sm:$0xff] %v2557
    %v2560 = vld [vmem:[#allocation2 + $0xf0] sm:$0xff]
    %v2561 = vld [vmem:[#allocation2 + $0x100] sm:$0xff]
    %v2562 = vld [vmem:[#allocation2 + $0x110] sm:$0xff]
    %v2563 = vld [vmem:[#allocation2 + $0x68] sm:$0xff]
    %v2564 = vld [vmem:[#allocation2 + $0x78] sm:$0xff]
    %v2565 = vld [vmem:[#allocation2 + $0x88] sm:$0xff]
    %v2566 = vpack.c.bf16 %v2556, %v2556
    %v2567 = vpack.c.bf16 %v2557, %v2557
    %2568 = vmatpush.bf16.msra.mxu0 %v1101
    %2569 = vmatpush.bf16.msra.mxu0 %v1095
    %2570 = vmatpush.bf16.msra.mxu0 %v1089
    %2571 = vmatpush.bf16.msra.mxu0 %v1083
    %2572 = vmatpush.bf16.msra.mxu0 %v1077
    %2573 = vmatpush.bf16.msra.mxu0 %v1071
    %2574 = vmatpush.bf16.msra.mxu0 %v1065
    %2575 = vmatpush.bf16.msra.mxu0 %v1059
    %2576 = vmatmul.bf16.gmra.mxu0 %v2566
    %v2577 = vpop.f32.mrf.mxu0
    %v2578 = vadd.f32 0.0, %v2577
    %v2579 = vpop.f32.mrf.mxu0
    %2580 = vdwg.mxu0
    %2581 = vmatpush.bf16.msra.mxu0 %v1149
    %2582 = vmatpush.bf16.msra.mxu0 %v1143
    %2583 = vmatpush.bf16.msra.mxu0 %v1137
    %2584 = vmatpush.bf16.msra.mxu0 %v1131
    %2585 = vmatpush.bf16.msra.mxu0 %v1125
    %2586 = vmatpush.bf16.msra.mxu0 %v1119
    %2587 = vmatpush.bf16.msra.mxu0 %v1113
    %2588 = vmatpush.bf16.msra.mxu0 %v1107
    %2589 = vmatmul.bf16.gmra.mxu0 %v2567
    %v2590 = vpop.f32.mrf.mxu0
    %v2591 = vadd.f32 %v2578, %v2590
    %v2592 = vpop.f32.mrf.mxu0
    %2593 = vdwg.mxu0
    %2594 = vmatpush.bf16.msra.mxu0 %v1102
    %2595 = vmatpush.bf16.msra.mxu0 %v1096
    %2596 = vmatpush.bf16.msra.mxu0 %v1090
    %2597 = vmatpush.bf16.msra.mxu0 %v1084
    %2598 = vmatpush.bf16.msra.mxu0 %v1078
    %2599 = vmatpush.bf16.msra.mxu0 %v1072
    %2600 = vmatpush.bf16.msra.mxu0 %v1066
    %2601 = vmatpush.bf16.msra.mxu0 %v1060
    %2602 = vmatmul.bf16.gmra.mxu0 %v2566
    %v2603 = vpop.f32.mrf.mxu0
    %v2604 = vadd.f32 0.0, %v2603
    %v2605 = vpop.f32.mrf.mxu0
    %2606 = vdwg.mxu0
    %2607 = vmatpush.bf16.msra.mxu0 %v1150
    %2608 = vmatpush.bf16.msra.mxu0 %v1144
    %2609 = vmatpush.bf16.msra.mxu0 %v1138
    %2610 = vmatpush.bf16.msra.mxu0 %v1132
    %2611 = vmatpush.bf16.msra.mxu0 %v1126
    %2612 = vmatpush.bf16.msra.mxu0 %v1120
    %2613 = vmatpush.bf16.msra.mxu0 %v1114
    %2614 = vmatpush.bf16.msra.mxu0 %v1108
    %2615 = vmatmul.bf16.gmra.mxu0 %v2567
    %v2616 = vpop.f32.mrf.mxu0
    %v2617 = vadd.f32 %v2604, %v2616
    %v2618 = vpop.f32.mrf.mxu0
    %2619 = vdwg.mxu0
    %2620 = vmatpush.bf16.msra.mxu0 %v1103
    %2621 = vmatpush.bf16.msra.mxu0 %v1097
    %2622 = vmatpush.bf16.msra.mxu0 %v1091
    %2623 = vmatpush.bf16.msra.mxu0 %v1085
    %2624 = vmatpush.bf16.msra.mxu0 %v1079
    %2625 = vmatpush.bf16.msra.mxu0 %v1073
    %2626 = vmatpush.bf16.msra.mxu0 %v1067
    %2627 = vmatpush.bf16.msra.mxu0 %v1061
    %2628 = vmatmul.bf16.gmra.mxu0 %v2566
    %v2629 = vpop.f32.mrf.mxu0
    %v2630 = vadd.f32 0.0, %v2629
    %v2631 = vpop.f32.mrf.mxu0
    %2632 = vdwg.mxu0
    %2633 = vmatpush.bf16.msra.mxu0 %v1151
    %2634 = vmatpush.bf16.msra.mxu0 %v1145
    %2635 = vmatpush.bf16.msra.mxu0 %v1139
    %2636 = vmatpush.bf16.msra.mxu0 %v1133
    %2637 = vmatpush.bf16.msra.mxu0 %v1127
    %2638 = vmatpush.bf16.msra.mxu0 %v1121
    %2639 = vmatpush.bf16.msra.mxu0 %v1115
    %2640 = vmatpush.bf16.msra.mxu0 %v1109
    %2641 = vmatmul.bf16.gmra.mxu0 %v2567
    %v2642 = vpop.f32.mrf.mxu0
    %v2643 = vadd.f32 %v2630, %v2642
    %v2644 = vpop.f32.mrf.mxu0
    %2645 = vdwg.mxu0
    %2646 = vmatpush.bf16.msra.mxu0 %v1104
    %2647 = vmatpush.bf16.msra.mxu0 %v1098
    %2648 = vmatpush.bf16.msra.mxu0 %v1092
    %2649 = vmatpush.bf16.msra.mxu0 %v1086
    %2650 = vmatpush.bf16.msra.mxu0 %v1080
    %2651 = vmatpush.bf16.msra.mxu0 %v1074
    %2652 = vmatpush.bf16.msra.mxu0 %v1068
    %2653 = vmatpush.bf16.msra.mxu0 %v1062
    %2654 = vmatmul.bf16.gmra.mxu0 %v2566
    %v2655 = vpop.f32.mrf.mxu0
    %v2656 = vadd.f32 0.0, %v2655
    %v2657 = vpop.f32.mrf.mxu0
    %2658 = vdwg.mxu0
    %2659 = vmatpush.bf16.msra.mxu0 %v1152
    %2660 = vmatpush.bf16.msra.mxu0 %v1146
    %2661 = vmatpush.bf16.msra.mxu0 %v1140
    %2662 = vmatpush.bf16.msra.mxu0 %v1134
    %2663 = vmatpush.bf16.msra.mxu0 %v1128
    %2664 = vmatpush.bf16.msra.mxu0 %v1122
    %2665 = vmatpush.bf16.msra.mxu0 %v1116
    %2666 = vmatpush.bf16.msra.mxu0 %v1110
    %2667 = vmatmul.bf16.gmra.mxu0 %v2567
    %v2668 = vpop.f32.mrf.mxu0
    %v2669 = vadd.f32 %v2656, %v2668
    %v2670 = vpop.f32.mrf.mxu0
    %2671 = vdwg.mxu0
    %2672 = vmatpush.bf16.msra.mxu0 %v1105
    %2673 = vmatpush.bf16.msra.mxu0 %v1099
    %2674 = vmatpush.bf16.msra.mxu0 %v1093
    %2675 = vmatpush.bf16.msra.mxu0 %v1087
    %2676 = vmatpush.bf16.msra.mxu0 %v1081
    %2677 = vmatpush.bf16.msra.mxu0 %v1075
    %2678 = vmatpush.bf16.msra.mxu0 %v1069
    %2679 = vmatpush.bf16.msra.mxu0 %v1063
    %2680 = vmatmul.bf16.gmra.mxu0 %v2566
    %v2681 = vpop.f32.mrf.mxu0
    %v2682 = vadd.f32 0.0, %v2681
    %v2683 = vpop.f32.mrf.mxu0
    %2684 = vdwg.mxu0
    %2685 = vmatpush.bf16.msra.mxu0 %v1153
    %2686 = vmatpush.bf16.msra.mxu0 %v1147
    %2687 = vmatpush.bf16.msra.mxu0 %v1141
    %2688 = vmatpush.bf16.msra.mxu0 %v1135
    %2689 = vmatpush.bf16.msra.mxu0 %v1129
    %2690 = vmatpush.bf16.msra.mxu0 %v1123
    %2691 = vmatpush.bf16.msra.mxu0 %v1117
    %2692 = vmatpush.bf16.msra.mxu0 %v1111
    %2693 = vmatmul.bf16.gmra.mxu0 %v2567
    %v2694 = vpop.f32.mrf.mxu0
    %v2695 = vadd.f32 %v2682, %v2694
    %v2696 = vpop.f32.mrf.mxu0
    %2697 = vdwg.mxu0
    %2698 = vmatpush.bf16.msra.mxu0 %v1106
    %2699 = vmatpush.bf16.msra.mxu0 %v1100
    %2700 = vmatpush.bf16.msra.mxu0 %v1094
    %2701 = vmatpush.bf16.msra.mxu0 %v1088
    %2702 = vmatpush.bf16.msra.mxu0 %v1082
    %2703 = vmatpush.bf16.msra.mxu0 %v1076
    %2704 = vmatpush.bf16.msra.mxu0 %v1070
    %2705 = vmatpush.bf16.msra.mxu0 %v1064
    %2706 = vmatmul.bf16.gmra.mxu0 %v2566
    %v2707 = vpop.f32.mrf.mxu0
    %v2708 = vadd.f32 0.0, %v2707
    %v2709 = vpop.f32.mrf.mxu0
    %2710 = vdwg.mxu0
    %2711 = vmatpush.bf16.msra.mxu0 %v1154
    %2712 = vmatpush.bf16.msra.mxu0 %v1148
    %2713 = vmatpush.bf16.msra.mxu0 %v1142
    %2714 = vmatpush.bf16.msra.mxu0 %v1136
    %2715 = vmatpush.bf16.msra.mxu0 %v1130
    %2716 = vmatpush.bf16.msra.mxu0 %v1124
    %2717 = vmatpush.bf16.msra.mxu0 %v1118
    %2718 = vmatpush.bf16.msra.mxu0 %v1112
    %2719 = vmatmul.bf16.gmra.mxu0 %v2567
    %v2720 = vpop.f32.mrf.mxu0
    %v2721 = vadd.f32 %v2708, %v2720
    %v2722 = vpop.f32.mrf.mxu0
    %2723 = vdwg.mxu0
    %v2724 = vadd.f32 %v2560, %v2591
    %v2725 = vadd.f32 %v2563, %v2617
    %v2726 = vadd.f32 %v2561, %v2643
    %v2727 = vadd.f32 %v2564, %v2669
    %v2728 = vxor.u32 %v2724, 2147483648
    %v2729 = vxor.u32 %v2725, 2147483648
    %v2730 = vxor.u32 %v2726, 2147483648
    %v2731 = vxor.u32 %v2727, 2147483648
    %v2732 = vmul.f32 %v2728, 1.442695
    %v2733 = vpow.pop %v2732
    %v2734 = vmul.f32 %v2729, 1.442695
    %v2735 = vpow.pop %v2734
    %v2736 = vmul.f32 %v2730, 1.442695
    %v2737 = vpow.pop %v2736
    %v2738 = vmul.f32 %v2731, 1.442695
    %v2739 = vpow.pop %v2738
    %v2740 = vadd.f32 %v2733, 1.0
    %v2741 = vadd.f32 %v2735, 1.0
    %v2742 = vadd.f32 %v2737, 1.0
    %v2743 = vadd.f32 %v2739, 1.0
    %v2744 = vrcp.pop %v2740
    %v2745 = vmul.f32 %v2740, %v2744
    %v2746 = vsub.f32 1.0, %v2745
    %v2747 = vmul.f32 %v2744, %v2746
    %v2748 = vadd.f32 %v2744, %v2747
    %vm2749 = vweird.f32 %v2740
    %vm2750 = vweird.f32 %v2744
    %vm2751 = vmor %vm2749, %vm2750
    %v2752 = vsel %vm2751, %v2744, %v2748
    %v2753 = vand.u32 2147483647, %v2740
    %vm2754 = vcmp.eq.f32.partialorder %v2753, 8.507059e+37
    %v2755 = vand.u32 %v2740, 2147483648
    %v2756 = vor.u32 1.1754944e-38, %v2755
    %v2757 = vsel %vm2754, %v2756, %v2752
    %v2758 = vmul.f32 1.0, %v2757
    %v2759 = vrcp.pop %v2741
    %v2760 = vmul.f32 %v2741, %v2759
    %v2761 = vsub.f32 1.0, %v2760
    %v2762 = vmul.f32 %v2759, %v2761
    %v2763 = vadd.f32 %v2759, %v2762
    %vm2764 = vweird.f32 %v2741
    %vm2765 = vweird.f32 %v2759
    %vm2766 = vmor %vm2764, %vm2765
    %v2767 = vsel %vm2766, %v2759, %v2763
    %v2768 = vand.u32 2147483647, %v2741
    %vm2769 = vcmp.eq.f32.partialorder %v2768, 8.507059e+37
    %v2770 = vand.u32 %v2741, 2147483648
    %v2771 = vor.u32 1.1754944e-38, %v2770
    %v2772 = vsel %vm2769, %v2771, %v2767
    %v2773 = vmul.f32 1.0, %v2772
    %v2774 = vrcp.pop %v2742
    %v2775 = vmul.f32 %v2742, %v2774
    %v2776 = vsub.f32 1.0, %v2775
    %v2777 = vmul.f32 %v2774, %v2776
    %v2778 = vadd.f32 %v2774, %v2777
    %vm2779 = vweird.f32 %v2742
    %vm2780 = vweird.f32 %v2774
    %vm2781 = vmor %vm2779, %vm2780
    %v2782 = vsel %vm2781, %v2774, %v2778
    %v2783 = vand.u32 2147483647, %v2742
    %vm2784 = vcmp.eq.f32.partialorder %v2783, 8.507059e+37
    %v2785 = vand.u32 %v2742, 2147483648
    %v2786 = vor.u32 1.1754944e-38, %v2785
    %v2787 = vsel %vm2784, %v2786, %v2782
    %v2788 = vmul.f32 1.0, %v2787
    %v2789 = vrcp.pop %v2743
    %v2790 = vmul.f32 %v2743, %v2789
    %v2791 = vsub.f32 1.0, %v2790
    %v2792 = vmul.f32 %v2789, %v2791
    %v2793 = vadd.f32 %v2789, %v2792
    %vm2794 = vweird.f32 %v2743
    %vm2795 = vweird.f32 %v2789
    %vm2796 = vmor %vm2794, %vm2795
    %v2797 = vsel %vm2796, %v2789, %v2793
    %v2798 = vand.u32 2147483647, %v2743
    %vm2799 = vcmp.eq.f32.partialorder %v2798, 8.507059e+37
    %v2800 = vand.u32 %v2743, 2147483648
    %v2801 = vor.u32 1.1754944e-38, %v2800
    %v2802 = vsel %vm2799, %v2801, %v2797
    %v2803 = vmul.f32 1.0, %v2802
    %v2804 = vadd.f32 %v2695, %v761
    %v2805 = vadd.f32 %v2721, %v762
    %v2806 = vmul.f32 %v2758, %v2804
    %v2807 = vmul.f32 %v2773, %v2805
    %v2808 = vadd.f32 %v2562, %v2806
    %v2809 = vadd.f32 %v2565, %v2807
    %v2810 = vtanh.pop %v2808
    %v2811 = vtanh.pop %v2809
    %v2812 = vsub.f32 1.0, %v2788
    %v2813 = vsub.f32 1.0, %v2803
    %v2814 = vmul.f32 %v2812, %v2810
    %v2815 = vmul.f32 %v2813, %v2811
    %v2816 = vmul.f32 %v2788, %v2556
    %v2817 = vmul.f32 %v2803, %v2557
    %v2818 = vadd.f32 %v2814, %v2816
    %v2819 = vadd.f32 %v2815, %v2817
    %2820 = vst [vmem:[%s2032] sm:$0xff] %v2818
    %2821 = vst [vmem:[%s2030 + $0x8] sm:$0xff] %v2819
    %v2822 = vld [vmem:[#allocation2 + $0x120] sm:$0xff]
    %v2823 = vld [vmem:[#allocation2 + $0x130] sm:$0xff]
    %v2824 = vld [vmem:[#allocation2 + $0x140] sm:$0xff]
    %v2825 = vld [vmem:[#allocation2 + $0x38] sm:$0xff]
    %v2826 = vld [vmem:[#allocation2 + $0x48] sm:$0xff]
    %v2827 = vld [vmem:[#allocation2 + $0x58] sm:$0xff]
    %v2828 = vpack.c.bf16 %v2818, %v2818
    %v2829 = vpack.c.bf16 %v2819, %v2819
    %2830 = vmatpush.bf16.msra.mxu0 %v1101
    %2831 = vmatpush.bf16.msra.mxu0 %v1095
    %2832 = vmatpush.bf16.msra.mxu0 %v1089
    %2833 = vmatpush.bf16.msra.mxu0 %v1083
    %2834 = vmatpush.bf16.msra.mxu0 %v1077
    %2835 = vmatpush.bf16.msra.mxu0 %v1071
    %2836 = vmatpush.bf16.msra.mxu0 %v1065
    %2837 = vmatpush.bf16.msra.mxu0 %v1059
    %2838 = vmatmul.bf16.gmra.mxu0 %v2828
    %v2839 = vpop.f32.mrf.mxu0
    %v2840 = vadd.f32 0.0, %v2839
    %v2841 = vpop.f32.mrf.mxu0
    %2842 = vdwg.mxu0
    %2843 = vmatpush.bf16.msra.mxu0 %v1149
    %2844 = vmatpush.bf16.msra.mxu0 %v1143
    %2845 = vmatpush.bf16.msra.mxu0 %v1137
    %2846 = vmatpush.bf16.msra.mxu0 %v1131
    %2847 = vmatpush.bf16.msra.mxu0 %v1125
    %2848 = vmatpush.bf16.msra.mxu0 %v1119
    %2849 = vmatpush.bf16.msra.mxu0 %v1113
    %2850 = vmatpush.bf16.msra.mxu0 %v1107
    %2851 = vmatmul.bf16.gmra.mxu0 %v2829
    %v2852 = vpop.f32.mrf.mxu0
    %v2853 = vadd.f32 %v2840, %v2852
    %v2854 = vpop.f32.mrf.mxu0
    %2855 = vdwg.mxu0
    %2856 = vmatpush.bf16.msra.mxu0 %v1102
    %2857 = vmatpush.bf16.msra.mxu0 %v1096
    %2858 = vmatpush.bf16.msra.mxu0 %v1090
    %2859 = vmatpush.bf16.msra.mxu0 %v1084
    %2860 = vmatpush.bf16.msra.mxu0 %v1078
    %2861 = vmatpush.bf16.msra.mxu0 %v1072
    %2862 = vmatpush.bf16.msra.mxu0 %v1066
    %2863 = vmatpush.bf16.msra.mxu0 %v1060
    %2864 = vmatmul.bf16.gmra.mxu0 %v2828
    %v2865 = vpop.f32.mrf.mxu0
    %v2866 = vadd.f32 0.0, %v2865
    %v2867 = vpop.f32.mrf.mxu0
    %2868 = vdwg.mxu0
    %2869 = vmatpush.bf16.msra.mxu0 %v1150
    %2870 = vmatpush.bf16.msra.mxu0 %v1144
    %2871 = vmatpush.bf16.msra.mxu0 %v1138
    %2872 = vmatpush.bf16.msra.mxu0 %v1132
    %2873 = vmatpush.bf16.msra.mxu0 %v1126
    %2874 = vmatpush.bf16.msra.mxu0 %v1120
    %2875 = vmatpush.bf16.msra.mxu0 %v1114
    %2876 = vmatpush.bf16.msra.mxu0 %v1108
    %2877 = vmatmul.bf16.gmra.mxu0 %v2829
    %v2878 = vpop.f32.mrf.mxu0
    %v2879 = vadd.f32 %v2866, %v2878
    %v2880 = vpop.f32.mrf.mxu0
    %2881 = vdwg.mxu0
    %2882 = vmatpush.bf16.msra.mxu0 %v1103
    %2883 = vmatpush.bf16.msra.mxu0 %v1097
    %2884 = vmatpush.bf16.msra.mxu0 %v1091
    %2885 = vmatpush.bf16.msra.mxu0 %v1085
    %2886 = vmatpush.bf16.msra.mxu0 %v1079
    %2887 = vmatpush.bf16.msra.mxu0 %v1073
    %2888 = vmatpush.bf16.msra.mxu0 %v1067
    %2889 = vmatpush.bf16.msra.mxu0 %v1061
    %2890 = vmatmul.bf16.gmra.mxu0 %v2828
    %v2891 = vpop.f32.mrf.mxu0
    %v2892 = vadd.f32 0.0, %v2891
    %v2893 = vpop.f32.mrf.mxu0
    %2894 = vdwg.mxu0
    %2895 = vmatpush.bf16.msra.mxu0 %v1151
    %2896 = vmatpush.bf16.msra.mxu0 %v1145
    %2897 = vmatpush.bf16.msra.mxu0 %v1139
    %2898 = vmatpush.bf16.msra.mxu0 %v1133
    %2899 = vmatpush.bf16.msra.mxu0 %v1127
    %2900 = vmatpush.bf16.msra.mxu0 %v1121
    %2901 = vmatpush.bf16.msra.mxu0 %v1115
    %2902 = vmatpush.bf16.msra.mxu0 %v1109
    %2903 = vmatmul.bf16.gmra.mxu0 %v2829
    %v2904 = vpop.f32.mrf.mxu0
    %v2905 = vadd.f32 %v2892, %v2904
    %v2906 = vpop.f32.mrf.mxu0
    %2907 = vdwg.mxu0
    %2908 = vmatpush.bf16.msra.mxu0 %v1104
    %2909 = vmatpush.bf16.msra.mxu0 %v1098
    %2910 = vmatpush.bf16.msra.mxu0 %v1092
    %2911 = vmatpush.bf16.msra.mxu0 %v1086
    %2912 = vmatpush.bf16.msra.mxu0 %v1080
    %2913 = vmatpush.bf16.msra.mxu0 %v1074
    %2914 = vmatpush.bf16.msra.mxu0 %v1068
    %2915 = vmatpush.bf16.msra.mxu0 %v1062
    %2916 = vmatmul.bf16.gmra.mxu0 %v2828
    %v2917 = vpop.f32.mrf.mxu0
    %v2918 = vadd.f32 0.0, %v2917
    %v2919 = vpop.f32.mrf.mxu0
    %2920 = vdwg.mxu0
    %2921 = vmatpush.bf16.msra.mxu0 %v1152
    %2922 = vmatpush.bf16.msra.mxu0 %v1146
    %2923 = vmatpush.bf16.msra.mxu0 %v1140
    %2924 = vmatpush.bf16.msra.mxu0 %v1134
    %2925 = vmatpush.bf16.msra.mxu0 %v1128
    %2926 = vmatpush.bf16.msra.mxu0 %v1122
    %2927 = vmatpush.bf16.msra.mxu0 %v1116
    %2928 = vmatpush.bf16.msra.mxu0 %v1110
    %2929 = vmatmul.bf16.gmra.mxu0 %v2829
    %v2930 = vpop.f32.mrf.mxu0
    %v2931 = vadd.f32 %v2918, %v2930
    %v2932 = vpop.f32.mrf.mxu0
    %2933 = vdwg.mxu0
    %2934 = vmatpush.bf16.msra.mxu0 %v1105
    %2935 = vmatpush.bf16.msra.mxu0 %v1099
    %2936 = vmatpush.bf16.msra.mxu0 %v1093
    %2937 = vmatpush.bf16.msra.mxu0 %v1087
    %2938 = vmatpush.bf16.msra.mxu0 %v1081
    %2939 = vmatpush.bf16.msra.mxu0 %v1075
    %2940 = vmatpush.bf16.msra.mxu0 %v1069
    %2941 = vmatpush.bf16.msra.mxu0 %v1063
    %2942 = vmatmul.bf16.gmra.mxu0 %v2828
    %v2943 = vpop.f32.mrf.mxu0
    %v2944 = vadd.f32 0.0, %v2943
    %v2945 = vpop.f32.mrf.mxu0
    %2946 = vdwg.mxu0
    %2947 = vmatpush.bf16.msra.mxu0 %v1153
    %2948 = vmatpush.bf16.msra.mxu0 %v1147
    %2949 = vmatpush.bf16.msra.mxu0 %v1141
    %2950 = vmatpush.bf16.msra.mxu0 %v1135
    %2951 = vmatpush.bf16.msra.mxu0 %v1129
    %2952 = vmatpush.bf16.msra.mxu0 %v1123
    %2953 = vmatpush.bf16.msra.mxu0 %v1117
    %2954 = vmatpush.bf16.msra.mxu0 %v1111
    %2955 = vmatmul.bf16.gmra.mxu0 %v2829
    %v2956 = vpop.f32.mrf.mxu0
    %v2957 = vadd.f32 %v2944, %v2956
    %v2958 = vpop.f32.mrf.mxu0
    %2959 = vdwg.mxu0
    %2960 = vmatpush.bf16.msra.mxu0 %v1106
    %2961 = vmatpush.bf16.msra.mxu0 %v1100
    %2962 = vmatpush.bf16.msra.mxu0 %v1094
    %2963 = vmatpush.bf16.msra.mxu0 %v1088
    %2964 = vmatpush.bf16.msra.mxu0 %v1082
    %2965 = vmatpush.bf16.msra.mxu0 %v1076
    %2966 = vmatpush.bf16.msra.mxu0 %v1070
    %2967 = vmatpush.bf16.msra.mxu0 %v1064
    %2968 = vmatmul.bf16.gmra.mxu0 %v2828
    %v2969 = vpop.f32.mrf.mxu0
    %v2970 = vadd.f32 0.0, %v2969
    %v2971 = vpop.f32.mrf.mxu0
    %2972 = vdwg.mxu0
    %2973 = vmatpush.bf16.msra.mxu0 %v1154
    %2974 = vmatpush.bf16.msra.mxu0 %v1148
    %2975 = vmatpush.bf16.msra.mxu0 %v1142
    %2976 = vmatpush.bf16.msra.mxu0 %v1136
    %2977 = vmatpush.bf16.msra.mxu0 %v1130
    %2978 = vmatpush.bf16.msra.mxu0 %v1124
    %2979 = vmatpush.bf16.msra.mxu0 %v1118
    %2980 = vmatpush.bf16.msra.mxu0 %v1112
    %2981 = vmatmul.bf16.gmra.mxu0 %v2829
    %v2982 = vpop.f32.mrf.mxu0
    %v2983 = vadd.f32 %v2970, %v2982
    %v2984 = vpop.f32.mrf.mxu0
    %2985 = vdwg.mxu0
    %v2986 = vadd.f32 %v2822, %v2853
    %v2987 = vadd.f32 %v2825, %v2879
    %v2988 = vadd.f32 %v2823, %v2905
    %v2989 = vadd.f32 %v2826, %v2931
    %v2990 = vxor.u32 %v2986, 2147483648
    %v2991 = vxor.u32 %v2987, 2147483648
    %v2992 = vxor.u32 %v2988, 2147483648
    %v2993 = vxor.u32 %v2989, 2147483648
    %v2994 = vmul.f32 %v2990, 1.442695
    %v2995 = vpow.pop %v2994
    %v2996 = vmul.f32 %v2991, 1.442695
    %v2997 = vpow.pop %v2996
    %v2998 = vmul.f32 %v2992, 1.442695
    %v2999 = vpow.pop %v2998
    %v3000 = vmul.f32 %v2993, 1.442695
    %v3001 = vpow.pop %v3000
    %v3002 = vadd.f32 %v2995, 1.0
    %v3003 = vadd.f32 %v2997, 1.0
    %v3004 = vadd.f32 %v2999, 1.0
    %v3005 = vadd.f32 %v3001, 1.0
    %v3006 = vrcp.pop %v3002
    %v3007 = vmul.f32 %v3002, %v3006
    %v3008 = vsub.f32 1.0, %v3007
    %v3009 = vmul.f32 %v3006, %v3008
    %v3010 = vadd.f32 %v3006, %v3009
    %vm3011 = vweird.f32 %v3002
    %vm3012 = vweird.f32 %v3006
    %vm3013 = vmor %vm3011, %vm3012
    %v3014 = vsel %vm3013, %v3006, %v3010
    %v3015 = vand.u32 2147483647, %v3002
    %vm3016 = vcmp.eq.f32.partialorder %v3015, 8.507059e+37
    %v3017 = vand.u32 %v3002, 2147483648
    %v3018 = vor.u32 1.1754944e-38, %v3017
    %v3019 = vsel %vm3016, %v3018, %v3014
    %v3020 = vmul.f32 1.0, %v3019
    %v3021 = vrcp.pop %v3003
    %v3022 = vmul.f32 %v3003, %v3021
    %v3023 = vsub.f32 1.0, %v3022
    %v3024 = vmul.f32 %v3021, %v3023
    %v3025 = vadd.f32 %v3021, %v3024
    %vm3026 = vweird.f32 %v3003
    %vm3027 = vweird.f32 %v3021
    %vm3028 = vmor %vm3026, %vm3027
    %v3029 = vsel %vm3028, %v3021, %v3025
    %v3030 = vand.u32 2147483647, %v3003
    %vm3031 = vcmp.eq.f32.partialorder %v3030, 8.507059e+37
    %v3032 = vand.u32 %v3003, 2147483648
    %v3033 = vor.u32 1.1754944e-38, %v3032
    %v3034 = vsel %vm3031, %v3033, %v3029
    %v3035 = vmul.f32 1.0, %v3034
    %v3036 = vrcp.pop %v3004
    %v3037 = vmul.f32 %v3004, %v3036
    %v3038 = vsub.f32 1.0, %v3037
    %v3039 = vmul.f32 %v3036, %v3038
    %v3040 = vadd.f32 %v3036, %v3039
    %vm3041 = vweird.f32 %v3004
    %vm3042 = vweird.f32 %v3036
    %vm3043 = vmor %vm3041, %vm3042
    %v3044 = vsel %vm3043, %v3036, %v3040
    %v3045 = vand.u32 2147483647, %v3004
    %vm3046 = vcmp.eq.f32.partialorder %v3045, 8.507059e+37
    %v3047 = vand.u32 %v3004, 2147483648
    %v3048 = vor.u32 1.1754944e-38, %v3047
    %v3049 = vsel %vm3046, %v3048, %v3044
    %v3050 = vmul.f32 1.0, %v3049
    %v3051 = vrcp.pop %v3005
    %v3052 = vmul.f32 %v3005, %v3051
    %v3053 = vsub.f32 1.0, %v3052
    %v3054 = vmul.f32 %v3051, %v3053
    %v3055 = vadd.f32 %v3051, %v3054
    %vm3056 = vweird.f32 %v3005
    %vm3057 = vweird.f32 %v3051
    %vm3058 = vmor %vm3056, %vm3057
    %v3059 = vsel %vm3058, %v3051, %v3055
    %v3060 = vand.u32 2147483647, %v3005
    %vm3061 = vcmp.eq.f32.partialorder %v3060, 8.507059e+37
    %v3062 = vand.u32 %v3005, 2147483648
    %v3063 = vor.u32 1.1754944e-38, %v3062
    %v3064 = vsel %vm3061, %v3063, %v3059
    %v3065 = vmul.f32 1.0, %v3064
    %v3066 = vadd.f32 %v2957, %v761
    %v3067 = vadd.f32 %v2983, %v762
    %v3068 = vmul.f32 %v3020, %v3066
    %v3069 = vmul.f32 %v3035, %v3067
    %v3070 = vadd.f32 %v2824, %v3068
    %v3071 = vadd.f32 %v2827, %v3069
    %v3072 = vtanh.pop %v3070
    %v3073 = vtanh.pop %v3071
    %v3074 = vsub.f32 1.0, %v3050
    %v3075 = vsub.f32 1.0, %v3065
    %v3076 = vmul.f32 %v3074, %v3072
    %v3077 = vmul.f32 %v3075, %v3073
    %v3078 = vmul.f32 %v3050, %v2818
    %v3079 = vmul.f32 %v3065, %v2819
    %v3080 = vadd.f32 %v3076, %v3078
    %v3081 = vadd.f32 %v3077, %v3079
    %3082 = vst [vmem:[%s1768] sm:$0xff] %v3080
    %3083 = vst [vmem:[%s1766 + $0x8] sm:$0xff] %v3081
    %v3084 = vld [vmem:[#allocation2 + $0x150] sm:$0xff]
    %v3085 = vld [vmem:[#allocation2 + $0x160] sm:$0xff]
    %v3086 = vld [vmem:[#allocation2 + $0x170] sm:$0xff]
    %v3087 = vld [vmem:[#allocation2 + $0x8] sm:$0xff]
    %v3088 = vld [vmem:[#allocation2 + $0x18] sm:$0xff]
    %v3089 = vld [vmem:[#allocation2 + $0x28] sm:$0xff]
    %v3090 = vpack.c.bf16 %v3080, %v3080
    %v3091 = vpack.c.bf16 %v3081, %v3081
    %3092 = vmatpush.bf16.msra.mxu0 %v1101
    %3093 = vmatpush.bf16.msra.mxu0 %v1095
    %3094 = vmatpush.bf16.msra.mxu0 %v1089
    %3095 = vmatpush.bf16.msra.mxu0 %v1083
    %3096 = vmatpush.bf16.msra.mxu0 %v1077
    %3097 = vmatpush.bf16.msra.mxu0 %v1071
    %3098 = vmatpush.bf16.msra.mxu0 %v1065
    %3099 = vmatpush.bf16.msra.mxu0 %v1059
    %3100 = vmatmul.bf16.gmra.mxu0 %v3090
    %v3101 = vpop.f32.mrf.mxu0
    %v3102 = vadd.f32 0.0, %v3101
    %v3103 = vpop.f32.mrf.mxu0
    %3104 = vdwg.mxu0
    %3105 = vmatpush.bf16.msra.mxu0 %v1149
    %3106 = vmatpush.bf16.msra.mxu0 %v1143
    %3107 = vmatpush.bf16.msra.mxu0 %v1137
    %3108 = vmatpush.bf16.msra.mxu0 %v1131
    %3109 = vmatpush.bf16.msra.mxu0 %v1125
    %3110 = vmatpush.bf16.msra.mxu0 %v1119
    %3111 = vmatpush.bf16.msra.mxu0 %v1113
    %3112 = vmatpush.bf16.msra.mxu0 %v1107
    %3113 = vmatmul.bf16.gmra.mxu0 %v3091
    %v3114 = vpop.f32.mrf.mxu0
    %v3115 = vadd.f32 %v3102, %v3114
    %v3116 = vpop.f32.mrf.mxu0
    %3117 = vdwg.mxu0
    %3118 = vmatpush.bf16.msra.mxu0 %v1102
    %3119 = vmatpush.bf16.msra.mxu0 %v1096
    %3120 = vmatpush.bf16.msra.mxu0 %v1090
    %3121 = vmatpush.bf16.msra.mxu0 %v1084
    %3122 = vmatpush.bf16.msra.mxu0 %v1078
    %3123 = vmatpush.bf16.msra.mxu0 %v1072
    %3124 = vmatpush.bf16.msra.mxu0 %v1066
    %3125 = vmatpush.bf16.msra.mxu0 %v1060
    %3126 = vmatmul.bf16.gmra.mxu0 %v3090
    %v3127 = vpop.f32.mrf.mxu0
    %v3128 = vadd.f32 0.0, %v3127
    %v3129 = vpop.f32.mrf.mxu0
    %3130 = vdwg.mxu0
    %3131 = vmatpush.bf16.msra.mxu0 %v1150
    %3132 = vmatpush.bf16.msra.mxu0 %v1144
    %3133 = vmatpush.bf16.msra.mxu0 %v1138
    %3134 = vmatpush.bf16.msra.mxu0 %v1132
    %3135 = vmatpush.bf16.msra.mxu0 %v1126
    %3136 = vmatpush.bf16.msra.mxu0 %v1120
    %3137 = vmatpush.bf16.msra.mxu0 %v1114
    %3138 = vmatpush.bf16.msra.mxu0 %v1108
    %3139 = vmatmul.bf16.gmra.mxu0 %v3091
    %v3140 = vpop.f32.mrf.mxu0
    %v3141 = vadd.f32 %v3128, %v3140
    %v3142 = vpop.f32.mrf.mxu0
    %3143 = vdwg.mxu0
    %3144 = vmatpush.bf16.msra.mxu0 %v1103
    %3145 = vmatpush.bf16.msra.mxu0 %v1097
    %3146 = vmatpush.bf16.msra.mxu0 %v1091
    %3147 = vmatpush.bf16.msra.mxu0 %v1085
    %3148 = vmatpush.bf16.msra.mxu0 %v1079
    %3149 = vmatpush.bf16.msra.mxu0 %v1073
    %3150 = vmatpush.bf16.msra.mxu0 %v1067
    %3151 = vmatpush.bf16.msra.mxu0 %v1061
    %3152 = vmatmul.bf16.gmra.mxu0 %v3090
    %v3153 = vpop.f32.mrf.mxu0
    %v3154 = vadd.f32 0.0, %v3153
    %v3155 = vpop.f32.mrf.mxu0
    %3156 = vdwg.mxu0
    %3157 = vmatpush.bf16.msra.mxu0 %v1151
    %3158 = vmatpush.bf16.msra.mxu0 %v1145
    %3159 = vmatpush.bf16.msra.mxu0 %v1139
    %3160 = vmatpush.bf16.msra.mxu0 %v1133
    %3161 = vmatpush.bf16.msra.mxu0 %v1127
    %3162 = vmatpush.bf16.msra.mxu0 %v1121
    %3163 = vmatpush.bf16.msra.mxu0 %v1115
    %3164 = vmatpush.bf16.msra.mxu0 %v1109
    %3165 = vmatmul.bf16.gmra.mxu0 %v3091
    %v3166 = vpop.f32.mrf.mxu0
    %v3167 = vadd.f32 %v3154, %v3166
    %v3168 = vpop.f32.mrf.mxu0
    %3169 = vdwg.mxu0
    %3170 = vmatpush.bf16.msra.mxu0 %v1104
    %3171 = vmatpush.bf16.msra.mxu0 %v1098
    %3172 = vmatpush.bf16.msra.mxu0 %v1092
    %3173 = vmatpush.bf16.msra.mxu0 %v1086
    %3174 = vmatpush.bf16.msra.mxu0 %v1080
    %3175 = vmatpush.bf16.msra.mxu0 %v1074
    %3176 = vmatpush.bf16.msra.mxu0 %v1068
    %3177 = vmatpush.bf16.msra.mxu0 %v1062
    %3178 = vmatmul.bf16.gmra.mxu0 %v3090
    %v3179 = vpop.f32.mrf.mxu0
    %v3180 = vadd.f32 0.0, %v3179
    %v3181 = vpop.f32.mrf.mxu0
    %3182 = vdwg.mxu0
    %3183 = vmatpush.bf16.msra.mxu0 %v1152
    %3184 = vmatpush.bf16.msra.mxu0 %v1146
    %3185 = vmatpush.bf16.msra.mxu0 %v1140
    %3186 = vmatpush.bf16.msra.mxu0 %v1134
    %3187 = vmatpush.bf16.msra.mxu0 %v1128
    %3188 = vmatpush.bf16.msra.mxu0 %v1122
    %3189 = vmatpush.bf16.msra.mxu0 %v1116
    %3190 = vmatpush.bf16.msra.mxu0 %v1110
    %3191 = vmatmul.bf16.gmra.mxu0 %v3091
    %v3192 = vpop.f32.mrf.mxu0
    %v3193 = vadd.f32 %v3180, %v3192
    %v3194 = vpop.f32.mrf.mxu0
    %3195 = vdwg.mxu0
    %3196 = vmatpush.bf16.msra.mxu0 %v1105
    %3197 = vmatpush.bf16.msra.mxu0 %v1099
    %3198 = vmatpush.bf16.msra.mxu0 %v1093
    %3199 = vmatpush.bf16.msra.mxu0 %v1087
    %3200 = vmatpush.bf16.msra.mxu0 %v1081
    %3201 = vmatpush.bf16.msra.mxu0 %v1075
    %3202 = vmatpush.bf16.msra.mxu0 %v1069
    %3203 = vmatpush.bf16.msra.mxu0 %v1063
    %3204 = vmatmul.bf16.gmra.mxu0 %v3090
    %v3205 = vpop.f32.mrf.mxu0
    %v3206 = vadd.f32 0.0, %v3205
    %v3207 = vpop.f32.mrf.mxu0
    %3208 = vdwg.mxu0
    %3209 = vmatpush.bf16.msra.mxu0 %v1153
    %3210 = vmatpush.bf16.msra.mxu0 %v1147
    %3211 = vmatpush.bf16.msra.mxu0 %v1141
    %3212 = vmatpush.bf16.msra.mxu0 %v1135
    %3213 = vmatpush.bf16.msra.mxu0 %v1129
    %3214 = vmatpush.bf16.msra.mxu0 %v1123
    %3215 = vmatpush.bf16.msra.mxu0 %v1117
    %3216 = vmatpush.bf16.msra.mxu0 %v1111
    %3217 = vmatmul.bf16.gmra.mxu0 %v3091
    %v3218 = vpop.f32.mrf.mxu0
    %v3219 = vadd.f32 %v3206, %v3218
    %v3220 = vpop.f32.mrf.mxu0
    %3221 = vdwg.mxu0
    %3222 = vmatpush.bf16.msra.mxu0 %v1106
    %3223 = vmatpush.bf16.msra.mxu0 %v1100
    %3224 = vmatpush.bf16.msra.mxu0 %v1094
    %3225 = vmatpush.bf16.msra.mxu0 %v1088
    %3226 = vmatpush.bf16.msra.mxu0 %v1082
    %3227 = vmatpush.bf16.msra.mxu0 %v1076
    %3228 = vmatpush.bf16.msra.mxu0 %v1070
    %3229 = vmatpush.bf16.msra.mxu0 %v1064
    %3230 = vmatmul.bf16.gmra.mxu0 %v3090
    %v3231 = vpop.f32.mrf.mxu0
    %v3232 = vadd.f32 0.0, %v3231
    %v3233 = vpop.f32.mrf.mxu0
    %3234 = vdwg.mxu0
    %3235 = vmatpush.bf16.msra.mxu0 %v1154
    %3236 = vmatpush.bf16.msra.mxu0 %v1148
    %3237 = vmatpush.bf16.msra.mxu0 %v1142
    %3238 = vmatpush.bf16.msra.mxu0 %v1136
    %3239 = vmatpush.bf16.msra.mxu0 %v1130
    %3240 = vmatpush.bf16.msra.mxu0 %v1124
    %3241 = vmatpush.bf16.msra.mxu0 %v1118
    %3242 = vmatpush.bf16.msra.mxu0 %v1112
    %3243 = vmatmul.bf16.gmra.mxu0 %v3091
    %v3244 = vpop.f32.mrf.mxu0
    %v3245 = vadd.f32 %v3232, %v3244
    %v3246 = vpop.f32.mrf.mxu0
    %3247 = vdwg.mxu0
    %v3248 = vadd.f32 %v3084, %v3115
    %v3249 = vadd.f32 %v3087, %v3141
    %v3250 = vadd.f32 %v3085, %v3167
    %v3251 = vadd.f32 %v3088, %v3193
    %v3252 = vxor.u32 %v3248, 2147483648
    %v3253 = vxor.u32 %v3249, 2147483648
    %v3254 = vxor.u32 %v3250, 2147483648
    %v3255 = vxor.u32 %v3251, 2147483648
    %v3256 = vmul.f32 %v3252, 1.442695
    %v3257 = vpow.pop %v3256
    %v3258 = vmul.f32 %v3253, 1.442695
    %v3259 = vpow.pop %v3258
    %v3260 = vmul.f32 %v3254, 1.442695
    %v3261 = vpow.pop %v3260
    %v3262 = vmul.f32 %v3255, 1.442695
    %v3263 = vpow.pop %v3262
    %v3264 = vadd.f32 %v3257, 1.0
    %v3265 = vadd.f32 %v3259, 1.0
    %v3266 = vadd.f32 %v3261, 1.0
    %v3267 = vadd.f32 %v3263, 1.0
    %v3268 = vrcp.pop %v3264
    %v3269 = vmul.f32 %v3264, %v3268
    %v3270 = vsub.f32 1.0, %v3269
    %v3271 = vmul.f32 %v3268, %v3270
    %v3272 = vadd.f32 %v3268, %v3271
    %vm3273 = vweird.f32 %v3264
    %vm3274 = vweird.f32 %v3268
    %vm3275 = vmor %vm3273, %vm3274
    %v3276 = vsel %vm3275, %v3268, %v3272
    %v3277 = vand.u32 2147483647, %v3264
    %vm3278 = vcmp.eq.f32.partialorder %v3277, 8.507059e+37
    %v3279 = vand.u32 %v3264, 2147483648
    %v3280 = vor.u32 1.1754944e-38, %v3279
    %v3281 = vsel %vm3278, %v3280, %v3276
    %v3282 = vmul.f32 1.0, %v3281
    %v3283 = vrcp.pop %v3265
    %v3284 = vmul.f32 %v3265, %v3283
    %v3285 = vsub.f32 1.0, %v3284
    %v3286 = vmul.f32 %v3283, %v3285
    %v3287 = vadd.f32 %v3283, %v3286
    %vm3288 = vweird.f32 %v3265
    %vm3289 = vweird.f32 %v3283
    %vm3290 = vmor %vm3288, %vm3289
    %v3291 = vsel %vm3290, %v3283, %v3287
    %v3292 = vand.u32 2147483647, %v3265
    %vm3293 = vcmp.eq.f32.partialorder %v3292, 8.507059e+37
    %v3294 = vand.u32 %v3265, 2147483648
    %v3295 = vor.u32 1.1754944e-38, %v3294
    %v3296 = vsel %vm3293, %v3295, %v3291
    %v3297 = vmul.f32 1.0, %v3296
    %v3298 = vrcp.pop %v3266
    %v3299 = vmul.f32 %v3266, %v3298
    %v3300 = vsub.f32 1.0, %v3299
    %v3301 = vmul.f32 %v3298, %v3300
    %v3302 = vadd.f32 %v3298, %v3301
    %vm3303 = vweird.f32 %v3266
    %vm3304 = vweird.f32 %v3298
    %vm3305 = vmor %vm3303, %vm3304
    %v3306 = vsel %vm3305, %v3298, %v3302
    %v3307 = vand.u32 2147483647, %v3266
    %vm3308 = vcmp.eq.f32.partialorder %v3307, 8.507059e+37
    %v3309 = vand.u32 %v3266, 2147483648
    %v3310 = vor.u32 1.1754944e-38, %v3309
    %v3311 = vsel %vm3308, %v3310, %v3306
    %v3312 = vmul.f32 1.0, %v3311
    %v3313 = vrcp.pop %v3267
    %v3314 = vmul.f32 %v3267, %v3313
    %v3315 = vsub.f32 1.0, %v3314
    %v3316 = vmul.f32 %v3313, %v3315
    %v3317 = vadd.f32 %v3313, %v3316
    %vm3318 = vweird.f32 %v3267
    %vm3319 = vweird.f32 %v3313
    %vm3320 = vmor %vm3318, %vm3319
    %v3321 = vsel %vm3320, %v3313, %v3317
    %v3322 = vand.u32 2147483647, %v3267
    %vm3323 = vcmp.eq.f32.partialorder %v3322, 8.507059e+37
    %v3324 = vand.u32 %v3267, 2147483648
    %v3325 = vor.u32 1.1754944e-38, %v3324
    %v3326 = vsel %vm3323, %v3325, %v3321
    %v3327 = vmul.f32 1.0, %v3326
    %v3328 = vadd.f32 %v3219, %v761
    %v3329 = vadd.f32 %v3245, %v762
    %v3330 = vmul.f32 %v3282, %v3328
    %v3331 = vmul.f32 %v3297, %v3329
    %v3332 = vadd.f32 %v3086, %v3330
    %v3333 = vadd.f32 %v3089, %v3331
    %v3334 = vtanh.pop %v3332
    %v3335 = vtanh.pop %v3333
    %v3336 = vsub.f32 1.0, %v3312
    %v3337 = vsub.f32 1.0, %v3327
    %v3338 = vmul.f32 %v3336, %v3334
    %v3339 = vmul.f32 %v3337, %v3335
    %v3340 = vmul.f32 %v3312, %v3080
    %v3341 = vmul.f32 %v3327, %v3081
    %v3342 = vadd.f32 %v3338, %v3340
    %v3343 = vadd.f32 %v3339, %v3341
    %3344 = vst [vmem:[%s1504] sm:$0xff] %v3342
    %3345 = vst [vmem:[#allocation12 + $0x8] sm:$0xff] %v3343
    %v3346 = vpack.c.bf16 %v3342, %v3342
    %v3347 = vpack.c.bf16 %v3343, %v3343
    %v3348 = vld [vmem:[#allocation11] sm:$0xf]
    %v3349 = vld [vmem:[#allocation11 + $0x4] sm:$0xf]
    %v3350 = vld [vmem:[#allocation11 + $0x8] sm:$0xf]
    %v3351 = vld [vmem:[#allocation11 + $0xc] sm:$0xf]
    %v3352 = vld [vmem:[#allocation11 + $0x10] sm:$0xf]
    %v3353 = vld [vmem:[#allocation11 + $0x14] sm:$0xf]
    %v3354 = vld [vmem:[#allocation11 + $0x18] sm:$0xf]
    %v3355 = vld [vmem:[#allocation11 + $0x1c] sm:$0xf]
    %v3356 = vld [vmem:[#allocation11 + $0x20] sm:$0xf]
    %v3357 = vld [vmem:[#allocation11 + $0x24] sm:$0xf]
    %v3358 = vld [vmem:[#allocation11 + $0x28] sm:$0xf]
    %v3359 = vld [vmem:[#allocation11 + $0x2c] sm:$0xf]
    %v3360 = vld [vmem:[#allocation11 + $0x30] sm:$0xf]
    %v3361 = vld [vmem:[#allocation11 + $0x34] sm:$0xf]
    %v3362 = vld [vmem:[#allocation11 + $0x38] sm:$0xf]
    %v3363 = vld [vmem:[#allocation11 + $0x3c] sm:$0xf]
    %v3364 = vld [vmem:[#allocation11 + $0x40] sm:$0xf]
    %v3365 = vld [vmem:[#allocation11 + $0x44] sm:$0xf]
    %v3366 = vld [vmem:[#allocation11 + $0x48] sm:$0xf]
    %v3367 = vld [vmem:[#allocation11 + $0x4c] sm:$0xf]
    %v3368 = vld [vmem:[#allocation11 + $0x50] sm:$0xf]
    %v3369 = vld [vmem:[#allocation11 + $0x54] sm:$0xf]
    %v3370 = vld [vmem:[#allocation11 + $0x58] sm:$0xf]
    %v3371 = vld [vmem:[#allocation11 + $0x5c] sm:$0xf]
    %v3372 = vld [vmem:[#allocation11 + $0x60] sm:$0xf]
    %v3373 = vld [vmem:[#allocation11 + $0x64] sm:$0xf]
    %v3374 = vld [vmem:[#allocation11 + $0x68] sm:$0xf]
    %v3375 = vld [vmem:[#allocation11 + $0x6c] sm:$0xf]
    %v3376 = vld [vmem:[#allocation11 + $0x70] sm:$0xf]
    %v3377 = vld [vmem:[#allocation11 + $0x74] sm:$0xf]
    %v3378 = vld [vmem:[#allocation11 + $0x78] sm:$0xf]
    %v3379 = vld [vmem:[#allocation11 + $0x7c] sm:$0xf]
    %v3380 = vld [vmem:[%s6] sm:$0x1]
    %v3382 = vperm.slane %v3380, 0
    %v3416 = vunpack.c.l.b16 %v3348
    %v3417 = vunpack.c.l.b16 %v3349
    %v3418 = vunpack.c.l.b16 %v3350
    %v3419 = vunpack.c.l.b16 %v3351
    %v3420 = vunpack.c.l.b16 %v3352
    %v3421 = vunpack.c.l.b16 %v3353
    %v3422 = vunpack.c.l.b16 %v3354
    %v3423 = vunpack.c.l.b16 %v3355
    %v3424 = vunpack.c.l.b16 %v3356
    %v3425 = vunpack.c.l.b16 %v3357
    %v3426 = vunpack.c.l.b16 %v3358
    %v3427 = vunpack.c.l.b16 %v3359
    %v3428 = vunpack.c.l.b16 %v3360
    %v3429 = vunpack.c.l.b16 %v3361
    %v3430 = vunpack.c.l.b16 %v3362
    %v3431 = vunpack.c.l.b16 %v3363
    %v3432 = vunpack.c.l.b16 %v3364
    %v3433 = vunpack.c.l.b16 %v3365
    %v3434 = vunpack.c.l.b16 %v3366
    %v3435 = vunpack.c.l.b16 %v3367
    %v3436 = vunpack.c.l.b16 %v3368
    %v3437 = vunpack.c.l.b16 %v3369
    %v3438 = vunpack.c.l.b16 %v3370
    %v3439 = vunpack.c.l.b16 %v3371
    %v3440 = vunpack.c.l.b16 %v3372
    %v3441 = vunpack.c.l.b16 %v3373
    %v3442 = vunpack.c.l.b16 %v3374
    %v3443 = vunpack.c.l.b16 %v3375
    %v3444 = vunpack.c.l.b16 %v3376
    %v3445 = vunpack.c.l.b16 %v3377
    %v3446 = vunpack.c.l.b16 %v3378
    %v3447 = vunpack.c.l.b16 %v3379
    %v3448 = vpack.c.b16 %v3417, %v3416
    %v3449 = vpack.c.b16 %v3419, %v3418
    %v3450 = vpack.c.b16 %v3421, %v3420
    %v3451 = vpack.c.b16 %v3423, %v3422
    %v3452 = vpack.c.b16 %v3425, %v3424
    %v3453 = vpack.c.b16 %v3427, %v3426
    %v3454 = vpack.c.b16 %v3429, %v3428
    %v3455 = vpack.c.b16 %v3431, %v3430
    %v3456 = vpack.c.b16 %v3433, %v3432
    %v3457 = vpack.c.b16 %v3435, %v3434
    %v3458 = vpack.c.b16 %v3437, %v3436
    %v3459 = vpack.c.b16 %v3439, %v3438
    %v3460 = vpack.c.b16 %v3441, %v3440
    %v3461 = vpack.c.b16 %v3443, %v3442
    %v3462 = vpack.c.b16 %v3445, %v3444
    %v3463 = vpack.c.b16 %v3447, %v3446
    %3480 = vmatpush.bf16.msra.mxu0 %v3455
    %3481 = vmatpush.bf16.msra.mxu0 %v3454
    %3482 = vmatpush.bf16.msra.mxu0 %v3453
    %3483 = vmatpush.bf16.msra.mxu0 %v3452
    %3484 = vmatpush.bf16.msra.mxu0 %v3451
    %3485 = vmatpush.bf16.msra.mxu0 %v3450
    %3486 = vmatpush.bf16.msra.mxu0 %v3449
    %3487 = vmatpush.bf16.msra.mxu0 %v3448
    %3488 = vmatmul.bf16.gmra.mxu0 %v3346
    %v3489 = vpop.f32.mrf.mxu0
    %v3490 = vadd.f32 %v3382, %v3489
    %v3491 = vpop.f32.mrf.mxu0
    %3492 = vdwg.mxu0
    %3493 = vmatpush.bf16.msra.mxu0 %v3463
    %3494 = vmatpush.bf16.msra.mxu0 %v3462
    %3495 = vmatpush.bf16.msra.mxu0 %v3461
    %3496 = vmatpush.bf16.msra.mxu0 %v3460
    %3497 = vmatpush.bf16.msra.mxu0 %v3459
    %3498 = vmatpush.bf16.msra.mxu0 %v3458
    %3499 = vmatpush.bf16.msra.mxu0 %v3457
    %3500 = vmatpush.bf16.msra.mxu0 %v3456
    %3501 = vmatmul.bf16.gmra.mxu0 %v3347
    %v3502 = vpop.f32.mrf.mxu0
    %v3503 = vadd.f32 %v3490, %v3502
    %v3504 = vpop.f32.mrf.mxu0
    %3505 = vdwg.mxu0
    %v3506 = vtanh.pop %v3503
    %3507 = vst [vmem:[#allocation13] sm:$0xff] %v3506
    // Predicated region
    $region50: #{tpu_custom_call.1} parent=1 // pred_check
      _
    $region51: #{tpu_custom_call.1} parent=1 // pred_check_branch
      %3509 = sbr.rel (0) target = $region53
    $region52: #{tpu_custom_call.1} parent=1 // pred_region
      %3511 = vsyncadd [#allocation5], 0
      %s3512 = sshll.u32 [#allocation12], 4
      %s3513 = int_to_ptr.vmem [resolvable:$true] %s3512
      %s3514 = sshll.u32 %s7, 4
      %s3515 = int_to_ptr.hbm [resolvable:$true] %s3514
      %3520 = dma.vmem_to_hbm [thread:$0]  %s3513, 2048, %s3515, [#allocation5], 256, 256, 16
    $region53: #{tpu_custom_call.1} parent=1 // pred_fallthru
      _
    // Predicated region
    $region54: #{tpu_custom_call.1} parent=1 // pred_check
      _
    $region55: #{tpu_custom_call.1} parent=1 // pred_check_branch
      %3522 = sbr.rel (0) target = $region57
    $region56: #{tpu_custom_call.1} parent=1 // pred_region
      %3524 = vsyncadd [#allocation14], 0
      %s3526 = sshll.u32 [#allocation13], 4
      %s3527 = int_to_ptr.vmem [resolvable:$true] %s3526
      %s3528 = sshll.u32 %s8, 4
      %s3529 = int_to_ptr.hbm [resolvable:$true] %s3528
      %3531 = dma.vmem_to_hbm [thread:$0]  %s3527, 128, %s3529, [#allocation14]
    $region57: #{tpu_custom_call.1} parent=1 // pred_fallthru
      _
    // Predicated region
    $region58: #{tpu_custom_call.1} parent=1 // pred_check
      _
    $region59: #{tpu_custom_call.1} parent=1 // pred_check_branch
      %3533 = sbr.rel (0) target = $region61
    $region60: #{tpu_custom_call.1} parent=1 // pred_region
      %3535 = dma.done [#allocation5], 2048
    $region61: #{tpu_custom_call.1} parent=1 // pred_fallthru
      _
    // Predicated region
    $region62: #{tpu_custom_call.1} parent=1 // pred_check
      _
    $region63: #{tpu_custom_call.1} parent=1 // pred_check_branch
      %3537 = sbr.rel (0) target = $region65
    $region64: #{tpu_custom_call.1} parent=1 // pred_region
      %3539 = dma.done [#allocation14], 128
    $region65: #{tpu_custom_call.1} parent=1 // pred_fallthru
      _
    %3540 = vsyncpa [#allocation4], 1
    %3541 = vsyncpa [#allocation7], 1
    %3542 = vsyncpa [#allocation10], 1
    %3543 = vsyncpa [#allocation5], 1
    %3544 = vsyncpa [#allocation14], 1

</llo_original>
